<compile_context>
chip_gen: v6e
topology: v6e:2x2x1
jax: 0.10.0
libtpu: 0.0.40
codegen_flags: <defaults>
</compile_context>

<pallas_src>
import functools
import math

import jax
import jax.numpy as jnp
from jax.experimental import pallas as pl
from jax.experimental.pallas import tpu as pltpu  # noqa: F401  (kept for TPU backend use)

# -----------------------------------------------------------------------------
# Hyper-parameters: VectorLSTM(predicted_steps=6, num_predictions=3, 'MSE')
# -----------------------------------------------------------------------------
PREDICTED_STEPS = 6                    # module internally doubles it
K = 3                                  # num_predictions
HIDDEN = 64                            # hidden_unit
OUT_SIZE = PREDICTED_STEPS * 2 * K     # 36 (MSE branch, no GNLLL doubling)
OUT_PAD = 128                          # lane-dense padded output width

B = 2            # batch
T = 8            # agent history length
NV = 16          # number of map vectors
P = 4            # number of map polylines (clusters) per batch element
N_NODES = 1 + P  # agent node + polyline nodes fed to self-attention
NEG = -1e30      # fill value for empty-cluster max pooling


# -----------------------------------------------------------------------------
# Fused kernel
# -----------------------------------------------------------------------------
def _cluster_max(feat, mask_cols):
    """Per-cluster max pooling. feat [V, C]; mask_cols: list of [V, 1] bool -> [n, C]."""
    rows = [jnp.max(jnp.where(m, feat, NEG), axis=0, keepdims=True) for m in mask_cols]
    return jnp.concatenate(rows, axis=0)


def _vector_lstm_kernel(
    x_agent_ref,        # [T*B, 4]   time-major, row = t*B + b
    x_map_ref,          # [B*NV, 5]
    onehot_ref,         # [B*NV, B*P] batch-offset one-hot cluster assignment
    wih_ref, whh_ref, b_lstm_ref,     # [4,4H], [H,4H], [1,4H]  (b_ih + b_hh)
    wlin_ref, blin_ref,               # [H,2H], [1,2H]
    w0_ref, b0_ref,                   # [5,H],  [1,H]
    w1_ref, b1_ref,                   # [2H,H], [1,H]
    w2_ref, b2_ref,                   # [2H,H], [1,H]
    wq_ref, bq_ref,                   # [2H,H], [1,H]   (pre-scaled by 1/sqrt(H))
    wk_ref, bk_ref,                   # [2H,H], [1,H]
    wv_ref, bv_ref,                   # [2H,H], [1,H]
    wd1_ref, bd1_ref,                 # [H,H],  [1,H]
    wd2_ref, bd2_ref,                 # [H,OUT_PAD], [1,OUT_PAD] (zero padded past OUT_SIZE)
    out_ref,                          # [B, OUT_PAD]
):
    H = HIDDEN
    f32 = jnp.float32

    # ---------------- LSTMEncoder (PyTorch gate order i, f, g, o) ----------------
    # Hoist the input projection out of the serial recurrence: one [T*B,4]x[4,4H] matmul.
    gates_x = (jnp.dot(x_agent_ref[...], wih_ref[...], preferred_element_type=f32)
               + b_lstm_ref[...])                                   # [T*B, 4H]
    whh = whh_ref[...]
    h = jnp.zeros((B, H), f32)
    c = jnp.zeros((B, H), f32)
    for t in range(T):                                              # static unroll (T=8)
        g = gates_x[t * B:(t + 1) * B, :] + jnp.dot(h, whh, preferred_element_type=f32)
        i_g = jax.nn.sigmoid(g[:, 0 * H:1 * H])
        f_g = jax.nn.sigmoid(g[:, 1 * H:2 * H])
        g_g = jnp.tanh(g[:, 2 * H:3 * H])
        o_g = jax.nn.sigmoid(g[:, 3 * H:4 * H])
        c = f_g * c + i_g * g_g
        h = o_g * jnp.tanh(c)
    agent_enc = (jnp.dot(h, wlin_ref[...], preferred_element_type=f32)
                 + blin_ref[...])                                   # [B, 2H]

    # ---------------- SubGraph (all batches flattened: [B*NV, *]) ----------------
    mask = onehot_ref[...]                                          # [B*NV, B*P]
    n_clusters = B * P
    mask_cols = [mask[:, p:p + 1] > 0.5 for p in range(n_clusters)]  # hoisted, reused 3x

    feat = x_map_ref[...]                                           # [B*NV, 5]
    enc = jnp.maximum(
        jnp.dot(feat, w0_ref[...], preferred_element_type=f32) + b0_ref[...], 0.0)
    cmax = _cluster_max(enc, mask_cols)                             # [B*P, H]
    agg = jnp.dot(mask, cmax, preferred_element_type=f32)           # [B*NV, H]

    # layers 1, 2: new_enc = relu(concat([enc, agg]) @ W + b), done WITHOUT the lane
    # concat by splitting W into its top/bottom 64-row halves (aligned sublane slices).
    for w_ref, b_ref in ((w1_ref, b1_ref), (w2_ref, b2_ref)):
        w = w_ref[...]                                              # [2H, H]
        enc = jnp.maximum(
            jnp.dot(enc, w[0:H, :], preferred_element_type=f32)
            + jnp.dot(agg, w[H:2 * H, :], preferred_element_type=f32)
            + b_ref[...], 0.0)
        cmax = _cluster_max(enc, mask_cols)
        agg = jnp.dot(mask, cmax, preferred_element_type=f32)

    # Final polyline features = cluster_max(concat([enc, agg])) =
    # concat([cluster_max(enc), cluster_max(agg)]).  With one-hot clusters both halves
    # equal cmax (per-cluster max of the broadcast agg is the cluster value itself), so
    # the 2H-wide map node feature is [cmax, cmax] and we never materialize the concat.
    map_half = cmax                                                 # [B*P, H]

    # ---------------- SelfAttention (only node-0 output is consumed) -------------
    wq = wq_ref[...]; wk = wk_ref[...]; wv = wv_ref[...]
    bq = bq_ref[...]; bk = bk_ref[...]; bv = bv_ref[...]
    # agent node features are naturally 2H wide
    q_agent = jnp.dot(agent_enc, wq, preferred_element_type=f32) + bq   # [B, H]
    k_agent = jnp.dot(agent_enc, wk, preferred_element_type=f32) + bk
    v_agent = jnp.dot(agent_enc, wv, preferred_element_type=f32) + bv
    # map node features = [map_half, map_half]  ->  fold W's two halves together
    k_map = jnp.dot(map_half, wk[0:H, :] + wk[H:2 * H, :],
                    preferred_element_type=f32) + bk                    # [B*P, H]
    v_map = jnp.dot(map_half, wv[0:H, :] + wv[H:2 * H, :],
                    preferred_element_type=f32) + bv

    ctxs = []
    for b in range(B):                                               # static, B=2
        k_b = jnp.concatenate([k_agent[b:b + 1, :], k_map[b * P:(b + 1) * P, :]], axis=0)
        v_b = jnp.concatenate([v_agent[b:b + 1, :], v_map[b * P:(b + 1) * P, :]], axis=0)
        q0 = q_agent[b:b + 1, :]                                     # [1, H]
        s = jnp.dot(q0, k_b.T, preferred_element_type=f32)           # [1, N] (scale folded)
        s = s - jnp.max(s, axis=-1, keepdims=True)
        e = jnp.exp(s)
        attn = e * pl.reciprocal(jnp.sum(e, axis=-1, keepdims=True), approx=True)
        ctxs.append(jnp.dot(attn, v_b, preferred_element_type=f32))  # [1, H]
    ctx = jnp.concatenate(ctxs, axis=0)                              # [B, H]

    # ---------------- TrajDecoder (lane-dense padded output) ---------------------
    hdec = jnp.maximum(
        jnp.dot(ctx, wd1_ref[...], preferred_element_type=f32) + bd1_ref[...], 0.0)
    out_ref[...] = (jnp.dot(hdec, wd2_ref[...], preferred_element_type=f32)
                    + bd2_ref[...])                                  # [B, OUT_PAD]


# -----------------------------------------------------------------------------
# Parameters (deterministic synthetic init, PyTorch layouts)
# -----------------------------------------------------------------------------
def init_params(key):
    ks = jax.random.split(key, 24)
    w = lambda k, shape: 0.1 * jax.random.normal(k, shape, jnp.float32)
    H = HIDDEN
    p = {}
    # LSTMEncoder: nn.LSTM(4, H, 1, batch_first=True) + nn.Linear(H, 2H)
    p['w_ih'] = w(ks[0], (4 * H, 4))
    p['w_hh'] = w(ks[1], (4 * H, H))
    p['b_ih'] = w(ks[2], (4 * H,))
    p['b_hh'] = w(ks[3], (4 * H,))
    p['w_lin'] = w(ks[4], (2 * H, H))
    p['b_lin'] = w(ks[5], (2 * H,))
    # SubGraph: Linear(5->H), Linear(2H->H), Linear(2H->H)
    p['sg_w0'] = w(ks[6], (H, 5));       p['sg_b0'] = w(ks[7], (H,))
    p['sg_w1'] = w(ks[8], (H, 2 * H));   p['sg_b1'] = w(ks[9], (H,))
    p['sg_w2'] = w(ks[10], (H, 2 * H));  p['sg_b2'] = w(ks[11], (H,))
    # SelfAttention: q/k/v Linear(2H -> H)
    p['wq'] = w(ks[12], (H, 2 * H));     p['bq'] = w(ks[13], (H,))
    p['wk'] = w(ks[14], (H, 2 * H));     p['bk'] = w(ks[15], (H,))
    p['wv'] = w(ks[16], (H, 2 * H));     p['bv'] = w(ks[17], (H,))
    # TrajDecoder: Linear(H->H) + ReLU + Linear(H->OUT_SIZE)
    p['wd1'] = w(ks[18], (H, H));        p['bd1'] = w(ks[19], (H,))
    p['wd2'] = w(ks[20], (OUT_SIZE, H)); p['bd2'] = w(ks[21], (OUT_SIZE,))
    return p


# -----------------------------------------------------------------------------
# Forward: one fused pallas_call (gridless; full arrays resident in VMEM)
# -----------------------------------------------------------------------------
def vector_lstm_forward(params, x_agent, x_map, cluster):
    H = HIDDEN
    f32 = jnp.float32
    Bsz, T_, _ = x_agent.shape
    NV_ = x_map.shape[1]
    assert (Bsz, T_, NV_) == (B, T, NV)

    # Time-major flatten: row t*B + b
    x_flat = jnp.transpose(x_agent, (1, 0, 2)).reshape(T * B, 4).astype(f32)
    x_map_flat = x_map.reshape(B * NV, x_map.shape[-1]).astype(f32)

    # Batch-offset one-hot cluster assignment: global cluster id = b*P + cluster[b, v]
    cl_global = cluster.astype(jnp.int32) + (jnp.arange(B, dtype=jnp.int32) * P)[:, None]
    onehot = jax.nn.one_hot(cl_global.reshape(-1), B * P, dtype=f32)   # [B*NV, B*P]

    scale = 1.0 / math.sqrt(H)                                          # fold 1/sqrt(d) into Q
    wd2_pad = jnp.zeros((H, OUT_PAD), f32).at[:, :OUT_SIZE].set(params['wd2'].T)
    bd2_pad = jnp.zeros((1, OUT_PAD), f32).at[:, :OUT_SIZE].set(params['bd2'].reshape(1, -1))

    args = (
        x_flat, x_map_flat, onehot,
        params['w_ih'].T, params['w_hh'].T,
        (params['b_ih'] + params['b_hh']).reshape(1, -1),
        params['w_lin'].T, params['b_lin'].reshape(1, -1),
        params['sg_w0'].T, params['sg_b0'].reshape(1, -1),
        params['sg_w1'].T, params['sg_b1'].reshape(1, -1),
        params['sg_w2'].T, params['sg_b2'].reshape(1, -1),
        params['wq'].T * scale, params['bq'].reshape(1, -1) * scale,
        params['wk'].T, params['bk'].reshape(1, -1),
        params['wv'].T, params['bv'].reshape(1, -1),
        params['wd1'].T, params['bd1'].reshape(1, -1),
        wd2_pad, bd2_pad,
    )

    y = pl.pallas_call(
        _vector_lstm_kernel,
        out_shape=jax.ShapeDtypeStruct((B, OUT_PAD), f32),
    )(*args)                                                           # [B, OUT_PAD]

    return y[:, :OUT_SIZE].reshape(B, K, -1)      # x.view(x.shape[0], self.K, -1)


# -----------------------------------------------------------------------------
if __name__ == "__main__":
    key = jax.random.PRNGKey(0)
    kp, ka, km = jax.random.split(key, 3)

    params = init_params(kp)
    x_agent = jax.random.normal(ka, (B, T, 4), jnp.float32)
    x_map = jax.random.normal(km, (B, NV, 5), jnp.float32)
    cluster = jnp.tile(jnp.arange(NV, dtype=jnp.int32) % P, (B, 1))

    fwd = jax.jit(functools.partial(vector_lstm_forward, params))
    out = jax.block_until_ready(fwd(x_agent, x_map, cluster))

    assert out.shape == (B, K, PREDICTED_STEPS * 2), out.shape
    assert bool(jnp.all(jnp.isfinite(out)))
    print("KERNEL_OK")
</pallas_src>

<mosaic_0001>
module attributes {stable_mosaic.version = 11 : i64} {
  func.func @_vector_lstm_kernel(%arg0: memref<16x4xf32, #tpu.memory_space<vmem>>, %arg1: memref<32x5xf32, #tpu.memory_space<vmem>>, %arg2: memref<32x8xf32, #tpu.memory_space<vmem>>, %arg3: memref<4x256xf32, #tpu.memory_space<vmem>>, %arg4: memref<64x256xf32, #tpu.memory_space<vmem>>, %arg5: memref<1x256xf32, #tpu.memory_space<vmem>>, %arg6: memref<64x128xf32, #tpu.memory_space<vmem>>, %arg7: memref<1x128xf32, #tpu.memory_space<vmem>>, %arg8: memref<5x64xf32, #tpu.memory_space<vmem>>, %arg9: memref<1x64xf32, #tpu.memory_space<vmem>>, %arg10: memref<128x64xf32, #tpu.memory_space<vmem>>, %arg11: memref<1x64xf32, #tpu.memory_space<vmem>>, %arg12: memref<128x64xf32, #tpu.memory_space<vmem>>, %arg13: memref<1x64xf32, #tpu.memory_space<vmem>>, %arg14: memref<128x64xf32, #tpu.memory_space<vmem>>, %arg15: memref<1x64xf32, #tpu.memory_space<vmem>>, %arg16: memref<128x64xf32, #tpu.memory_space<vmem>>, %arg17: memref<1x64xf32, #tpu.memory_space<vmem>>, %arg18: memref<128x64xf32, #tpu.memory_space<vmem>>, %arg19: memref<1x64xf32, #tpu.memory_space<vmem>>, %arg20: memref<64x64xf32, #tpu.memory_space<vmem>>, %arg21: memref<1x64xf32, #tpu.memory_space<vmem>>, %arg22: memref<64x128xf32, #tpu.memory_space<vmem>>, %arg23: memref<1x128xf32, #tpu.memory_space<vmem>>, %arg24: memref<2x128xf32, #tpu.memory_space<vmem>>) attributes {dimension_semantics = [], scalar_prefetch = 0 : i64, scratch_operands = 0 : i64, tpu.core_type = #tpu.core_type<tc>} {
    %c0 = arith.constant 0 : index
    %c0_0 = arith.constant 0 : index
    %0 = vector.load %arg0[%c0, %c0_0] : memref<16x4xf32, #tpu.memory_space<vmem>>, vector<16x4xf32>
    %c0_1 = arith.constant 0 : index
    %c0_2 = arith.constant 0 : index
    %1 = vector.load %arg3[%c0_1, %c0_2] : memref<4x256xf32, #tpu.memory_space<vmem>>, vector<4x256xf32>
    %cst = arith.constant dense<0.000000e+00> : vector<16x256xf32>
    %2 = tpu.matmul %0, %1, %cst {dimension_numbers = #tpu.dot_dimension_numbers<[1], [0], [0], [1], [0, 0, 1, 1], [], []>} : vector<16x4xf32>, vector<4x256xf32>, vector<16x256xf32> -> vector<16x256xf32>
    %c0_3 = arith.constant 0 : index
    %c0_4 = arith.constant 0 : index
    %3 = vector.load %arg5[%c0_3, %c0_4] : memref<1x256xf32, #tpu.memory_space<vmem>>, vector<1x256xf32>
    %4 = vector.broadcast %3 : vector<1x256xf32> to vector<16x256xf32>
    %5 = arith.addf %2, %4 : vector<16x256xf32>
    %c0_5 = arith.constant 0 : index
    %c0_6 = arith.constant 0 : index
    %6 = vector.load %arg4[%c0_5, %c0_6] : memref<64x256xf32, #tpu.memory_space<vmem>>, vector<64x256xf32>
    %cst_7 = arith.constant 0.000000e+00 : f32
    %7 = vector.broadcast %cst_7 : f32 to vector<2x64xf32>
    %cst_8 = arith.constant 0.000000e+00 : f32
    %8 = vector.broadcast %cst_8 : f32 to vector<2x64xf32>
    %9 = vector.extract_strided_slice %5 {offsets = [0, 0], sizes = [2, 256], strides = [1, 1]} : vector<16x256xf32> to vector<2x256xf32>
    %cst_9 = arith.constant dense<0.000000e+00> : vector<2x256xf32>
    %10 = tpu.matmul %7, %6, %cst_9 {dimension_numbers = #tpu.dot_dimension_numbers<[1], [0], [0], [1], [0, 0, 1, 1], [], []>} : vector<2x64xf32>, vector<64x256xf32>, vector<2x256xf32> -> vector<2x256xf32>
    %11 = arith.addf %9, %10 : vector<2x256xf32>
    %12 = vector.extract_strided_slice %11 {offsets = [0, 0], sizes = [2, 64], strides = [1, 1]} : vector<2x256xf32> to vector<2x64xf32>
    %13 = arith.negf %12 : vector<2x64xf32>
    %14 = math.exp %13 : vector<2x64xf32>
    %cst_10 = arith.constant 1.000000e+00 : f32
    %15 = vector.broadcast %cst_10 : f32 to vector<2x64xf32>
    %16 = arith.addf %15, %14 : vector<2x64xf32>
    %17 = arith.divf %15, %16 : vector<2x64xf32>
    %18 = vector.extract_strided_slice %11 {offsets = [0, 64], sizes = [2, 64], strides = [1, 1]} : vector<2x256xf32> to vector<2x64xf32>
    %19 = arith.negf %18 : vector<2x64xf32>
    %20 = math.exp %19 : vector<2x64xf32>
    %cst_11 = arith.constant 1.000000e+00 : f32
    %21 = vector.broadcast %cst_11 : f32 to vector<2x64xf32>
    %22 = arith.addf %21, %20 : vector<2x64xf32>
    %23 = arith.divf %21, %22 : vector<2x64xf32>
    %24 = vector.extract_strided_slice %11 {offsets = [0, 128], sizes = [2, 64], strides = [1, 1]} : vector<2x256xf32> to vector<2x64xf32>
    %25 = math.tanh %24 : vector<2x64xf32>
    %26 = vector.extract_strided_slice %11 {offsets = [0, 192], sizes = [2, 64], strides = [1, 1]} : vector<2x256xf32> to vector<2x64xf32>
    %27 = arith.negf %26 : vector<2x64xf32>
    %28 = math.exp %27 : vector<2x64xf32>
    %cst_12 = arith.constant 1.000000e+00 : f32
    %29 = vector.broadcast %cst_12 : f32 to vector<2x64xf32>
    %30 = arith.addf %29, %28 : vector<2x64xf32>
    %31 = arith.divf %29, %30 : vector<2x64xf32>
    %32 = arith.mulf %23, %8 : vector<2x64xf32>
    %33 = arith.mulf %17, %25 : vector<2x64xf32>
    %34 = arith.addf %32, %33 : vector<2x64xf32>
    %35 = math.tanh %34 : vector<2x64xf32>
    %36 = arith.mulf %31, %35 : vector<2x64xf32>
    %37 = vector.extract_strided_slice %5 {offsets = [2, 0], sizes = [2, 256], strides = [1, 1]} : vector<16x256xf32> to vector<2x256xf32>
    %cst_13 = arith.constant dense<0.000000e+00> : vector<2x256xf32>
    %38 = tpu.matmul %36, %6, %cst_13 {dimension_numbers = #tpu.dot_dimension_numbers<[1], [0], [0], [1], [0, 0, 1, 1], [], []>} : vector<2x64xf32>, vector<64x256xf32>, vector<2x256xf32> -> vector<2x256xf32>
    %39 = arith.addf %37, %38 : vector<2x256xf32>
    %40 = vector.extract_strided_slice %39 {offsets = [0, 0], sizes = [2, 64], strides = [1, 1]} : vector<2x256xf32> to vector<2x64xf32>
    %41 = arith.negf %40 : vector<2x64xf32>
    %42 = math.exp %41 : vector<2x64xf32>
    %cst_14 = arith.constant 1.000000e+00 : f32
    %43 = vector.broadcast %cst_14 : f32 to vector<2x64xf32>
    %44 = arith.addf %43, %42 : vector<2x64xf32>
    %45 = arith.divf %43, %44 : vector<2x64xf32>
    %46 = vector.extract_strided_slice %39 {offsets = [0, 64], sizes = [2, 64], strides = [1, 1]} : vector<2x256xf32> to vector<2x64xf32>
    %47 = arith.negf %46 : vector<2x64xf32>
    %48 = math.exp %47 : vector<2x64xf32>
    %cst_15 = arith.constant 1.000000e+00 : f32
    %49 = vector.broadcast %cst_15 : f32 to vector<2x64xf32>
    %50 = arith.addf %49, %48 : vector<2x64xf32>
    %51 = arith.divf %49, %50 : vector<2x64xf32>
    %52 = vector.extract_strided_slice %39 {offsets = [0, 128], sizes = [2, 64], strides = [1, 1]} : vector<2x256xf32> to vector<2x64xf32>
    %53 = math.tanh %52 : vector<2x64xf32>
    %54 = vector.extract_strided_slice %39 {offsets = [0, 192], sizes = [2, 64], strides = [1, 1]} : vector<2x256xf32> to vector<2x64xf32>
    %55 = arith.negf %54 : vector<2x64xf32>
    %56 = math.exp %55 : vector<2x64xf32>
    %cst_16 = arith.constant 1.000000e+00 : f32
    %57 = vector.broadcast %cst_16 : f32 to vector<2x64xf32>
    %58 = arith.addf %57, %56 : vector<2x64xf32>
    %59 = arith.divf %57, %58 : vector<2x64xf32>
    %60 = arith.mulf %51, %34 : vector<2x64xf32>
    %61 = arith.mulf %45, %53 : vector<2x64xf32>
    %62 = arith.addf %60, %61 : vector<2x64xf32>
    %63 = math.tanh %62 : vector<2x64xf32>
    %64 = arith.mulf %59, %63 : vector<2x64xf32>
    %65 = vector.extract_strided_slice %5 {offsets = [4, 0], sizes = [2, 256], strides = [1, 1]} : vector<16x256xf32> to vector<2x256xf32>
    %cst_17 = arith.constant dense<0.000000e+00> : vector<2x256xf32>
    %66 = tpu.matmul %64, %6, %cst_17 {dimension_numbers = #tpu.dot_dimension_numbers<[1], [0], [0], [1], [0, 0, 1, 1], [], []>} : vector<2x64xf32>, vector<64x256xf32>, vector<2x256xf32> -> vector<2x256xf32>
    %67 = arith.addf %65, %66 : vector<2x256xf32>
    %68 = vector.extract_strided_slice %67 {offsets = [0, 0], sizes = [2, 64], strides = [1, 1]} : vector<2x256xf32> to vector<2x64xf32>
    %69 = arith.negf %68 : vector<2x64xf32>
    %70 = math.exp %69 : vector<2x64xf32>
    %cst_18 = arith.constant 1.000000e+00 : f32
    %71 = vector.broadcast %cst_18 : f32 to vector<2x64xf32>
    %72 = arith.addf %71, %70 : vector<2x64xf32>
    %73 = arith.divf %71, %72 : vector<2x64xf32>
    %74 = vector.extract_strided_slice %67 {offsets = [0, 64], sizes = [2, 64], strides = [1, 1]} : vector<2x256xf32> to vector<2x64xf32>
    %75 = arith.negf %74 : vector<2x64xf32>
    %76 = math.exp %75 : vector<2x64xf32>
    %cst_19 = arith.constant 1.000000e+00 : f32
    %77 = vector.broadcast %cst_19 : f32 to vector<2x64xf32>
    %78 = arith.addf %77, %76 : vector<2x64xf32>
    %79 = arith.divf %77, %78 : vector<2x64xf32>
    %80 = vector.extract_strided_slice %67 {offsets = [0, 128], sizes = [2, 64], strides = [1, 1]} : vector<2x256xf32> to vector<2x64xf32>
    %81 = math.tanh %80 : vector<2x64xf32>
    %82 = vector.extract_strided_slice %67 {offsets = [0, 192], sizes = [2, 64], strides = [1, 1]} : vector<2x256xf32> to vector<2x64xf32>
    %83 = arith.negf %82 : vector<2x64xf32>
    %84 = math.exp %83 : vector<2x64xf32>
    %cst_20 = arith.constant 1.000000e+00 : f32
    %85 = vector.broadcast %cst_20 : f32 to vector<2x64xf32>
    %86 = arith.addf %85, %84 : vector<2x64xf32>
    %87 = arith.divf %85, %86 : vector<2x64xf32>
    %88 = arith.mulf %79, %62 : vector<2x64xf32>
    %89 = arith.mulf %73, %81 : vector<2x64xf32>
    %90 = arith.addf %88, %89 : vector<2x64xf32>
    %91 = math.tanh %90 : vector<2x64xf32>
    %92 = arith.mulf %87, %91 : vector<2x64xf32>
    %93 = vector.extract_strided_slice %5 {offsets = [6, 0], sizes = [2, 256], strides = [1, 1]} : vector<16x256xf32> to vector<2x256xf32>
    %cst_21 = arith.constant dense<0.000000e+00> : vector<2x256xf32>
    %94 = tpu.matmul %92, %6, %cst_21 {dimension_numbers = #tpu.dot_dimension_numbers<[1], [0], [0], [1], [0, 0, 1, 1], [], []>} : vector<2x64xf32>, vector<64x256xf32>, vector<2x256xf32> -> vector<2x256xf32>
    %95 = arith.addf %93, %94 : vector<2x256xf32>
    %96 = vector.extract_strided_slice %95 {offsets = [0, 0], sizes = [2, 64], strides = [1, 1]} : vector<2x256xf32> to vector<2x64xf32>
    %97 = arith.negf %96 : vector<2x64xf32>
    %98 = math.exp %97 : vector<2x64xf32>
    %cst_22 = arith.constant 1.000000e+00 : f32
    %99 = vector.broadcast %cst_22 : f32 to vector<2x64xf32>
    %100 = arith.addf %99, %98 : vector<2x64xf32>
    %101 = arith.divf %99, %100 : vector<2x64xf32>
    %102 = vector.extract_strided_slice %95 {offsets = [0, 64], sizes = [2, 64], strides = [1, 1]} : vector<2x256xf32> to vector<2x64xf32>
    %103 = arith.negf %102 : vector<2x64xf32>
    %104 = math.exp %103 : vector<2x64xf32>
    %cst_23 = arith.constant 1.000000e+00 : f32
    %105 = vector.broadcast %cst_23 : f32 to vector<2x64xf32>
    %106 = arith.addf %105, %104 : vector<2x64xf32>
    %107 = arith.divf %105, %106 : vector<2x64xf32>
    %108 = vector.extract_strided_slice %95 {offsets = [0, 128], sizes = [2, 64], strides = [1, 1]} : vector<2x256xf32> to vector<2x64xf32>
    %109 = math.tanh %108 : vector<2x64xf32>
    %110 = vector.extract_strided_slice %95 {offsets = [0, 192], sizes = [2, 64], strides = [1, 1]} : vector<2x256xf32> to vector<2x64xf32>
    %111 = arith.negf %110 : vector<2x64xf32>
    %112 = math.exp %111 : vector<2x64xf32>
    %cst_24 = arith.constant 1.000000e+00 : f32
    %113 = vector.broadcast %cst_24 : f32 to vector<2x64xf32>
    %114 = arith.addf %113, %112 : vector<2x64xf32>
    %115 = arith.divf %113, %114 : vector<2x64xf32>
    %116 = arith.mulf %107, %90 : vector<2x64xf32>
    %117 = arith.mulf %101, %109 : vector<2x64xf32>
    %118 = arith.addf %116, %117 : vector<2x64xf32>
    %119 = math.tanh %118 : vector<2x64xf32>
    %120 = arith.mulf %115, %119 : vector<2x64xf32>
    %121 = vector.extract_strided_slice %5 {offsets = [8, 0], sizes = [2, 256], strides = [1, 1]} : vector<16x256xf32> to vector<2x256xf32>
    %cst_25 = arith.constant dense<0.000000e+00> : vector<2x256xf32>
    %122 = tpu.matmul %120, %6, %cst_25 {dimension_numbers = #tpu.dot_dimension_numbers<[1], [0], [0], [1], [0, 0, 1, 1], [], []>} : vector<2x64xf32>, vector<64x256xf32>, vector<2x256xf32> -> vector<2x256xf32>
    %123 = arith.addf %121, %122 : vector<2x256xf32>
    %124 = vector.extract_strided_slice %123 {offsets = [0, 0], sizes = [2, 64], strides = [1, 1]} : vector<2x256xf32> to vector<2x64xf32>
    %125 = arith.negf %124 : vector<2x64xf32>
    %126 = math.exp %125 : vector<2x64xf32>
    %cst_26 = arith.constant 1.000000e+00 : f32
    %127 = vector.broadcast %cst_26 : f32 to vector<2x64xf32>
    %128 = arith.addf %127, %126 : vector<2x64xf32>
    %129 = arith.divf %127, %128 : vector<2x64xf32>
    %130 = vector.extract_strided_slice %123 {offsets = [0, 64], sizes = [2, 64], strides = [1, 1]} : vector<2x256xf32> to vector<2x64xf32>
    %131 = arith.negf %130 : vector<2x64xf32>
    %132 = math.exp %131 : vector<2x64xf32>
    %cst_27 = arith.constant 1.000000e+00 : f32
    %133 = vector.broadcast %cst_27 : f32 to vector<2x64xf32>
    %134 = arith.addf %133, %132 : vector<2x64xf32>
    %135 = arith.divf %133, %134 : vector<2x64xf32>
    %136 = vector.extract_strided_slice %123 {offsets = [0, 128], sizes = [2, 64], strides = [1, 1]} : vector<2x256xf32> to vector<2x64xf32>
    %137 = math.tanh %136 : vector<2x64xf32>
    %138 = vector.extract_strided_slice %123 {offsets = [0, 192], sizes = [2, 64], strides = [1, 1]} : vector<2x256xf32> to vector<2x64xf32>
    %139 = arith.negf %138 : vector<2x64xf32>
    %140 = math.exp %139 : vector<2x64xf32>
    %cst_28 = arith.constant 1.000000e+00 : f32
    %141 = vector.broadcast %cst_28 : f32 to vector<2x64xf32>
    %142 = arith.addf %141, %140 : vector<2x64xf32>
    %143 = arith.divf %141, %142 : vector<2x64xf32>
    %144 = arith.mulf %135, %118 : vector<2x64xf32>
    %145 = arith.mulf %129, %137 : vector<2x64xf32>
    %146 = arith.addf %144, %145 : vector<2x64xf32>
    %147 = math.tanh %146 : vector<2x64xf32>
    %148 = arith.mulf %143, %147 : vector<2x64xf32>
    %149 = vector.extract_strided_slice %5 {offsets = [10, 0], sizes = [2, 256], strides = [1, 1]} : vector<16x256xf32> to vector<2x256xf32>
    %cst_29 = arith.constant dense<0.000000e+00> : vector<2x256xf32>
    %150 = tpu.matmul %148, %6, %cst_29 {dimension_numbers = #tpu.dot_dimension_numbers<[1], [0], [0], [1], [0, 0, 1, 1], [], []>} : vector<2x64xf32>, vector<64x256xf32>, vector<2x256xf32> -> vector<2x256xf32>
    %151 = arith.addf %149, %150 : vector<2x256xf32>
    %152 = vector.extract_strided_slice %151 {offsets = [0, 0], sizes = [2, 64], strides = [1, 1]} : vector<2x256xf32> to vector<2x64xf32>
    %153 = arith.negf %152 : vector<2x64xf32>
    %154 = math.exp %153 : vector<2x64xf32>
    %cst_30 = arith.constant 1.000000e+00 : f32
    %155 = vector.broadcast %cst_30 : f32 to vector<2x64xf32>
    %156 = arith.addf %155, %154 : vector<2x64xf32>
    %157 = arith.divf %155, %156 : vector<2x64xf32>
    %158 = vector.extract_strided_slice %151 {offsets = [0, 64], sizes = [2, 64], strides = [1, 1]} : vector<2x256xf32> to vector<2x64xf32>
    %159 = arith.negf %158 : vector<2x64xf32>
    %160 = math.exp %159 : vector<2x64xf32>
    %cst_31 = arith.constant 1.000000e+00 : f32
    %161 = vector.broadcast %cst_31 : f32 to vector<2x64xf32>
    %162 = arith.addf %161, %160 : vector<2x64xf32>
    %163 = arith.divf %161, %162 : vector<2x64xf32>
    %164 = vector.extract_strided_slice %151 {offsets = [0, 128], sizes = [2, 64], strides = [1, 1]} : vector<2x256xf32> to vector<2x64xf32>
    %165 = math.tanh %164 : vector<2x64xf32>
    %166 = vector.extract_strided_slice %151 {offsets = [0, 192], sizes = [2, 64], strides = [1, 1]} : vector<2x256xf32> to vector<2x64xf32>
    %167 = arith.negf %166 : vector<2x64xf32>
    %168 = math.exp %167 : vector<2x64xf32>
    %cst_32 = arith.constant 1.000000e+00 : f32
    %169 = vector.broadcast %cst_32 : f32 to vector<2x64xf32>
    %170 = arith.addf %169, %168 : vector<2x64xf32>
    %171 = arith.divf %169, %170 : vector<2x64xf32>
    %172 = arith.mulf %163, %146 : vector<2x64xf32>
    %173 = arith.mulf %157, %165 : vector<2x64xf32>
    %174 = arith.addf %172, %173 : vector<2x64xf32>
    %175 = math.tanh %174 : vector<2x64xf32>
    %176 = arith.mulf %171, %175 : vector<2x64xf32>
    %177 = vector.extract_strided_slice %5 {offsets = [12, 0], sizes = [2, 256], strides = [1, 1]} : vector<16x256xf32> to vector<2x256xf32>
    %cst_33 = arith.constant dense<0.000000e+00> : vector<2x256xf32>
    %178 = tpu.matmul %176, %6, %cst_33 {dimension_numbers = #tpu.dot_dimension_numbers<[1], [0], [0], [1], [0, 0, 1, 1], [], []>} : vector<2x64xf32>, vector<64x256xf32>, vector<2x256xf32> -> vector<2x256xf32>
    %179 = arith.addf %177, %178 : vector<2x256xf32>
    %180 = vector.extract_strided_slice %179 {offsets = [0, 0], sizes = [2, 64], strides = [1, 1]} : vector<2x256xf32> to vector<2x64xf32>
    %181 = arith.negf %180 : vector<2x64xf32>
    %182 = math.exp %181 : vector<2x64xf32>
    %cst_34 = arith.constant 1.000000e+00 : f32
    %183 = vector.broadcast %cst_34 : f32 to vector<2x64xf32>
    %184 = arith.addf %183, %182 : vector<2x64xf32>
    %185 = arith.divf %183, %184 : vector<2x64xf32>
    %186 = vector.extract_strided_slice %179 {offsets = [0, 64], sizes = [2, 64], strides = [1, 1]} : vector<2x256xf32> to vector<2x64xf32>
    %187 = arith.negf %186 : vector<2x64xf32>
    %188 = math.exp %187 : vector<2x64xf32>
    %cst_35 = arith.constant 1.000000e+00 : f32
    %189 = vector.broadcast %cst_35 : f32 to vector<2x64xf32>
    %190 = arith.addf %189, %188 : vector<2x64xf32>
    %191 = arith.divf %189, %190 : vector<2x64xf32>
    %192 = vector.extract_strided_slice %179 {offsets = [0, 128], sizes = [2, 64], strides = [1, 1]} : vector<2x256xf32> to vector<2x64xf32>
    %193 = math.tanh %192 : vector<2x64xf32>
    %194 = vector.extract_strided_slice %179 {offsets = [0, 192], sizes = [2, 64], strides = [1, 1]} : vector<2x256xf32> to vector<2x64xf32>
    %195 = arith.negf %194 : vector<2x64xf32>
    %196 = math.exp %195 : vector<2x64xf32>
    %cst_36 = arith.constant 1.000000e+00 : f32
    %197 = vector.broadcast %cst_36 : f32 to vector<2x64xf32>
    %198 = arith.addf %197, %196 : vector<2x64xf32>
    %199 = arith.divf %197, %198 : vector<2x64xf32>
    %200 = arith.mulf %191, %174 : vector<2x64xf32>
    %201 = arith.mulf %185, %193 : vector<2x64xf32>
    %202 = arith.addf %200, %201 : vector<2x64xf32>
    %203 = math.tanh %202 : vector<2x64xf32>
    %204 = arith.mulf %199, %203 : vector<2x64xf32>
    %205 = vector.extract_strided_slice %5 {offsets = [14, 0], sizes = [2, 256], strides = [1, 1]} : vector<16x256xf32> to vector<2x256xf32>
    %cst_37 = arith.constant dense<0.000000e+00> : vector<2x256xf32>
    %206 = tpu.matmul %204, %6, %cst_37 {dimension_numbers = #tpu.dot_dimension_numbers<[1], [0], [0], [1], [0, 0, 1, 1], [], []>} : vector<2x64xf32>, vector<64x256xf32>, vector<2x256xf32> -> vector<2x256xf32>
    %207 = arith.addf %205, %206 : vector<2x256xf32>
    %208 = vector.extract_strided_slice %207 {offsets = [0, 0], sizes = [2, 64], strides = [1, 1]} : vector<2x256xf32> to vector<2x64xf32>
    %209 = arith.negf %208 : vector<2x64xf32>
    %210 = math.exp %209 : vector<2x64xf32>
    %cst_38 = arith.constant 1.000000e+00 : f32
    %211 = vector.broadcast %cst_38 : f32 to vector<2x64xf32>
    %212 = arith.addf %211, %210 : vector<2x64xf32>
    %213 = arith.divf %211, %212 : vector<2x64xf32>
    %214 = vector.extract_strided_slice %207 {offsets = [0, 64], sizes = [2, 64], strides = [1, 1]} : vector<2x256xf32> to vector<2x64xf32>
    %215 = arith.negf %214 : vector<2x64xf32>
    %216 = math.exp %215 : vector<2x64xf32>
    %cst_39 = arith.constant 1.000000e+00 : f32
    %217 = vector.broadcast %cst_39 : f32 to vector<2x64xf32>
    %218 = arith.addf %217, %216 : vector<2x64xf32>
    %219 = arith.divf %217, %218 : vector<2x64xf32>
    %220 = vector.extract_strided_slice %207 {offsets = [0, 128], sizes = [2, 64], strides = [1, 1]} : vector<2x256xf32> to vector<2x64xf32>
    %221 = math.tanh %220 : vector<2x64xf32>
    %222 = vector.extract_strided_slice %207 {offsets = [0, 192], sizes = [2, 64], strides = [1, 1]} : vector<2x256xf32> to vector<2x64xf32>
    %223 = arith.negf %222 : vector<2x64xf32>
    %224 = math.exp %223 : vector<2x64xf32>
    %cst_40 = arith.constant 1.000000e+00 : f32
    %225 = vector.broadcast %cst_40 : f32 to vector<2x64xf32>
    %226 = arith.addf %225, %224 : vector<2x64xf32>
    %227 = arith.divf %225, %226 : vector<2x64xf32>
    %228 = arith.mulf %219, %202 : vector<2x64xf32>
    %229 = arith.mulf %213, %221 : vector<2x64xf32>
    %230 = arith.addf %228, %229 : vector<2x64xf32>
    %231 = math.tanh %230 : vector<2x64xf32>
    %232 = arith.mulf %227, %231 : vector<2x64xf32>
    %c0_41 = arith.constant 0 : index
    %c0_42 = arith.constant 0 : index
    %233 = vector.load %arg6[%c0_41, %c0_42] : memref<64x128xf32, #tpu.memory_space<vmem>>, vector<64x128xf32>
    %cst_43 = arith.constant dense<0.000000e+00> : vector<2x128xf32>
    %234 = tpu.matmul %232, %233, %cst_43 {dimension_numbers = #tpu.dot_dimension_numbers<[1], [0], [0], [1], [0, 0, 1, 1], [], []>} : vector<2x64xf32>, vector<64x128xf32>, vector<2x128xf32> -> vector<2x128xf32>
    %c0_44 = arith.constant 0 : index
    %c0_45 = arith.constant 0 : index
    %235 = vector.load %arg7[%c0_44, %c0_45] : memref<1x128xf32, #tpu.memory_space<vmem>>, vector<1x128xf32>
    %236 = vector.broadcast %235 : vector<1x128xf32> to vector<2x128xf32>
    %237 = arith.addf %234, %236 : vector<2x128xf32>
    %c0_46 = arith.constant 0 : index
    %c0_47 = arith.constant 0 : index
    %238 = vector.load %arg2[%c0_46, %c0_47] : memref<32x8xf32, #tpu.memory_space<vmem>>, vector<32x8xf32>
    %239 = vector.extract_strided_slice %238 {offsets = [0, 0], sizes = [32, 1], strides = [1, 1]} : vector<32x8xf32> to vector<32x1xf32>
    %cst_48 = arith.constant 5.000000e-01 : f32
    %240 = vector.broadcast %cst_48 : f32 to vector<32x1xf32>
    %241 = arith.cmpf ogt, %239, %240 : vector<32x1xf32>
    %242 = vector.extract_strided_slice %238 {offsets = [0, 1], sizes = [32, 1], strides = [1, 1]} : vector<32x8xf32> to vector<32x1xf32>
    %cst_49 = arith.constant 5.000000e-01 : f32
    %243 = vector.broadcast %cst_49 : f32 to vector<32x1xf32>
    %244 = arith.cmpf ogt, %242, %243 : vector<32x1xf32>
    %245 = vector.extract_strided_slice %238 {offsets = [0, 2], sizes = [32, 1], strides = [1, 1]} : vector<32x8xf32> to vector<32x1xf32>
    %cst_50 = arith.constant 5.000000e-01 : f32
    %246 = vector.broadcast %cst_50 : f32 to vector<32x1xf32>
    %247 = arith.cmpf ogt, %245, %246 : vector<32x1xf32>
    %248 = vector.extract_strided_slice %238 {offsets = [0, 3], sizes = [32, 1], strides = [1, 1]} : vector<32x8xf32> to vector<32x1xf32>
    %cst_51 = arith.constant 5.000000e-01 : f32
    %249 = vector.broadcast %cst_51 : f32 to vector<32x1xf32>
    %250 = arith.cmpf ogt, %248, %249 : vector<32x1xf32>
    %251 = vector.extract_strided_slice %238 {offsets = [0, 4], sizes = [32, 1], strides = [1, 1]} : vector<32x8xf32> to vector<32x1xf32>
    %cst_52 = arith.constant 5.000000e-01 : f32
    %252 = vector.broadcast %cst_52 : f32 to vector<32x1xf32>
    %253 = arith.cmpf ogt, %251, %252 : vector<32x1xf32>
    %254 = vector.extract_strided_slice %238 {offsets = [0, 5], sizes = [32, 1], strides = [1, 1]} : vector<32x8xf32> to vector<32x1xf32>
    %cst_53 = arith.constant 5.000000e-01 : f32
    %255 = vector.broadcast %cst_53 : f32 to vector<32x1xf32>
    %256 = arith.cmpf ogt, %254, %255 : vector<32x1xf32>
    %257 = vector.extract_strided_slice %238 {offsets = [0, 6], sizes = [32, 1], strides = [1, 1]} : vector<32x8xf32> to vector<32x1xf32>
    %cst_54 = arith.constant 5.000000e-01 : f32
    %258 = vector.broadcast %cst_54 : f32 to vector<32x1xf32>
    %259 = arith.cmpf ogt, %257, %258 : vector<32x1xf32>
    %260 = vector.extract_strided_slice %238 {offsets = [0, 7], sizes = [32, 1], strides = [1, 1]} : vector<32x8xf32> to vector<32x1xf32>
    %cst_55 = arith.constant 5.000000e-01 : f32
    %261 = vector.broadcast %cst_55 : f32 to vector<32x1xf32>
    %262 = arith.cmpf ogt, %260, %261 : vector<32x1xf32>
    %c0_56 = arith.constant 0 : index
    %c0_57 = arith.constant 0 : index
    %263 = vector.load %arg1[%c0_56, %c0_57] : memref<32x5xf32, #tpu.memory_space<vmem>>, vector<32x5xf32>
    %c0_58 = arith.constant 0 : index
    %c0_59 = arith.constant 0 : index
    %264 = vector.load %arg8[%c0_58, %c0_59] : memref<5x64xf32, #tpu.memory_space<vmem>>, vector<5x64xf32>
    %cst_60 = arith.constant dense<0.000000e+00> : vector<32x64xf32>
    %265 = tpu.matmul %263, %264, %cst_60 {dimension_numbers = #tpu.dot_dimension_numbers<[1], [0], [0], [1], [0, 0, 1, 1], [], []>} : vector<32x5xf32>, vector<5x64xf32>, vector<32x64xf32> -> vector<32x64xf32>
    %c0_61 = arith.constant 0 : index
    %c0_62 = arith.constant 0 : index
    %266 = vector.load %arg9[%c0_61, %c0_62] : memref<1x64xf32, #tpu.memory_space<vmem>>, vector<1x64xf32>
    %267 = vector.broadcast %266 : vector<1x64xf32> to vector<32x64xf32>
    %268 = arith.addf %265, %267 : vector<32x64xf32>
    %cst_63 = arith.constant 0.000000e+00 : f32
    %269 = vector.broadcast %cst_63 : f32 to vector<32x64xf32>
    %270 = arith.maximumf %268, %269 : vector<32x64xf32>
    %cst_64 = arith.constant -1.000000e+30 : f32
    %271 = vector.shape_cast %241 : vector<32x1xi1> to vector<32x1xi1>
    %272 = vector.broadcast %271 : vector<32x1xi1> to vector<32x64xi1>
    %273 = vector.broadcast %cst_64 : f32 to vector<32x64xf32>
    %274 = arith.select %272, %270, %273 : vector<32x64xi1>, vector<32x64xf32>
    %cst_65 = arith.constant dense<0xFF800000> : vector<64xf32>
    %275 = vector.multi_reduction <maximumf>, %274, %cst_65 [0] : vector<32x64xf32> to vector<64xf32>
    %276 = vector.shape_cast %275 : vector<64xf32> to vector<1x64xf32>
    %cst_66 = arith.constant -1.000000e+30 : f32
    %277 = vector.shape_cast %244 : vector<32x1xi1> to vector<32x1xi1>
    %278 = vector.broadcast %277 : vector<32x1xi1> to vector<32x64xi1>
    %279 = vector.broadcast %cst_66 : f32 to vector<32x64xf32>
    %280 = arith.select %278, %270, %279 : vector<32x64xi1>, vector<32x64xf32>
    %cst_67 = arith.constant dense<0xFF800000> : vector<64xf32>
    %281 = vector.multi_reduction <maximumf>, %280, %cst_67 [0] : vector<32x64xf32> to vector<64xf32>
    %282 = vector.shape_cast %281 : vector<64xf32> to vector<1x64xf32>
    %cst_68 = arith.constant -1.000000e+30 : f32
    %283 = vector.shape_cast %247 : vector<32x1xi1> to vector<32x1xi1>
    %284 = vector.broadcast %283 : vector<32x1xi1> to vector<32x64xi1>
    %285 = vector.broadcast %cst_68 : f32 to vector<32x64xf32>
    %286 = arith.select %284, %270, %285 : vector<32x64xi1>, vector<32x64xf32>
    %cst_69 = arith.constant dense<0xFF800000> : vector<64xf32>
    %287 = vector.multi_reduction <maximumf>, %286, %cst_69 [0] : vector<32x64xf32> to vector<64xf32>
    %288 = vector.shape_cast %287 : vector<64xf32> to vector<1x64xf32>
    %cst_70 = arith.constant -1.000000e+30 : f32
    %289 = vector.shape_cast %250 : vector<32x1xi1> to vector<32x1xi1>
    %290 = vector.broadcast %289 : vector<32x1xi1> to vector<32x64xi1>
    %291 = vector.broadcast %cst_70 : f32 to vector<32x64xf32>
    %292 = arith.select %290, %270, %291 : vector<32x64xi1>, vector<32x64xf32>
    %cst_71 = arith.constant dense<0xFF800000> : vector<64xf32>
    %293 = vector.multi_reduction <maximumf>, %292, %cst_71 [0] : vector<32x64xf32> to vector<64xf32>
    %294 = vector.shape_cast %293 : vector<64xf32> to vector<1x64xf32>
    %cst_72 = arith.constant -1.000000e+30 : f32
    %295 = vector.shape_cast %253 : vector<32x1xi1> to vector<32x1xi1>
    %296 = vector.broadcast %295 : vector<32x1xi1> to vector<32x64xi1>
    %297 = vector.broadcast %cst_72 : f32 to vector<32x64xf32>
    %298 = arith.select %296, %270, %297 : vector<32x64xi1>, vector<32x64xf32>
    %cst_73 = arith.constant dense<0xFF800000> : vector<64xf32>
    %299 = vector.multi_reduction <maximumf>, %298, %cst_73 [0] : vector<32x64xf32> to vector<64xf32>
    %300 = vector.shape_cast %299 : vector<64xf32> to vector<1x64xf32>
    %cst_74 = arith.constant -1.000000e+30 : f32
    %301 = vector.shape_cast %256 : vector<32x1xi1> to vector<32x1xi1>
    %302 = vector.broadcast %301 : vector<32x1xi1> to vector<32x64xi1>
    %303 = vector.broadcast %cst_74 : f32 to vector<32x64xf32>
    %304 = arith.select %302, %270, %303 : vector<32x64xi1>, vector<32x64xf32>
    %cst_75 = arith.constant dense<0xFF800000> : vector<64xf32>
    %305 = vector.multi_reduction <maximumf>, %304, %cst_75 [0] : vector<32x64xf32> to vector<64xf32>
    %306 = vector.shape_cast %305 : vector<64xf32> to vector<1x64xf32>
    %cst_76 = arith.constant -1.000000e+30 : f32
    %307 = vector.shape_cast %259 : vector<32x1xi1> to vector<32x1xi1>
    %308 = vector.broadcast %307 : vector<32x1xi1> to vector<32x64xi1>
    %309 = vector.broadcast %cst_76 : f32 to vector<32x64xf32>
    %310 = arith.select %308, %270, %309 : vector<32x64xi1>, vector<32x64xf32>
    %cst_77 = arith.constant dense<0xFF800000> : vector<64xf32>
    %311 = vector.multi_reduction <maximumf>, %310, %cst_77 [0] : vector<32x64xf32> to vector<64xf32>
    %312 = vector.shape_cast %311 : vector<64xf32> to vector<1x64xf32>
    %cst_78 = arith.constant -1.000000e+30 : f32
    %313 = vector.shape_cast %262 : vector<32x1xi1> to vector<32x1xi1>
    %314 = vector.broadcast %313 : vector<32x1xi1> to vector<32x64xi1>
    %315 = vector.broadcast %cst_78 : f32 to vector<32x64xf32>
    %316 = arith.select %314, %270, %315 : vector<32x64xi1>, vector<32x64xf32>
    %cst_79 = arith.constant dense<0xFF800000> : vector<64xf32>
    %317 = vector.multi_reduction <maximumf>, %316, %cst_79 [0] : vector<32x64xf32> to vector<64xf32>
    %318 = vector.shape_cast %317 : vector<64xf32> to vector<1x64xf32>
    %319 = tpu.concatenate %276, %282, %288, %294, %300, %306, %312, %318 in 0 : vector<1x64xf32>, vector<1x64xf32>, vector<1x64xf32>, vector<1x64xf32>, vector<1x64xf32>, vector<1x64xf32>, vector<1x64xf32>, vector<1x64xf32> -> vector<8x64xf32>
    %cst_80 = arith.constant dense<0.000000e+00> : vector<32x64xf32>
    %320 = tpu.matmul %238, %319, %cst_80 {dimension_numbers = #tpu.dot_dimension_numbers<[1], [0], [0], [1], [0, 0, 1, 1], [], []>} : vector<32x8xf32>, vector<8x64xf32>, vector<32x64xf32> -> vector<32x64xf32>
    %c0_81 = arith.constant 0 : index
    %c0_82 = arith.constant 0 : index
    %321 = vector.load %arg10[%c0_81, %c0_82] : memref<128x64xf32, #tpu.memory_space<vmem>>, vector<128x64xf32>
    %322 = vector.extract_strided_slice %321 {offsets = [0, 0], sizes = [64, 64], strides = [1, 1]} : vector<128x64xf32> to vector<64x64xf32>
    %cst_83 = arith.constant dense<0.000000e+00> : vector<32x64xf32>
    %323 = tpu.matmul %270, %322, %cst_83 {dimension_numbers = #tpu.dot_dimension_numbers<[1], [0], [0], [1], [0, 0, 1, 1], [], []>} : vector<32x64xf32>, vector<64x64xf32>, vector<32x64xf32> -> vector<32x64xf32>
    %324 = vector.extract_strided_slice %321 {offsets = [64, 0], sizes = [64, 64], strides = [1, 1]} : vector<128x64xf32> to vector<64x64xf32>
    %cst_84 = arith.constant dense<0.000000e+00> : vector<32x64xf32>
    %325 = tpu.matmul %320, %324, %cst_84 {dimension_numbers = #tpu.dot_dimension_numbers<[1], [0], [0], [1], [0, 0, 1, 1], [], []>} : vector<32x64xf32>, vector<64x64xf32>, vector<32x64xf32> -> vector<32x64xf32>
    %326 = arith.addf %323, %325 : vector<32x64xf32>
    %c0_85 = arith.constant 0 : index
    %c0_86 = arith.constant 0 : index
    %327 = vector.load %arg11[%c0_85, %c0_86] : memref<1x64xf32, #tpu.memory_space<vmem>>, vector<1x64xf32>
    %328 = vector.broadcast %327 : vector<1x64xf32> to vector<32x64xf32>
    %329 = arith.addf %326, %328 : vector<32x64xf32>
    %cst_87 = arith.constant 0.000000e+00 : f32
    %330 = vector.broadcast %cst_87 : f32 to vector<32x64xf32>
    %331 = arith.maximumf %329, %330 : vector<32x64xf32>
    %cst_88 = arith.constant -1.000000e+30 : f32
    %332 = vector.shape_cast %241 : vector<32x1xi1> to vector<32x1xi1>
    %333 = vector.broadcast %332 : vector<32x1xi1> to vector<32x64xi1>
    %334 = vector.broadcast %cst_88 : f32 to vector<32x64xf32>
    %335 = arith.select %333, %331, %334 : vector<32x64xi1>, vector<32x64xf32>
    %cst_89 = arith.constant dense<0xFF800000> : vector<64xf32>
    %336 = vector.multi_reduction <maximumf>, %335, %cst_89 [0] : vector<32x64xf32> to vector<64xf32>
    %337 = vector.shape_cast %336 : vector<64xf32> to vector<1x64xf32>
    %cst_90 = arith.constant -1.000000e+30 : f32
    %338 = vector.shape_cast %244 : vector<32x1xi1> to vector<32x1xi1>
    %339 = vector.broadcast %338 : vector<32x1xi1> to vector<32x64xi1>
    %340 = vector.broadcast %cst_90 : f32 to vector<32x64xf32>
    %341 = arith.select %339, %331, %340 : vector<32x64xi1>, vector<32x64xf32>
    %cst_91 = arith.constant dense<0xFF800000> : vector<64xf32>
    %342 = vector.multi_reduction <maximumf>, %341, %cst_91 [0] : vector<32x64xf32> to vector<64xf32>
    %343 = vector.shape_cast %342 : vector<64xf32> to vector<1x64xf32>
    %cst_92 = arith.constant -1.000000e+30 : f32
    %344 = vector.shape_cast %247 : vector<32x1xi1> to vector<32x1xi1>
    %345 = vector.broadcast %344 : vector<32x1xi1> to vector<32x64xi1>
    %346 = vector.broadcast %cst_92 : f32 to vector<32x64xf32>
    %347 = arith.select %345, %331, %346 : vector<32x64xi1>, vector<32x64xf32>
    %cst_93 = arith.constant dense<0xFF800000> : vector<64xf32>
    %348 = vector.multi_reduction <maximumf>, %347, %cst_93 [0] : vector<32x64xf32> to vector<64xf32>
    %349 = vector.shape_cast %348 : vector<64xf32> to vector<1x64xf32>
    %cst_94 = arith.constant -1.000000e+30 : f32
    %350 = vector.shape_cast %250 : vector<32x1xi1> to vector<32x1xi1>
    %351 = vector.broadcast %350 : vector<32x1xi1> to vector<32x64xi1>
    %352 = vector.broadcast %cst_94 : f32 to vector<32x64xf32>
    %353 = arith.select %351, %331, %352 : vector<32x64xi1>, vector<32x64xf32>
    %cst_95 = arith.constant dense<0xFF800000> : vector<64xf32>
    %354 = vector.multi_reduction <maximumf>, %353, %cst_95 [0] : vector<32x64xf32> to vector<64xf32>
    %355 = vector.shape_cast %354 : vector<64xf32> to vector<1x64xf32>
    %cst_96 = arith.constant -1.000000e+30 : f32
    %356 = vector.shape_cast %253 : vector<32x1xi1> to vector<32x1xi1>
    %357 = vector.broadcast %356 : vector<32x1xi1> to vector<32x64xi1>
    %358 = vector.broadcast %cst_96 : f32 to vector<32x64xf32>
    %359 = arith.select %357, %331, %358 : vector<32x64xi1>, vector<32x64xf32>
    %cst_97 = arith.constant dense<0xFF800000> : vector<64xf32>
    %360 = vector.multi_reduction <maximumf>, %359, %cst_97 [0] : vector<32x64xf32> to vector<64xf32>
    %361 = vector.shape_cast %360 : vector<64xf32> to vector<1x64xf32>
    %cst_98 = arith.constant -1.000000e+30 : f32
    %362 = vector.shape_cast %256 : vector<32x1xi1> to vector<32x1xi1>
    %363 = vector.broadcast %362 : vector<32x1xi1> to vector<32x64xi1>
    %364 = vector.broadcast %cst_98 : f32 to vector<32x64xf32>
    %365 = arith.select %363, %331, %364 : vector<32x64xi1>, vector<32x64xf32>
    %cst_99 = arith.constant dense<0xFF800000> : vector<64xf32>
    %366 = vector.multi_reduction <maximumf>, %365, %cst_99 [0] : vector<32x64xf32> to vector<64xf32>
    %367 = vector.shape_cast %366 : vector<64xf32> to vector<1x64xf32>
    %cst_100 = arith.constant -1.000000e+30 : f32
    %368 = vector.shape_cast %259 : vector<32x1xi1> to vector<32x1xi1>
    %369 = vector.broadcast %368 : vector<32x1xi1> to vector<32x64xi1>
    %370 = vector.broadcast %cst_100 : f32 to vector<32x64xf32>
    %371 = arith.select %369, %331, %370 : vector<32x64xi1>, vector<32x64xf32>
    %cst_101 = arith.constant dense<0xFF800000> : vector<64xf32>
    %372 = vector.multi_reduction <maximumf>, %371, %cst_101 [0] : vector<32x64xf32> to vector<64xf32>
    %373 = vector.shape_cast %372 : vector<64xf32> to vector<1x64xf32>
    %cst_102 = arith.constant -1.000000e+30 : f32
    %374 = vector.shape_cast %262 : vector<32x1xi1> to vector<32x1xi1>
    %375 = vector.broadcast %374 : vector<32x1xi1> to vector<32x64xi1>
    %376 = vector.broadcast %cst_102 : f32 to vector<32x64xf32>
    %377 = arith.select %375, %331, %376 : vector<32x64xi1>, vector<32x64xf32>
    %cst_103 = arith.constant dense<0xFF800000> : vector<64xf32>
    %378 = vector.multi_reduction <maximumf>, %377, %cst_103 [0] : vector<32x64xf32> to vector<64xf32>
    %379 = vector.shape_cast %378 : vector<64xf32> to vector<1x64xf32>
    %380 = tpu.concatenate %337, %343, %349, %355, %361, %367, %373, %379 in 0 : vector<1x64xf32>, vector<1x64xf32>, vector<1x64xf32>, vector<1x64xf32>, vector<1x64xf32>, vector<1x64xf32>, vector<1x64xf32>, vector<1x64xf32> -> vector<8x64xf32>
    %cst_104 = arith.constant dense<0.000000e+00> : vector<32x64xf32>
    %381 = tpu.matmul %238, %380, %cst_104 {dimension_numbers = #tpu.dot_dimension_numbers<[1], [0], [0], [1], [0, 0, 1, 1], [], []>} : vector<32x8xf32>, vector<8x64xf32>, vector<32x64xf32> -> vector<32x64xf32>
    %c0_105 = arith.constant 0 : index
    %c0_106 = arith.constant 0 : index
    %382 = vector.load %arg12[%c0_105, %c0_106] : memref<128x64xf32, #tpu.memory_space<vmem>>, vector<128x64xf32>
    %383 = vector.extract_strided_slice %382 {offsets = [0, 0], sizes = [64, 64], strides = [1, 1]} : vector<128x64xf32> to vector<64x64xf32>
    %cst_107 = arith.constant dense<0.000000e+00> : vector<32x64xf32>
    %384 = tpu.matmul %331, %383, %cst_107 {dimension_numbers = #tpu.dot_dimension_numbers<[1], [0], [0], [1], [0, 0, 1, 1], [], []>} : vector<32x64xf32>, vector<64x64xf32>, vector<32x64xf32> -> vector<32x64xf32>
    %385 = vector.extract_strided_slice %382 {offsets = [64, 0], sizes = [64, 64], strides = [1, 1]} : vector<128x64xf32> to vector<64x64xf32>
    %cst_108 = arith.constant dense<0.000000e+00> : vector<32x64xf32>
    %386 = tpu.matmul %381, %385, %cst_108 {dimension_numbers = #tpu.dot_dimension_numbers<[1], [0], [0], [1], [0, 0, 1, 1], [], []>} : vector<32x64xf32>, vector<64x64xf32>, vector<32x64xf32> -> vector<32x64xf32>
    %387 = arith.addf %384, %386 : vector<32x64xf32>
    %c0_109 = arith.constant 0 : index
    %c0_110 = arith.constant 0 : index
    %388 = vector.load %arg13[%c0_109, %c0_110] : memref<1x64xf32, #tpu.memory_space<vmem>>, vector<1x64xf32>
    %389 = vector.broadcast %388 : vector<1x64xf32> to vector<32x64xf32>
    %390 = arith.addf %387, %389 : vector<32x64xf32>
    %cst_111 = arith.constant 0.000000e+00 : f32
    %391 = vector.broadcast %cst_111 : f32 to vector<32x64xf32>
    %392 = arith.maximumf %390, %391 : vector<32x64xf32>
    %cst_112 = arith.constant -1.000000e+30 : f32
    %393 = vector.shape_cast %241 : vector<32x1xi1> to vector<32x1xi1>
    %394 = vector.broadcast %393 : vector<32x1xi1> to vector<32x64xi1>
    %395 = vector.broadcast %cst_112 : f32 to vector<32x64xf32>
    %396 = arith.select %394, %392, %395 : vector<32x64xi1>, vector<32x64xf32>
    %cst_113 = arith.constant dense<0xFF800000> : vector<64xf32>
    %397 = vector.multi_reduction <maximumf>, %396, %cst_113 [0] : vector<32x64xf32> to vector<64xf32>
    %398 = vector.shape_cast %397 : vector<64xf32> to vector<1x64xf32>
    %cst_114 = arith.constant -1.000000e+30 : f32
    %399 = vector.shape_cast %244 : vector<32x1xi1> to vector<32x1xi1>
    %400 = vector.broadcast %399 : vector<32x1xi1> to vector<32x64xi1>
    %401 = vector.broadcast %cst_114 : f32 to vector<32x64xf32>
    %402 = arith.select %400, %392, %401 : vector<32x64xi1>, vector<32x64xf32>
    %cst_115 = arith.constant dense<0xFF800000> : vector<64xf32>
    %403 = vector.multi_reduction <maximumf>, %402, %cst_115 [0] : vector<32x64xf32> to vector<64xf32>
    %404 = vector.shape_cast %403 : vector<64xf32> to vector<1x64xf32>
    %cst_116 = arith.constant -1.000000e+30 : f32
    %405 = vector.shape_cast %247 : vector<32x1xi1> to vector<32x1xi1>
    %406 = vector.broadcast %405 : vector<32x1xi1> to vector<32x64xi1>
    %407 = vector.broadcast %cst_116 : f32 to vector<32x64xf32>
    %408 = arith.select %406, %392, %407 : vector<32x64xi1>, vector<32x64xf32>
    %cst_117 = arith.constant dense<0xFF800000> : vector<64xf32>
    %409 = vector.multi_reduction <maximumf>, %408, %cst_117 [0] : vector<32x64xf32> to vector<64xf32>
    %410 = vector.shape_cast %409 : vector<64xf32> to vector<1x64xf32>
    %cst_118 = arith.constant -1.000000e+30 : f32
    %411 = vector.shape_cast %250 : vector<32x1xi1> to vector<32x1xi1>
    %412 = vector.broadcast %411 : vector<32x1xi1> to vector<32x64xi1>
    %413 = vector.broadcast %cst_118 : f32 to vector<32x64xf32>
    %414 = arith.select %412, %392, %413 : vector<32x64xi1>, vector<32x64xf32>
    %cst_119 = arith.constant dense<0xFF800000> : vector<64xf32>
    %415 = vector.multi_reduction <maximumf>, %414, %cst_119 [0] : vector<32x64xf32> to vector<64xf32>
    %416 = vector.shape_cast %415 : vector<64xf32> to vector<1x64xf32>
    %cst_120 = arith.constant -1.000000e+30 : f32
    %417 = vector.shape_cast %253 : vector<32x1xi1> to vector<32x1xi1>
    %418 = vector.broadcast %417 : vector<32x1xi1> to vector<32x64xi1>
    %419 = vector.broadcast %cst_120 : f32 to vector<32x64xf32>
    %420 = arith.select %418, %392, %419 : vector<32x64xi1>, vector<32x64xf32>
    %cst_121 = arith.constant dense<0xFF800000> : vector<64xf32>
    %421 = vector.multi_reduction <maximumf>, %420, %cst_121 [0] : vector<32x64xf32> to vector<64xf32>
    %422 = vector.shape_cast %421 : vector<64xf32> to vector<1x64xf32>
    %cst_122 = arith.constant -1.000000e+30 : f32
    %423 = vector.shape_cast %256 : vector<32x1xi1> to vector<32x1xi1>
    %424 = vector.broadcast %423 : vector<32x1xi1> to vector<32x64xi1>
    %425 = vector.broadcast %cst_122 : f32 to vector<32x64xf32>
    %426 = arith.select %424, %392, %425 : vector<32x64xi1>, vector<32x64xf32>
    %cst_123 = arith.constant dense<0xFF800000> : vector<64xf32>
    %427 = vector.multi_reduction <maximumf>, %426, %cst_123 [0] : vector<32x64xf32> to vector<64xf32>
    %428 = vector.shape_cast %427 : vector<64xf32> to vector<1x64xf32>
    %cst_124 = arith.constant -1.000000e+30 : f32
    %429 = vector.shape_cast %259 : vector<32x1xi1> to vector<32x1xi1>
    %430 = vector.broadcast %429 : vector<32x1xi1> to vector<32x64xi1>
    %431 = vector.broadcast %cst_124 : f32 to vector<32x64xf32>
    %432 = arith.select %430, %392, %431 : vector<32x64xi1>, vector<32x64xf32>
    %cst_125 = arith.constant dense<0xFF800000> : vector<64xf32>
    %433 = vector.multi_reduction <maximumf>, %432, %cst_125 [0] : vector<32x64xf32> to vector<64xf32>
    %434 = vector.shape_cast %433 : vector<64xf32> to vector<1x64xf32>
    %cst_126 = arith.constant -1.000000e+30 : f32
    %435 = vector.shape_cast %262 : vector<32x1xi1> to vector<32x1xi1>
    %436 = vector.broadcast %435 : vector<32x1xi1> to vector<32x64xi1>
    %437 = vector.broadcast %cst_126 : f32 to vector<32x64xf32>
    %438 = arith.select %436, %392, %437 : vector<32x64xi1>, vector<32x64xf32>
    %cst_127 = arith.constant dense<0xFF800000> : vector<64xf32>
    %439 = vector.multi_reduction <maximumf>, %438, %cst_127 [0] : vector<32x64xf32> to vector<64xf32>
    %440 = vector.shape_cast %439 : vector<64xf32> to vector<1x64xf32>
    %441 = tpu.concatenate %398, %404, %410, %416, %422, %428, %434, %440 in 0 : vector<1x64xf32>, vector<1x64xf32>, vector<1x64xf32>, vector<1x64xf32>, vector<1x64xf32>, vector<1x64xf32>, vector<1x64xf32>, vector<1x64xf32> -> vector<8x64xf32>
    %c0_128 = arith.constant 0 : index
    %c0_129 = arith.constant 0 : index
    %442 = vector.load %arg14[%c0_128, %c0_129] : memref<128x64xf32, #tpu.memory_space<vmem>>, vector<128x64xf32>
    %c0_130 = arith.constant 0 : index
    %c0_131 = arith.constant 0 : index
    %443 = vector.load %arg16[%c0_130, %c0_131] : memref<128x64xf32, #tpu.memory_space<vmem>>, vector<128x64xf32>
    %c0_132 = arith.constant 0 : index
    %c0_133 = arith.constant 0 : index
    %444 = vector.load %arg18[%c0_132, %c0_133] : memref<128x64xf32, #tpu.memory_space<vmem>>, vector<128x64xf32>
    %c0_134 = arith.constant 0 : index
    %c0_135 = arith.constant 0 : index
    %445 = vector.load %arg15[%c0_134, %c0_135] : memref<1x64xf32, #tpu.memory_space<vmem>>, vector<1x64xf32>
    %c0_136 = arith.constant 0 : index
    %c0_137 = arith.constant 0 : index
    %446 = vector.load %arg17[%c0_136, %c0_137] : memref<1x64xf32, #tpu.memory_space<vmem>>, vector<1x64xf32>
    %c0_138 = arith.constant 0 : index
    %c0_139 = arith.constant 0 : index
    %447 = vector.load %arg19[%c0_138, %c0_139] : memref<1x64xf32, #tpu.memory_space<vmem>>, vector<1x64xf32>
    %cst_140 = arith.constant dense<0.000000e+00> : vector<2x64xf32>
    %448 = tpu.matmul %237, %442, %cst_140 {dimension_numbers = #tpu.dot_dimension_numbers<[1], [0], [0], [1], [0, 0, 1, 1], [], []>} : vector<2x128xf32>, vector<128x64xf32>, vector<2x64xf32> -> vector<2x64xf32>
    %449 = vector.broadcast %445 : vector<1x64xf32> to vector<2x64xf32>
    %450 = arith.addf %448, %449 : vector<2x64xf32>
    %cst_141 = arith.constant dense<0.000000e+00> : vector<2x64xf32>
    %451 = tpu.matmul %237, %443, %cst_141 {dimension_numbers = #tpu.dot_dimension_numbers<[1], [0], [0], [1], [0, 0, 1, 1], [], []>} : vector<2x128xf32>, vector<128x64xf32>, vector<2x64xf32> -> vector<2x64xf32>
    %452 = vector.broadcast %446 : vector<1x64xf32> to vector<2x64xf32>
    %453 = arith.addf %451, %452 : vector<2x64xf32>
    %cst_142 = arith.constant dense<0.000000e+00> : vector<2x64xf32>
    %454 = tpu.matmul %237, %444, %cst_142 {dimension_numbers = #tpu.dot_dimension_numbers<[1], [0], [0], [1], [0, 0, 1, 1], [], []>} : vector<2x128xf32>, vector<128x64xf32>, vector<2x64xf32> -> vector<2x64xf32>
    %455 = vector.broadcast %447 : vector<1x64xf32> to vector<2x64xf32>
    %456 = arith.addf %454, %455 : vector<2x64xf32>
    %457 = vector.extract_strided_slice %443 {offsets = [0, 0], sizes = [64, 64], strides = [1, 1]} : vector<128x64xf32> to vector<64x64xf32>
    %458 = vector.extract_strided_slice %443 {offsets = [64, 0], sizes = [64, 64], strides = [1, 1]} : vector<128x64xf32> to vector<64x64xf32>
    %459 = arith.addf %457, %458 : vector<64x64xf32>
    %cst_143 = arith.constant dense<0.000000e+00> : vector<8x64xf32>
    %460 = tpu.matmul %441, %459, %cst_143 {dimension_numbers = #tpu.dot_dimension_numbers<[1], [0], [0], [1], [0, 0, 1, 1], [], []>} : vector<8x64xf32>, vector<64x64xf32>, vector<8x64xf32> -> vector<8x64xf32>
    %461 = vector.broadcast %446 : vector<1x64xf32> to vector<8x64xf32>
    %462 = arith.addf %460, %461 : vector<8x64xf32>
    %463 = vector.extract_strided_slice %444 {offsets = [0, 0], sizes = [64, 64], strides = [1, 1]} : vector<128x64xf32> to vector<64x64xf32>
    %464 = vector.extract_strided_slice %444 {offsets = [64, 0], sizes = [64, 64], strides = [1, 1]} : vector<128x64xf32> to vector<64x64xf32>
    %465 = arith.addf %463, %464 : vector<64x64xf32>
    %cst_144 = arith.constant dense<0.000000e+00> : vector<8x64xf32>
    %466 = tpu.matmul %441, %465, %cst_144 {dimension_numbers = #tpu.dot_dimension_numbers<[1], [0], [0], [1], [0, 0, 1, 1], [], []>} : vector<8x64xf32>, vector<64x64xf32>, vector<8x64xf32> -> vector<8x64xf32>
    %467 = vector.broadcast %447 : vector<1x64xf32> to vector<8x64xf32>
    %468 = arith.addf %466, %467 : vector<8x64xf32>
    %469 = vector.extract_strided_slice %453 {offsets = [0, 0], sizes = [1, 64], strides = [1, 1]} : vector<2x64xf32> to vector<1x64xf32>
    %470 = vector.extract_strided_slice %462 {offsets = [0, 0], sizes = [4, 64], strides = [1, 1]} : vector<8x64xf32> to vector<4x64xf32>
    %471 = tpu.concatenate %469, %470 in 0 : vector<1x64xf32>, vector<4x64xf32> -> vector<5x64xf32>
    %472 = vector.extract_strided_slice %456 {offsets = [0, 0], sizes = [1, 64], strides = [1, 1]} : vector<2x64xf32> to vector<1x64xf32>
    %473 = vector.extract_strided_slice %468 {offsets = [0, 0], sizes = [4, 64], strides = [1, 1]} : vector<8x64xf32> to vector<4x64xf32>
    %474 = tpu.concatenate %472, %473 in 0 : vector<1x64xf32>, vector<4x64xf32> -> vector<5x64xf32>
    %475 = vector.extract_strided_slice %450 {offsets = [0, 0], sizes = [1, 64], strides = [1, 1]} : vector<2x64xf32> to vector<1x64xf32>
    %476 = tpu.transpose %471, [1, 0] : vector<5x64xf32> -> vector<64x5xf32>
    %cst_145 = arith.constant dense<0.000000e+00> : vector<1x5xf32>
    %477 = tpu.matmul %475, %476, %cst_145 {dimension_numbers = #tpu.dot_dimension_numbers<[1], [0], [0], [1], [0, 0, 1, 1], [], []>} : vector<1x64xf32>, vector<64x5xf32>, vector<1x5xf32> -> vector<1x5xf32>
    %cst_146 = arith.constant dense<0xFF800000> : vector<1xf32>
    %478 = vector.multi_reduction <maximumf>, %477, %cst_146 [1] : vector<1x5xf32> to vector<1xf32>
    %479 = vector.shape_cast %478 : vector<1xf32> to vector<1x1xf32>
    %480 = vector.broadcast %479 : vector<1x1xf32> to vector<1x5xf32>
    %481 = arith.subf %477, %480 : vector<1x5xf32>
    %482 = math.exp %481 : vector<1x5xf32>
    %cst_147 = arith.constant dense<0.000000e+00> : vector<1xf32>
    %483 = vector.multi_reduction <add>, %482, %cst_147 [1] : vector<1x5xf32> to vector<1xf32>
    %484 = vector.shape_cast %483 : vector<1xf32> to vector<1x1xf32>
    %485 = tpu.reciprocal %484 {approx = true} : vector<1x1xf32> -> vector<1x1xf32>
    %486 = vector.broadcast %485 : vector<1x1xf32> to vector<1x5xf32>
    %487 = arith.mulf %482, %486 : vector<1x5xf32>
    %cst_148 = arith.constant dense<0.000000e+00> : vector<1x64xf32>
    %488 = tpu.matmul %487, %474, %cst_148 {dimension_numbers = #tpu.dot_dimension_numbers<[1], [0], [0], [1], [0, 0, 1, 1], [], []>} : vector<1x5xf32>, vector<5x64xf32>, vector<1x64xf32> -> vector<1x64xf32>
    %489 = vector.extract_strided_slice %453 {offsets = [1, 0], sizes = [1, 64], strides = [1, 1]} : vector<2x64xf32> to vector<1x64xf32>
    %490 = vector.extract_strided_slice %462 {offsets = [4, 0], sizes = [4, 64], strides = [1, 1]} : vector<8x64xf32> to vector<4x64xf32>
    %491 = tpu.concatenate %489, %490 in 0 : vector<1x64xf32>, vector<4x64xf32> -> vector<5x64xf32>
    %492 = vector.extract_strided_slice %456 {offsets = [1, 0], sizes = [1, 64], strides = [1, 1]} : vector<2x64xf32> to vector<1x64xf32>
    %493 = vector.extract_strided_slice %468 {offsets = [4, 0], sizes = [4, 64], strides = [1, 1]} : vector<8x64xf32> to vector<4x64xf32>
    %494 = tpu.concatenate %492, %493 in 0 : vector<1x64xf32>, vector<4x64xf32> -> vector<5x64xf32>
    %495 = vector.extract_strided_slice %450 {offsets = [1, 0], sizes = [1, 64], strides = [1, 1]} : vector<2x64xf32> to vector<1x64xf32>
    %496 = tpu.transpose %491, [1, 0] : vector<5x64xf32> -> vector<64x5xf32>
    %cst_149 = arith.constant dense<0.000000e+00> : vector<1x5xf32>
    %497 = tpu.matmul %495, %496, %cst_149 {dimension_numbers = #tpu.dot_dimension_numbers<[1], [0], [0], [1], [0, 0, 1, 1], [], []>} : vector<1x64xf32>, vector<64x5xf32>, vector<1x5xf32> -> vector<1x5xf32>
    %cst_150 = arith.constant dense<0xFF800000> : vector<1xf32>
    %498 = vector.multi_reduction <maximumf>, %497, %cst_150 [1] : vector<1x5xf32> to vector<1xf32>
    %499 = vector.shape_cast %498 : vector<1xf32> to vector<1x1xf32>
    %500 = vector.broadcast %499 : vector<1x1xf32> to vector<1x5xf32>
    %501 = arith.subf %497, %500 : vector<1x5xf32>
    %502 = math.exp %501 : vector<1x5xf32>
    %cst_151 = arith.constant dense<0.000000e+00> : vector<1xf32>
    %503 = vector.multi_reduction <add>, %502, %cst_151 [1] : vector<1x5xf32> to vector<1xf32>
    %504 = vector.shape_cast %503 : vector<1xf32> to vector<1x1xf32>
    %505 = tpu.reciprocal %504 {approx = true} : vector<1x1xf32> -> vector<1x1xf32>
    %506 = vector.broadcast %505 : vector<1x1xf32> to vector<1x5xf32>
    %507 = arith.mulf %502, %506 : vector<1x5xf32>
    %cst_152 = arith.constant dense<0.000000e+00> : vector<1x64xf32>
    %508 = tpu.matmul %507, %494, %cst_152 {dimension_numbers = #tpu.dot_dimension_numbers<[1], [0], [0], [1], [0, 0, 1, 1], [], []>} : vector<1x5xf32>, vector<5x64xf32>, vector<1x64xf32> -> vector<1x64xf32>
    %509 = tpu.concatenate %488, %508 in 0 : vector<1x64xf32>, vector<1x64xf32> -> vector<2x64xf32>
    %c0_153 = arith.constant 0 : index
    %c0_154 = arith.constant 0 : index
    %510 = vector.load %arg20[%c0_153, %c0_154] : memref<64x64xf32, #tpu.memory_space<vmem>>, vector<64x64xf32>
    %cst_155 = arith.constant dense<0.000000e+00> : vector<2x64xf32>
    %511 = tpu.matmul %509, %510, %cst_155 {dimension_numbers = #tpu.dot_dimension_numbers<[1], [0], [0], [1], [0, 0, 1, 1], [], []>} : vector<2x64xf32>, vector<64x64xf32>, vector<2x64xf32> -> vector<2x64xf32>
    %c0_156 = arith.constant 0 : index
    %c0_157 = arith.constant 0 : index
    %512 = vector.load %arg21[%c0_156, %c0_157] : memref<1x64xf32, #tpu.memory_space<vmem>>, vector<1x64xf32>
    %513 = vector.broadcast %512 : vector<1x64xf32> to vector<2x64xf32>
    %514 = arith.addf %511, %513 : vector<2x64xf32>
    %cst_158 = arith.constant 0.000000e+00 : f32
    %515 = vector.broadcast %cst_158 : f32 to vector<2x64xf32>
    %516 = arith.maximumf %514, %515 : vector<2x64xf32>
    %c0_159 = arith.constant 0 : index
    %c0_160 = arith.constant 0 : index
    %517 = vector.load %arg22[%c0_159, %c0_160] : memref<64x128xf32, #tpu.memory_space<vmem>>, vector<64x128xf32>
    %cst_161 = arith.constant dense<0.000000e+00> : vector<2x128xf32>
    %518 = tpu.matmul %516, %517, %cst_161 {dimension_numbers = #tpu.dot_dimension_numbers<[1], [0], [0], [1], [0, 0, 1, 1], [], []>} : vector<2x64xf32>, vector<64x128xf32>, vector<2x128xf32> -> vector<2x128xf32>
    %c0_162 = arith.constant 0 : index
    %c0_163 = arith.constant 0 : index
    %519 = vector.load %arg23[%c0_162, %c0_163] : memref<1x128xf32, #tpu.memory_space<vmem>>, vector<1x128xf32>
    %520 = vector.broadcast %519 : vector<1x128xf32> to vector<2x128xf32>
    %521 = arith.addf %518, %520 : vector<2x128xf32>
    %c0_164 = arith.constant 0 : index
    %c0_165 = arith.constant 0 : index
    %522 = vector.load %arg24[%c0_164, %c0_165] : memref<2x128xf32, #tpu.memory_space<vmem>>, vector<2x128xf32>
    tpu.vector_store %arg24[%c0_164, %c0_165], %521 {strides = array<i32>} : memref<2x128xf32, #tpu.memory_space<vmem>>, vector<2x128xf32>,
    return
  }
}

</mosaic_0001>

<llo_original>
// kernel: eq.1
$region0: #{eq.1}
  %s0 = inlined_call_operand.vmem [shape: s32[2,16], index: 0, kind: input, shape index: {}]
  %s1 = inlined_call_operand.vmem [shape: s32[32], index: 1, kind: output, shape index: {}]
  $region1: #{eq.1} parent=0
    #allocation0 [shape = 'u8[4096]{0}', space=vmem, size = 0x1000, scoped, tag = 'scoped mem for output reshape']
    #allocation1 [shape = 'u8[4096]{0}', space=vmem, size = 0x1000, scoped, tag = 'scoped mem for input reshape']
    %s3 = sshll.u32 1, 2
    %s4 = ssub.s32 %s3, 1
    %v5 = vld [vmem:[%s0] sm:%s4]
    %6 = vst [vmem:[#allocation1] sm:%s4] %v5
    %v7 = vld [vmem:[#allocation1] sm:$0x1]
    %vm8 = vcmask 130048
    %9 = vst.msk [vmem:[#allocation0] sm:$0x1] %vm8, %v7
    %s10 = scalar_lea.vmem [#allocation1], 1
    %v11 = vld [vmem:[%s10] sm:$0x1]
    %12 = vrot.lane.b32.xlu0 %v11, 16
    %v13 = vpop.permute.xlu0 %12
    %vm14 = vcmask 261248
    %15 = vst.msk [vmem:[#allocation0] sm:$0x1] %vm14, %v13
    %s17 = sshll.u32 1, 1
    %s18 = ssub.s32 %s17, 1
    %v20 = vld [vmem:[#allocation0] sm:%s18]
    %s21 = sshll.u32 1, 1
    %s22 = ssub.s32 %s21, 1
    %23 = vst [vmem:[%s1] sm:%s22] %v20

// kernel: vector_lstm_forward.1
$region0: #{vector_lstm_forward.1}
  #allocation0 [shape = 'u32[]', space=smem, size = 0x4, offset = 0x4, fixed_abs, tag = 'smem constant byte address 0x4 - core index']
  #allocation1 [shape = 'u32[144,128]{1,0:T(1,128)}', space=vmem, size = 0x12000, scoped, tag = 'internal scratch']
  %s0 = inlined_call_operand.vmem [shape: f32[16,4], index: 0, kind: input, shape index: {}]
  %s1 = inlined_call_operand.vmem [shape: f32[32,5], index: 1, kind: input, shape index: {}]
  %s2 = inlined_call_operand.vmem [shape: f32[32,8], index: 2, kind: input, shape index: {}]
  %s3 = inlined_call_operand.hbm [shape: f32[4,256], index: 3, kind: input, shape index: {}]
  %s4 = inlined_call_operand.hbm [shape: f32[64,256], index: 4, kind: input, shape index: {}]
  %s5 = inlined_call_operand.vmem [shape: f32[1,256], index: 5, kind: input, shape index: {}]
  %s6 = inlined_call_operand.hbm [shape: f32[64,128], index: 6, kind: input, shape index: {}]
  %s7 = inlined_call_operand.hbm [shape: f32[1,128], index: 7, kind: input, shape index: {}]
  %s8 = inlined_call_operand.vmem [shape: f32[5,64], index: 8, kind: input, shape index: {}]
  %s9 = inlined_call_operand.hbm [shape: f32[1,64], index: 9, kind: input, shape index: {}]
  %s10 = inlined_call_operand.hbm [shape: f32[128,64], index: 10, kind: input, shape index: {}]
  %s11 = inlined_call_operand.vmem [shape: f32[1,64], index: 11, kind: input, shape index: {}]
  %s12 = inlined_call_operand.hbm [shape: f32[128,64], index: 12, kind: input, shape index: {}]
  %s13 = inlined_call_operand.vmem [shape: f32[1,64], index: 13, kind: input, shape index: {}]
  %s14 = inlined_call_operand.vmem [shape: f32[128,64], index: 14, kind: input, shape index: {}]
  %s15 = inlined_call_operand.vmem [shape: f32[1,64], index: 15, kind: input, shape index: {}]
  %s16 = inlined_call_operand.vmem [shape: f32[128,64], index: 16, kind: input, shape index: {}]
  %s17 = inlined_call_operand.vmem [shape: f32[1,64], index: 17, kind: input, shape index: {}]
  %s18 = inlined_call_operand.vmem [shape: f32[128,64], index: 18, kind: input, shape index: {}]
  %s19 = inlined_call_operand.vmem [shape: f32[1,64], index: 19, kind: input, shape index: {}]
  %s20 = inlined_call_operand.hbm [shape: f32[64,64], index: 20, kind: input, shape index: {}]
  %s21 = inlined_call_operand.vmem [shape: f32[1,64], index: 21, kind: input, shape index: {}]
  %s22 = inlined_call_operand.vmem [shape: f32[64,128], index: 22, kind: input, shape index: {}]
  %s23 = inlined_call_operand.vmem [shape: f32[1,128], index: 23, kind: input, shape index: {}]
  %s24 = inlined_call_operand.vmem [shape: f32[2,128], index: 24, kind: output, shape index: {}]
  %s25 = sld [smem:[#allocation0]]
  $region138: #{vector_lstm_forward.1} parent=0
    _
  %s27 = ssub.s32 1, %s25
  %s28 = scalar_select 0, %s27, %s25
  $region1: #{vector_lstm_forward.1} parent=0
    #allocation2 [shape = 'u8[4096]{0}', space=vmem, size = 0x1000, scoped, tag = 'input window, operand 3, single buffered']
    #allocation3 [shape = 's32[1]{0}', space=sflag, size = 0x4, scoped, tag = 'scoped memory for vector_lstm_forward.1']
    #allocation4 [shape = 'u8[65536]{0}', space=vmem, size = 0x10000, scoped, tag = 'input window, operand 4, single buffered']
    #allocation5 [shape = 's32[1]{0}', space=sflag, size = 0x4, scoped, tag = 'scoped memory for vector_lstm_forward.1']
    #allocation6 [shape = 'u8[32768]{0}', space=vmem, size = 0x8000, scoped, tag = 'input window, operand 6, single buffered']
    #allocation7 [shape = 'u8[512]{0}', space=vmem, size = 0x400, scoped, tag = 'input window, operand 7, single buffered']
    #allocation8 [shape = 's32[1]{0}', space=sflag, size = 0x4, scoped, tag = 'scoped memory for vector_lstm_forward.1']
    #allocation9 [shape = 'u8[512]{0}', space=vmem, size = 0x400, scoped, tag = 'input window, operand 9, single buffered']
    #allocation10 [shape = 'u8[65536]{0}', space=vmem, size = 0x10000, scoped, tag = 'input window, operand 10, single buffered']
    #allocation11 [shape = 's32[1]{0}', space=sflag, size = 0x4, scoped, tag = 'scoped memory for vector_lstm_forward.1']
    #allocation12 [shape = 'u8[65536]{0}', space=vmem, size = 0x10000, scoped, tag = 'input window, operand 12, single buffered']
    #allocation13 [shape = 'u8[32768]{0}', space=vmem, size = 0x8000, scoped, tag = 'input window, operand 20, single buffered']
    #allocation14 [shape = 's32[1]{0}', space=sflag, size = 0x4, scoped, tag = 'scoped memory for vector_lstm_forward.1']
    %29 = vsyncpa [#allocation3], 0
    %30 = vsyncpa [#allocation5], 0
    %31 = vsyncpa [#allocation8], 0
    %32 = vsyncpa [#allocation11], 0
    %33 = vsyncpa [#allocation14], 0
    // Predicated region
    $region2: #{vector_lstm_forward.1} parent=1 // pred_check
      _
    $region3: #{vector_lstm_forward.1} parent=1 // pred_check_branch
      %35 = sbr.rel (0) target = $region5
    $region4: #{vector_lstm_forward.1} parent=1 // pred_region
      _
    $region5: #{vector_lstm_forward.1} parent=1 // pred_fallthru
      _
    // Predicated region
    $region6: #{vector_lstm_forward.1} parent=1 // pred_check
      _
    $region7: #{vector_lstm_forward.1} parent=1 // pred_check_branch
      %37 = sbr.rel (0) target = $region9
    $region8: #{vector_lstm_forward.1} parent=1 // pred_region
      _
    $region9: #{vector_lstm_forward.1} parent=1 // pred_fallthru
      _
    // Predicated region
    $region10: #{vector_lstm_forward.1} parent=1 // pred_check
      _
    $region11: #{vector_lstm_forward.1} parent=1 // pred_check_branch
      %39 = sbr.rel (0) target = $region13
    $region12: #{vector_lstm_forward.1} parent=1 // pred_region
      _
    $region13: #{vector_lstm_forward.1} parent=1 // pred_fallthru
      _
    // Predicated region
    $region14: #{vector_lstm_forward.1} parent=1 // pred_check
      _
    $region15: #{vector_lstm_forward.1} parent=1 // pred_check_branch
      %41 = sbr.rel (0) target = $region17
    $region16: #{vector_lstm_forward.1} parent=1 // pred_region
      %s43 = ssub.s32 128, 128
      %44 = vsyncadd [#allocation3], %s43
      %s46 = sshll.u32 [#allocation2], 4
      %s47 = int_to_ptr.vmem [resolvable:$true] %s46
      %49 = dma.hbm_to_vmem [thread:$0]  %s3, 128, %s47, [#allocation3]
    $region17: #{vector_lstm_forward.1} parent=1 // pred_fallthru
      _
    // Predicated region
    $region18: #{vector_lstm_forward.1} parent=1 // pred_check
      _
    $region19: #{vector_lstm_forward.1} parent=1 // pred_check_branch
      %51 = sbr.rel (0) target = $region21
    $region20: #{vector_lstm_forward.1} parent=1 // pred_region
      %s53 = ssub.s32 2048, 2048
      %54 = vsyncadd [#allocation5], %s53
      %s55 = sshll.u32 [#allocation4], 4
      %s56 = int_to_ptr.vmem [resolvable:$true] %s55
      %61 = dma.hbm_to_vmem [thread:$0]  %s4, 2048, %s56, [#allocation5], 256, 256, 16
    $region21: #{vector_lstm_forward.1} parent=1 // pred_fallthru
      _
    // Predicated region
    $region22: #{vector_lstm_forward.1} parent=1 // pred_check
      _
    $region23: #{vector_lstm_forward.1} parent=1 // pred_check_branch
      %63 = sbr.rel (0) target = $region25
    $region24: #{vector_lstm_forward.1} parent=1 // pred_region
      _
    $region25: #{vector_lstm_forward.1} parent=1 // pred_fallthru
      _
    // Predicated region
    $region26: #{vector_lstm_forward.1} parent=1 // pred_check
      _
    $region27: #{vector_lstm_forward.1} parent=1 // pred_check_branch
      %65 = sbr.rel (0) target = $region29
    $region28: #{vector_lstm_forward.1} parent=1 // pred_region
      %s67 = ssub.s32 1024, 1024
      %68 = vsyncadd [#allocation5], %s67
      %s69 = sshll.u32 [#allocation6], 4
      %s70 = int_to_ptr.vmem [resolvable:$true] %s69
      %75 = dma.hbm_to_vmem [thread:$0]  %s6, 1024, %s70, [#allocation5], 128, 128, 8
    $region29: #{vector_lstm_forward.1} parent=1 // pred_fallthru
      _
    // Predicated region
    $region30: #{vector_lstm_forward.1} parent=1 // pred_check
      _
    $region31: #{vector_lstm_forward.1} parent=1 // pred_check_branch
      %77 = sbr.rel (0) target = $region33
    $region32: #{vector_lstm_forward.1} parent=1 // pred_region
      %s79 = ssub.s32 16, 16
      %80 = vsyncadd [#allocation8], %s79
      %s82 = sshll.u32 [#allocation7], 4
      %s83 = int_to_ptr.vmem [resolvable:$true] %s82
      %85 = dma.hbm_to_vmem [thread:$0]  %s7, 16, %s83, [#allocation8]
    $region33: #{vector_lstm_forward.1} parent=1 // pred_fallthru
      _
    // Predicated region
    $region34: #{vector_lstm_forward.1} parent=1 // pred_check
      _
    $region35: #{vector_lstm_forward.1} parent=1 // pred_check_branch
      %87 = sbr.rel (0) target = $region37
    $region36: #{vector_lstm_forward.1} parent=1 // pred_region
      _
    $region37: #{vector_lstm_forward.1} parent=1 // pred_fallthru
      _
    // Predicated region
    $region38: #{vector_lstm_forward.1} parent=1 // pred_check
      _
    $region39: #{vector_lstm_forward.1} parent=1 // pred_check_branch
      %89 = sbr.rel (0) target = $region41
    $region40: #{vector_lstm_forward.1} parent=1 // pred_region
      %s91 = ssub.s32 16, 16
      %92 = vsyncadd [#allocation8], %s91
      %s94 = sshll.u32 [#allocation9], 4
      %s95 = int_to_ptr.vmem [resolvable:$true] %s94
      %97 = dma.hbm_to_vmem [thread:$0]  %s9, 16, %s95, [#allocation8]
    $region41: #{vector_lstm_forward.1} parent=1 // pred_fallthru
      _
    // Predicated region
    $region42: #{vector_lstm_forward.1} parent=1 // pred_check
      _
    $region43: #{vector_lstm_forward.1} parent=1 // pred_check_branch
      %99 = sbr.rel (0) target = $region45
    $region44: #{vector_lstm_forward.1} parent=1 // pred_region
      %s101 = ssub.s32 2048, 2048
      %102 = vsyncadd [#allocation11], %s101
      %s103 = sshll.u32 [#allocation10], 4
      %s104 = int_to_ptr.vmem [resolvable:$true] %s103
      %109 = dma.hbm_to_vmem [thread:$0]  %s10, 2048, %s104, [#allocation11], 128, 128, 8
    $region45: #{vector_lstm_forward.1} parent=1 // pred_fallthru
      _
    // Predicated region
    $region46: #{vector_lstm_forward.1} parent=1 // pred_check
      _
    $region47: #{vector_lstm_forward.1} parent=1 // pred_check_branch
      %111 = sbr.rel (0) target = $region49
    $region48: #{vector_lstm_forward.1} parent=1 // pred_region
      _
    $region49: #{vector_lstm_forward.1} parent=1 // pred_fallthru
      _
    // Predicated region
    $region50: #{vector_lstm_forward.1} parent=1 // pred_check
      _
    $region51: #{vector_lstm_forward.1} parent=1 // pred_check_branch
      %113 = sbr.rel (0) target = $region53
    $region52: #{vector_lstm_forward.1} parent=1 // pred_region
      %s115 = ssub.s32 2048, 2048
      %116 = vsyncadd [#allocation11], %s115
      %s117 = sshll.u32 [#allocation12], 4
      %s118 = int_to_ptr.vmem [resolvable:$true] %s117
      %123 = dma.hbm_to_vmem [thread:$0]  %s12, 2048, %s118, [#allocation11], 128, 128, 8
    $region53: #{vector_lstm_forward.1} parent=1 // pred_fallthru
      _
    // Predicated region
    $region54: #{vector_lstm_forward.1} parent=1 // pred_check
      _
    $region55: #{vector_lstm_forward.1} parent=1 // pred_check_branch
      %125 = sbr.rel (0) target = $region57
    $region56: #{vector_lstm_forward.1} parent=1 // pred_region
      _
    $region57: #{vector_lstm_forward.1} parent=1 // pred_fallthru
      _
    // Predicated region
    $region58: #{vector_lstm_forward.1} parent=1 // pred_check
      _
    $region59: #{vector_lstm_forward.1} parent=1 // pred_check_branch
      %127 = sbr.rel (0) target = $region61
    $region60: #{vector_lstm_forward.1} parent=1 // pred_region
      _
    $region61: #{vector_lstm_forward.1} parent=1 // pred_fallthru
      _
    // Predicated region
    $region62: #{vector_lstm_forward.1} parent=1 // pred_check
      _
    $region63: #{vector_lstm_forward.1} parent=1 // pred_check_branch
      %129 = sbr.rel (0) target = $region65
    $region64: #{vector_lstm_forward.1} parent=1 // pred_region
      _
    $region65: #{vector_lstm_forward.1} parent=1 // pred_fallthru
      _
    // Predicated region
    $region66: #{vector_lstm_forward.1} parent=1 // pred_check
      _
    $region67: #{vector_lstm_forward.1} parent=1 // pred_check_branch
      %131 = sbr.rel (0) target = $region69
    $region68: #{vector_lstm_forward.1} parent=1 // pred_region
      _
    $region69: #{vector_lstm_forward.1} parent=1 // pred_fallthru
      _
    // Predicated region
    $region70: #{vector_lstm_forward.1} parent=1 // pred_check
      _
    $region71: #{vector_lstm_forward.1} parent=1 // pred_check_branch
      %133 = sbr.rel (0) target = $region73
    $region72: #{vector_lstm_forward.1} parent=1 // pred_region
      _
    $region73: #{vector_lstm_forward.1} parent=1 // pred_fallthru
      _
    // Predicated region
    $region74: #{vector_lstm_forward.1} parent=1 // pred_check
      _
    $region75: #{vector_lstm_forward.1} parent=1 // pred_check_branch
      %135 = sbr.rel (0) target = $region77
    $region76: #{vector_lstm_forward.1} parent=1 // pred_region
      _
    $region77: #{vector_lstm_forward.1} parent=1 // pred_fallthru
      _
    // Predicated region
    $region78: #{vector_lstm_forward.1} parent=1 // pred_check
      _
    $region79: #{vector_lstm_forward.1} parent=1 // pred_check_branch
      %137 = sbr.rel (0) target = $region81
    $region80: #{vector_lstm_forward.1} parent=1 // pred_region
      _
    $region81: #{vector_lstm_forward.1} parent=1 // pred_fallthru
      _
    // Predicated region
    $region82: #{vector_lstm_forward.1} parent=1 // pred_check
      _
    $region83: #{vector_lstm_forward.1} parent=1 // pred_check_branch
      %139 = sbr.rel (0) target = $region85
    $region84: #{vector_lstm_forward.1} parent=1 // pred_region
      %s141 = ssub.s32 1024, 1024
      %142 = vsyncadd [#allocation14], %s141
      %s143 = sshll.u32 [#allocation13], 4
      %s144 = int_to_ptr.vmem [resolvable:$true] %s143
      %149 = dma.hbm_to_vmem [thread:$0]  %s20, 1024, %s144, [#allocation14], 128, 128, 8
    $region85: #{vector_lstm_forward.1} parent=1 // pred_fallthru
      _
    // Predicated region
    $region86: #{vector_lstm_forward.1} parent=1 // pred_check
      _
    $region87: #{vector_lstm_forward.1} parent=1 // pred_check_branch
      %151 = sbr.rel (0) target = $region89
    $region88: #{vector_lstm_forward.1} parent=1 // pred_region
      _
    $region89: #{vector_lstm_forward.1} parent=1 // pred_fallthru
      _
    // Predicated region
    $region90: #{vector_lstm_forward.1} parent=1 // pred_check
      _
    $region91: #{vector_lstm_forward.1} parent=1 // pred_check_branch
      %153 = sbr.rel (0) target = $region93
    $region92: #{vector_lstm_forward.1} parent=1 // pred_region
      _
    $region93: #{vector_lstm_forward.1} parent=1 // pred_fallthru
      _
    // Predicated region
    $region94: #{vector_lstm_forward.1} parent=1 // pred_check
      _
    $region95: #{vector_lstm_forward.1} parent=1 // pred_check_branch
      %155 = sbr.rel (0) target = $region97
    $region96: #{vector_lstm_forward.1} parent=1 // pred_region
      _
    $region97: #{vector_lstm_forward.1} parent=1 // pred_fallthru
      _
    // Predicated region
    $region98: #{vector_lstm_forward.1} parent=1 // pred_check
      _
    $region99: #{vector_lstm_forward.1} parent=1 // pred_check_branch
      %157 = sbr.rel (0) target = $region101
    $region100: #{vector_lstm_forward.1} parent=1 // pred_region
      %158 = dma.done [#allocation3], 128
    $region101: #{vector_lstm_forward.1} parent=1 // pred_fallthru
      _
    // Predicated region
    $region102: #{vector_lstm_forward.1} parent=1 // pred_check
      _
    $region103: #{vector_lstm_forward.1} parent=1 // pred_check_branch
      %160 = sbr.rel (0) target = $region105
    $region104: #{vector_lstm_forward.1} parent=1 // pred_region
      %161 = dma.done [#allocation5], 2048
    $region105: #{vector_lstm_forward.1} parent=1 // pred_fallthru
      _
    // Predicated region
    $region106: #{vector_lstm_forward.1} parent=1 // pred_check
      _
    $region107: #{vector_lstm_forward.1} parent=1 // pred_check_branch
      %163 = sbr.rel (0) target = $region109
    $region108: #{vector_lstm_forward.1} parent=1 // pred_region
      %164 = dma.done [#allocation5], 1024
    $region109: #{vector_lstm_forward.1} parent=1 // pred_fallthru
      _
    // Predicated region
    $region110: #{vector_lstm_forward.1} parent=1 // pred_check
      _
    $region111: #{vector_lstm_forward.1} parent=1 // pred_check_branch
      %166 = sbr.rel (0) target = $region113
    $region112: #{vector_lstm_forward.1} parent=1 // pred_region
      %167 = dma.done [#allocation8], 16
    $region113: #{vector_lstm_forward.1} parent=1 // pred_fallthru
      _
    // Predicated region
    $region114: #{vector_lstm_forward.1} parent=1 // pred_check
      _
    $region115: #{vector_lstm_forward.1} parent=1 // pred_check_branch
      %169 = sbr.rel (0) target = $region117
    $region116: #{vector_lstm_forward.1} parent=1 // pred_region
      %170 = dma.done [#allocation8], 16
    $region117: #{vector_lstm_forward.1} parent=1 // pred_fallthru
      _
    // Predicated region
    $region118: #{vector_lstm_forward.1} parent=1 // pred_check
      _
    $region119: #{vector_lstm_forward.1} parent=1 // pred_check_branch
      %172 = sbr.rel (0) target = $region121
    $region120: #{vector_lstm_forward.1} parent=1 // pred_region
      %173 = dma.done [#allocation11], 2048
    $region121: #{vector_lstm_forward.1} parent=1 // pred_fallthru
      _
    // Predicated region
    $region122: #{vector_lstm_forward.1} parent=1 // pred_check
      _
    $region123: #{vector_lstm_forward.1} parent=1 // pred_check_branch
      %175 = sbr.rel (0) target = $region125
    $region124: #{vector_lstm_forward.1} parent=1 // pred_region
      %176 = dma.done [#allocation11], 2048
    $region125: #{vector_lstm_forward.1} parent=1 // pred_fallthru
      _
    // Predicated region
    $region126: #{vector_lstm_forward.1} parent=1 // pred_check
      _
    $region127: #{vector_lstm_forward.1} parent=1 // pred_check_branch
      %178 = sbr.rel (0) target = $region129
    $region128: #{vector_lstm_forward.1} parent=1 // pred_region
      %179 = dma.done [#allocation14], 1024
    $region129: #{vector_lstm_forward.1} parent=1 // pred_fallthru
      _
    %v180 = vld [vmem:[%s0] sm:$0xff]
    %v181 = vld [vmem:[%s0 + $0x8] sm:$0xff]
    %v182 = vld [vmem:[#allocation2] sm:$0xff]
    %v183 = vld [vmem:[%s5] sm:$0x3]
    %v185 = vlaneseq
    %v186 = vshrl.u32 %v185, 7
    %v187 = vsub.s32 0, %v186
    %v188 = vrot.slane %v183, %v187
    %v189 = vlaneseq
    %v190 = vshrl.u32 %v189, 7
    %v191 = vsub.s32 1, %v190
    %v192 = vrot.slane %v183, %v191
    %v196 = vcombine.high %v182, %v182
    %vm197 = vcmask 31744
    %v199 = vsel %vm197, %v180, 0
    %v202 = vsel %vm197, %v181, 0
    %vm204 = vcmask 1043456
    %v205 = vsel %vm204, %v182, 0
    %v207 = vsel %vm204, %v196, 0
    %209 = vmatprep.subr.mxu0 0.0
    %210 = vmatpush1.msra.mxu0 0.0
    %211 = vmatprep.subr.mxu0 0.0
    %212 = vmatpush1.msra.mxu0 0.0
    %213 = vmatprep.subr.mxu0 0.0
    %214 = vmatpush1.msra.mxu0 0.0
    %215 = vmatprep.subr.mxu0 0.0
    %216 = vmatpush1.msra.mxu0 0.0
    %217 = vmatprep.subr.mxu0 0.0
    %218 = vmatpush1.msra.mxu0 0.0
    %219 = vmatprep.subr.mxu0 0.0
    %220 = vmatpush1.msra.mxu0 0.0
    %221 = vmatprep.subr.mxu0 0.0
    %222 = vmatpush1.msra.mxu0 0.0
    %223 = vmatprep.subr.mxu0 0.0
    %224 = vmatpush1.msra.mxu0 0.0
    %225 = vmatprep.subr.mxu0 0.0
    %226 = vmatpush1.msra.mxu0 0.0
    %227 = vmatprep.subr.mxu0 0.0
    %228 = vmatpush1.msra.mxu0 0.0
    %229 = vmatprep.subr.mxu0 0.0
    %230 = vmatpush1.msra.mxu0 0.0
    %231 = vmatprep.subr.mxu0 0.0
    %232 = vmatpush1.msra.mxu0 0.0
    %233 = vmatprep.subr.mxu0 0.0
    %234 = vmatpush1.msra.mxu0 0.0
    %235 = vmatprep.subr.mxu0 0.0
    %236 = vmatpush1.msra.mxu0 0.0
    %237 = vmatprep.subr.mxu0 0.0
    %238 = vmatpush1.msra.mxu0 0.0
    %239 = vmatprep.subr.mxu0 %v207
    %240 = vmatpush1.msra.mxu0 %v205
    %241 = vmatprep.subr.mxu0 0.0
    %242 = vmatpush2.msra.mxu0 0.0
    %243 = vmatprep.subr.mxu0 0.0
    %244 = vmatpush2.msra.mxu0 0.0
    %245 = vmatprep.subr.mxu0 0.0
    %246 = vmatpush2.msra.mxu0 0.0
    %247 = vmatprep.subr.mxu0 0.0
    %248 = vmatpush2.msra.mxu0 0.0
    %249 = vmatprep.subr.mxu0 0.0
    %250 = vmatpush2.msra.mxu0 0.0
    %251 = vmatprep.subr.mxu0 0.0
    %252 = vmatpush2.msra.mxu0 0.0
    %253 = vmatprep.subr.mxu0 0.0
    %254 = vmatpush2.msra.mxu0 0.0
    %255 = vmatprep.subr.mxu0 0.0
    %256 = vmatpush2.msra.mxu0 0.0
    %257 = vmatprep.subr.mxu0 0.0
    %258 = vmatpush2.msra.mxu0 0.0
    %259 = vmatprep.subr.mxu0 0.0
    %260 = vmatpush2.msra.mxu0 0.0
    %261 = vmatprep.subr.mxu0 0.0
    %262 = vmatpush2.msra.mxu0 0.0
    %263 = vmatprep.subr.mxu0 0.0
    %264 = vmatpush2.msra.mxu0 0.0
    %265 = vmatprep.subr.mxu0 0.0
    %266 = vmatpush2.msra.mxu0 0.0
    %267 = vmatprep.subr.mxu0 0.0
    %268 = vmatpush2.msra.mxu0 0.0
    %269 = vmatprep.subr.mxu0 0.0
    %270 = vmatpush2.msra.mxu0 0.0
    %271 = vmatprep.subr.mxu0 0.0
    %272 = vmatpush2.msra.mxu0 0.0
    %273 = vmatprep.mubr.f32.mxu0 0.0
    %274 = vmatmul.mubr.f32.gmra.mxu0 %v199
    %v275 = vpop.f32.mrf.mxu0
    %v276 = vadd.f32 %v188, %v275
    %v277 = vpop.f32.mrf.mxu0
    %v278 = vadd.f32 %v192, %v277
    %279 = vmatprep.mubr.f32.mxu0 0.0
    %280 = vmatmul.mubr.f32.gmra.mxu0 %v202
    %v281 = vpop.f32.mrf.mxu0
    %v282 = vadd.f32 %v188, %v281
    %v283 = vpop.f32.mrf.mxu0
    %v284 = vadd.f32 %v192, %v283
    %285 = vdwg.mxu0
    %v286 = vld [vmem:[#allocation4] sm:$0xff]
    %v287 = vld [vmem:[#allocation4 + $0x8] sm:$0xff]
    %v288 = vld [vmem:[#allocation4 + $0x10] sm:$0xff]
    %v289 = vld [vmem:[#allocation4 + $0x18] sm:$0xff]
    %v290 = vld [vmem:[#allocation4 + $0x20] sm:$0xff]
    %v291 = vld [vmem:[#allocation4 + $0x28] sm:$0xff]
    %v292 = vld [vmem:[#allocation4 + $0x30] sm:$0xff]
    %v293 = vld [vmem:[#allocation4 + $0x38] sm:$0xff]
    %v294 = vld [vmem:[#allocation4 + $0x40] sm:$0xff]
    %v295 = vld [vmem:[#allocation4 + $0x48] sm:$0xff]
    %v296 = vld [vmem:[#allocation4 + $0x50] sm:$0xff]
    %v297 = vld [vmem:[#allocation4 + $0x58] sm:$0xff]
    %v298 = vld [vmem:[#allocation4 + $0x60] sm:$0xff]
    %v299 = vld [vmem:[#allocation4 + $0x68] sm:$0xff]
    %v300 = vld [vmem:[#allocation4 + $0x70] sm:$0xff]
    %v301 = vld [vmem:[#allocation4 + $0x78] sm:$0xff]
    %vm302 = vcmask 523264
    %v304 = vsel %vm302, 0.0, 0
    %306 = vmatprep.subr.mxu0 0.0
    %307 = vmatpush1.msra.mxu0 0.0
    %308 = vmatprep.subr.mxu0 0.0
    %309 = vmatpush1.msra.mxu0 0.0
    %310 = vmatprep.subr.mxu0 0.0
    %311 = vmatpush1.msra.mxu0 0.0
    %312 = vmatprep.subr.mxu0 0.0
    %313 = vmatpush1.msra.mxu0 0.0
    %314 = vmatprep.subr.mxu0 0.0
    %315 = vmatpush1.msra.mxu0 0.0
    %316 = vmatprep.subr.mxu0 0.0
    %317 = vmatpush1.msra.mxu0 0.0
    %318 = vmatprep.subr.mxu0 0.0
    %319 = vmatpush1.msra.mxu0 0.0
    %320 = vmatprep.subr.mxu0 0.0
    %321 = vmatpush1.msra.mxu0 0.0
    %322 = vmatprep.subr.mxu0 %v301
    %323 = vmatpush1.msra.mxu0 %v300
    %324 = vmatprep.subr.mxu0 %v299
    %325 = vmatpush1.msra.mxu0 %v298
    %326 = vmatprep.subr.mxu0 %v297
    %327 = vmatpush1.msra.mxu0 %v296
    %328 = vmatprep.subr.mxu0 %v295
    %329 = vmatpush1.msra.mxu0 %v294
    %330 = vmatprep.subr.mxu0 %v293
    %331 = vmatpush1.msra.mxu0 %v292
    %332 = vmatprep.subr.mxu0 %v291
    %333 = vmatpush1.msra.mxu0 %v290
    %334 = vmatprep.subr.mxu0 %v289
    %335 = vmatpush1.msra.mxu0 %v288
    %336 = vmatprep.subr.mxu0 %v287
    %337 = vmatpush1.msra.mxu0 %v286
    %338 = vmatprep.subr.mxu0 0.0
    %339 = vmatpush2.msra.mxu0 0.0
    %340 = vmatprep.subr.mxu0 0.0
    %341 = vmatpush2.msra.mxu0 0.0
    %342 = vmatprep.subr.mxu0 0.0
    %343 = vmatpush2.msra.mxu0 0.0
    %344 = vmatprep.subr.mxu0 0.0
    %345 = vmatpush2.msra.mxu0 0.0
    %346 = vmatprep.subr.mxu0 0.0
    %347 = vmatpush2.msra.mxu0 0.0
    %348 = vmatprep.subr.mxu0 0.0
    %349 = vmatpush2.msra.mxu0 0.0
    %350 = vmatprep.subr.mxu0 0.0
    %351 = vmatpush2.msra.mxu0 0.0
    %352 = vmatprep.subr.mxu0 0.0
    %353 = vmatpush2.msra.mxu0 0.0
    %354 = vmatprep.subr.mxu0 0.0
    %355 = vmatpush2.msra.mxu0 0.0
    %356 = vmatprep.subr.mxu0 0.0
    %357 = vmatpush2.msra.mxu0 0.0
    %358 = vmatprep.subr.mxu0 0.0
    %359 = vmatpush2.msra.mxu0 0.0
    %360 = vmatprep.subr.mxu0 0.0
    %361 = vmatpush2.msra.mxu0 0.0
    %362 = vmatprep.subr.mxu0 0.0
    %363 = vmatpush2.msra.mxu0 0.0
    %364 = vmatprep.subr.mxu0 0.0
    %365 = vmatpush2.msra.mxu0 0.0
    %366 = vmatprep.subr.mxu0 0.0
    %367 = vmatpush2.msra.mxu0 0.0
    %368 = vmatprep.subr.mxu0 0.0
    %369 = vmatpush2.msra.mxu0 0.0
    %370 = vmatprep.mubr.f32.mxu0 0.0
    %371 = vmatmul.mubr.f32.gmra.mxu0 %v304
    %v372 = vpop.f32.mrf.mxu0
    %v373 = vadd.f32 0.0, %v372
    %v374 = vpop.f32.mrf.mxu0
    %v375 = vadd.f32 0.0, %v374
    %376 = vdwg.mxu0
    %v377 = vadd.f32 %v276, %v373
    %v378 = vadd.f32 %v278, %v375
    %v379 = vxor.u32 %v377, 2147483648
    %v380 = vmul.f32 %v379, 1.442695
    %v381 = vpow.pop %v380
    %v382 = vadd.f32 %v381, 1.0
    %v383 = vrcp.pop %v382
    %v384 = vmul.f32 1.0, %v383
    %v385 = vtanh.pop %v378
    %v386 = vxor.u32 %v378, 2147483648
    %v387 = vmul.f32 %v386, 1.442695
    %v388 = vpow.pop %v387
    %v389 = vadd.f32 %v388, 1.0
    %v390 = vrcp.pop %v389
    %v391 = vmul.f32 1.0, %v390
    %v392 = vmul.f32 %v384, 0.0
    %v393 = vmul.f32 %v384, %v385
    %395 = vrot.lane.b32.xlu0 %v393, 64
    %v396 = vpop.permute.xlu0 %395
    %v398 = vadd.f32 %v392, %v396
    %v399 = vtanh.pop %v398
    %v400 = vmul.f32 %v391, %v399
    %402 = vrot.lane.b32.xlu0 %v400, 64
    %v403 = vpop.permute.xlu0 %402
    %v404 = vsel %vm302, %v403, 0
    %406 = vmatprep.subr.mxu0 0.0
    %407 = vmatpush1.msra.mxu0 0.0
    %408 = vmatprep.subr.mxu0 0.0
    %409 = vmatpush1.msra.mxu0 0.0
    %410 = vmatprep.subr.mxu0 0.0
    %411 = vmatpush1.msra.mxu0 0.0
    %412 = vmatprep.subr.mxu0 0.0
    %413 = vmatpush1.msra.mxu0 0.0
    %414 = vmatprep.subr.mxu0 0.0
    %415 = vmatpush1.msra.mxu0 0.0
    %416 = vmatprep.subr.mxu0 0.0
    %417 = vmatpush1.msra.mxu0 0.0
    %418 = vmatprep.subr.mxu0 0.0
    %419 = vmatpush1.msra.mxu0 0.0
    %420 = vmatprep.subr.mxu0 0.0
    %421 = vmatpush1.msra.mxu0 0.0
    %422 = vmatprep.subr.mxu0 %v301
    %423 = vmatpush1.msra.mxu0 %v300
    %424 = vmatprep.subr.mxu0 %v299
    %425 = vmatpush1.msra.mxu0 %v298
    %426 = vmatprep.subr.mxu0 %v297
    %427 = vmatpush1.msra.mxu0 %v296
    %428 = vmatprep.subr.mxu0 %v295
    %429 = vmatpush1.msra.mxu0 %v294
    %430 = vmatprep.subr.mxu0 %v293
    %431 = vmatpush1.msra.mxu0 %v292
    %432 = vmatprep.subr.mxu0 %v291
    %433 = vmatpush1.msra.mxu0 %v290
    %434 = vmatprep.subr.mxu0 %v289
    %435 = vmatpush1.msra.mxu0 %v288
    %436 = vmatprep.subr.mxu0 %v287
    %437 = vmatpush1.msra.mxu0 %v286
    %438 = vmatprep.subr.mxu0 0.0
    %439 = vmatpush2.msra.mxu0 0.0
    %440 = vmatprep.subr.mxu0 0.0
    %441 = vmatpush2.msra.mxu0 0.0
    %442 = vmatprep.subr.mxu0 0.0
    %443 = vmatpush2.msra.mxu0 0.0
    %444 = vmatprep.subr.mxu0 0.0
    %445 = vmatpush2.msra.mxu0 0.0
    %446 = vmatprep.subr.mxu0 0.0
    %447 = vmatpush2.msra.mxu0 0.0
    %448 = vmatprep.subr.mxu0 0.0
    %449 = vmatpush2.msra.mxu0 0.0
    %450 = vmatprep.subr.mxu0 0.0
    %451 = vmatpush2.msra.mxu0 0.0
    %452 = vmatprep.subr.mxu0 0.0
    %453 = vmatpush2.msra.mxu0 0.0
    %454 = vmatprep.subr.mxu0 0.0
    %455 = vmatpush2.msra.mxu0 0.0
    %456 = vmatprep.subr.mxu0 0.0
    %457 = vmatpush2.msra.mxu0 0.0
    %458 = vmatprep.subr.mxu0 0.0
    %459 = vmatpush2.msra.mxu0 0.0
    %460 = vmatprep.subr.mxu0 0.0
    %461 = vmatpush2.msra.mxu0 0.0
    %462 = vmatprep.subr.mxu0 0.0
    %463 = vmatpush2.msra.mxu0 0.0
    %464 = vmatprep.subr.mxu0 0.0
    %465 = vmatpush2.msra.mxu0 0.0
    %466 = vmatprep.subr.mxu0 0.0
    %467 = vmatpush2.msra.mxu0 0.0
    %468 = vmatprep.subr.mxu0 0.0
    %469 = vmatpush2.msra.mxu0 0.0
    %470 = vmatprep.mubr.f32.mxu0 0.0
    %471 = vmatmul.mubr.f32.gmra.mxu0 %v404
    %v472 = vpop.f32.mrf.mxu0
    %v473 = vadd.f32 0.0, %v472
    %v474 = vpop.f32.mrf.mxu0
    %v475 = vadd.f32 0.0, %v474
    %476 = vdwg.mxu0
    %v479 = vrot.slane %v473, 6
    %v480 = vrot.slane %v475, 6
    %v483 = vadd.f32 %v276, %v479
    %v484 = vadd.f32 %v278, %v480
    %v485 = vxor.u32 %v483, 2147483648
    %v486 = vmul.f32 %v485, 1.442695
    %v487 = vpow.pop %v486
    %v488 = vadd.f32 %v487, 1.0
    %v489 = vrcp.pop %v488
    %v490 = vmul.f32 1.0, %v489
    %v491 = vtanh.pop %v484
    %v492 = vxor.u32 %v484, 2147483648
    %v493 = vmul.f32 %v492, 1.442695
    %v494 = vpow.pop %v493
    %v495 = vadd.f32 %v494, 1.0
    %v496 = vrcp.pop %v495
    %v497 = vmul.f32 1.0, %v496
    %v499 = vrot.slane %v398, 6
    %v501 = vmul.f32 %v490, %v499
    %v502 = vmul.f32 %v490, %v491
    %504 = vrot.lane.b32.xlu0 %v502, 64
    %v505 = vpop.permute.xlu0 %504
    %v507 = vadd.f32 %v501, %v505
    %v508 = vtanh.pop %v507
    %v509 = vmul.f32 %v497, %v508
    %v511 = vrot.slane %v509, 2
    %512 = vrot.lane.b32.xlu0 %v511, 64
    %v513 = vpop.permute.xlu0 %512
    %v514 = vsel %vm302, %v513, 0
    %516 = vmatprep.subr.mxu0 0.0
    %517 = vmatpush1.msra.mxu0 0.0
    %518 = vmatprep.subr.mxu0 0.0
    %519 = vmatpush1.msra.mxu0 0.0
    %520 = vmatprep.subr.mxu0 0.0
    %521 = vmatpush1.msra.mxu0 0.0
    %522 = vmatprep.subr.mxu0 0.0
    %523 = vmatpush1.msra.mxu0 0.0
    %524 = vmatprep.subr.mxu0 0.0
    %525 = vmatpush1.msra.mxu0 0.0
    %526 = vmatprep.subr.mxu0 0.0
    %527 = vmatpush1.msra.mxu0 0.0
    %528 = vmatprep.subr.mxu0 0.0
    %529 = vmatpush1.msra.mxu0 0.0
    %530 = vmatprep.subr.mxu0 0.0
    %531 = vmatpush1.msra.mxu0 0.0
    %532 = vmatprep.subr.mxu0 %v301
    %533 = vmatpush1.msra.mxu0 %v300
    %534 = vmatprep.subr.mxu0 %v299
    %535 = vmatpush1.msra.mxu0 %v298
    %536 = vmatprep.subr.mxu0 %v297
    %537 = vmatpush1.msra.mxu0 %v296
    %538 = vmatprep.subr.mxu0 %v295
    %539 = vmatpush1.msra.mxu0 %v294
    %540 = vmatprep.subr.mxu0 %v293
    %541 = vmatpush1.msra.mxu0 %v292
    %542 = vmatprep.subr.mxu0 %v291
    %543 = vmatpush1.msra.mxu0 %v290
    %544 = vmatprep.subr.mxu0 %v289
    %545 = vmatpush1.msra.mxu0 %v288
    %546 = vmatprep.subr.mxu0 %v287
    %547 = vmatpush1.msra.mxu0 %v286
    %548 = vmatprep.subr.mxu0 0.0
    %549 = vmatpush2.msra.mxu0 0.0
    %550 = vmatprep.subr.mxu0 0.0
    %551 = vmatpush2.msra.mxu0 0.0
    %552 = vmatprep.subr.mxu0 0.0
    %553 = vmatpush2.msra.mxu0 0.0
    %554 = vmatprep.subr.mxu0 0.0
    %555 = vmatpush2.msra.mxu0 0.0
    %556 = vmatprep.subr.mxu0 0.0
    %557 = vmatpush2.msra.mxu0 0.0
    %558 = vmatprep.subr.mxu0 0.0
    %559 = vmatpush2.msra.mxu0 0.0
    %560 = vmatprep.subr.mxu0 0.0
    %561 = vmatpush2.msra.mxu0 0.0
    %562 = vmatprep.subr.mxu0 0.0
    %563 = vmatpush2.msra.mxu0 0.0
    %564 = vmatprep.subr.mxu0 0.0
    %565 = vmatpush2.msra.mxu0 0.0
    %566 = vmatprep.subr.mxu0 0.0
    %567 = vmatpush2.msra.mxu0 0.0
    %568 = vmatprep.subr.mxu0 0.0
    %569 = vmatpush2.msra.mxu0 0.0
    %570 = vmatprep.subr.mxu0 0.0
    %571 = vmatpush2.msra.mxu0 0.0
    %572 = vmatprep.subr.mxu0 0.0
    %573 = vmatpush2.msra.mxu0 0.0
    %574 = vmatprep.subr.mxu0 0.0
    %575 = vmatpush2.msra.mxu0 0.0
    %576 = vmatprep.subr.mxu0 0.0
    %577 = vmatpush2.msra.mxu0 0.0
    %578 = vmatprep.subr.mxu0 0.0
    %579 = vmatpush2.msra.mxu0 0.0
    %580 = vmatprep.mubr.f32.mxu0 0.0
    %581 = vmatmul.mubr.f32.gmra.mxu0 %v514
    %v582 = vpop.f32.mrf.mxu0
    %v583 = vadd.f32 0.0, %v582
    %v584 = vpop.f32.mrf.mxu0
    %v585 = vadd.f32 0.0, %v584
    %586 = vdwg.mxu0
    %v589 = vrot.slane %v583, 4
    %v590 = vrot.slane %v585, 4
    %v593 = vadd.f32 %v276, %v589
    %v594 = vadd.f32 %v278, %v590
    %v595 = vxor.u32 %v593, 2147483648
    %v596 = vmul.f32 %v595, 1.442695
    %v597 = vpow.pop %v596
    %v598 = vadd.f32 %v597, 1.0
    %v599 = vrcp.pop %v598
    %v600 = vmul.f32 1.0, %v599
    %v601 = vtanh.pop %v594
    %v602 = vxor.u32 %v594, 2147483648
    %v603 = vmul.f32 %v602, 1.442695
    %v604 = vpow.pop %v603
    %v605 = vadd.f32 %v604, 1.0
    %v606 = vrcp.pop %v605
    %v607 = vmul.f32 1.0, %v606
    %v609 = vrot.slane %v507, 6
    %v611 = vmul.f32 %v600, %v609
    %v612 = vmul.f32 %v600, %v601
    %614 = vrot.lane.b32.xlu0 %v612, 64
    %v615 = vpop.permute.xlu0 %614
    %v617 = vadd.f32 %v611, %v615
    %v618 = vtanh.pop %v617
    %v619 = vmul.f32 %v607, %v618
    %v621 = vrot.slane %v619, 4
    %622 = vrot.lane.b32.xlu0 %v621, 64
    %v623 = vpop.permute.xlu0 %622
    %v624 = vsel %vm302, %v623, 0
    %626 = vmatprep.subr.mxu0 0.0
    %627 = vmatpush1.msra.mxu0 0.0
    %628 = vmatprep.subr.mxu0 0.0
    %629 = vmatpush1.msra.mxu0 0.0
    %630 = vmatprep.subr.mxu0 0.0
    %631 = vmatpush1.msra.mxu0 0.0
    %632 = vmatprep.subr.mxu0 0.0
    %633 = vmatpush1.msra.mxu0 0.0
    %634 = vmatprep.subr.mxu0 0.0
    %635 = vmatpush1.msra.mxu0 0.0
    %636 = vmatprep.subr.mxu0 0.0
    %637 = vmatpush1.msra.mxu0 0.0
    %638 = vmatprep.subr.mxu0 0.0
    %639 = vmatpush1.msra.mxu0 0.0
    %640 = vmatprep.subr.mxu0 0.0
    %641 = vmatpush1.msra.mxu0 0.0
    %642 = vmatprep.subr.mxu0 %v301
    %643 = vmatpush1.msra.mxu0 %v300
    %644 = vmatprep.subr.mxu0 %v299
    %645 = vmatpush1.msra.mxu0 %v298
    %646 = vmatprep.subr.mxu0 %v297
    %647 = vmatpush1.msra.mxu0 %v296
    %648 = vmatprep.subr.mxu0 %v295
    %649 = vmatpush1.msra.mxu0 %v294
    %650 = vmatprep.subr.mxu0 %v293
    %651 = vmatpush1.msra.mxu0 %v292
    %652 = vmatprep.subr.mxu0 %v291
    %653 = vmatpush1.msra.mxu0 %v290
    %654 = vmatprep.subr.mxu0 %v289
    %655 = vmatpush1.msra.mxu0 %v288
    %656 = vmatprep.subr.mxu0 %v287
    %657 = vmatpush1.msra.mxu0 %v286
    %658 = vmatprep.subr.mxu0 0.0
    %659 = vmatpush2.msra.mxu0 0.0
    %660 = vmatprep.subr.mxu0 0.0
    %661 = vmatpush2.msra.mxu0 0.0
    %662 = vmatprep.subr.mxu0 0.0
    %663 = vmatpush2.msra.mxu0 0.0
    %664 = vmatprep.subr.mxu0 0.0
    %665 = vmatpush2.msra.mxu0 0.0
    %666 = vmatprep.subr.mxu0 0.0
    %667 = vmatpush2.msra.mxu0 0.0
    %668 = vmatprep.subr.mxu0 0.0
    %669 = vmatpush2.msra.mxu0 0.0
    %670 = vmatprep.subr.mxu0 0.0
    %671 = vmatpush2.msra.mxu0 0.0
    %672 = vmatprep.subr.mxu0 0.0
    %673 = vmatpush2.msra.mxu0 0.0
    %674 = vmatprep.subr.mxu0 0.0
    %675 = vmatpush2.msra.mxu0 0.0
    %676 = vmatprep.subr.mxu0 0.0
    %677 = vmatpush2.msra.mxu0 0.0
    %678 = vmatprep.subr.mxu0 0.0
    %679 = vmatpush2.msra.mxu0 0.0
    %680 = vmatprep.subr.mxu0 0.0
    %681 = vmatpush2.msra.mxu0 0.0
    %682 = vmatprep.subr.mxu0 0.0
    %683 = vmatpush2.msra.mxu0 0.0
    %684 = vmatprep.subr.mxu0 0.0
    %685 = vmatpush2.msra.mxu0 0.0
    %686 = vmatprep.subr.mxu0 0.0
    %687 = vmatpush2.msra.mxu0 0.0
    %688 = vmatprep.subr.mxu0 0.0
    %689 = vmatpush2.msra.mxu0 0.0
    %690 = vmatprep.mubr.f32.mxu0 0.0
    %691 = vmatmul.mubr.f32.gmra.mxu0 %v624
    %v692 = vpop.f32.mrf.mxu0
    %v693 = vadd.f32 0.0, %v692
    %v694 = vpop.f32.mrf.mxu0
    %v695 = vadd.f32 0.0, %v694
    %696 = vdwg.mxu0
    %v699 = vrot.slane %v693, 2
    %v700 = vrot.slane %v695, 2
    %v703 = vadd.f32 %v276, %v699
    %v704 = vadd.f32 %v278, %v700
    %v705 = vxor.u32 %v703, 2147483648
    %v706 = vmul.f32 %v705, 1.442695
    %v707 = vpow.pop %v706
    %v708 = vadd.f32 %v707, 1.0
    %v709 = vrcp.pop %v708
    %v710 = vmul.f32 1.0, %v709
    %v711 = vtanh.pop %v704
    %v712 = vxor.u32 %v704, 2147483648
    %v713 = vmul.f32 %v712, 1.442695
    %v714 = vpow.pop %v713
    %v715 = vadd.f32 %v714, 1.0
    %v716 = vrcp.pop %v715
    %v717 = vmul.f32 1.0, %v716
    %v719 = vrot.slane %v617, 6
    %v721 = vmul.f32 %v710, %v719
    %v722 = vmul.f32 %v710, %v711
    %724 = vrot.lane.b32.xlu0 %v722, 64
    %v725 = vpop.permute.xlu0 %724
    %v727 = vadd.f32 %v721, %v725
    %v728 = vtanh.pop %v727
    %v729 = vmul.f32 %v717, %v728
    %v731 = vrot.slane %v729, 6
    %732 = vrot.lane.b32.xlu0 %v731, 64
    %v733 = vpop.permute.xlu0 %732
    %v734 = vsel %vm302, %v733, 0
    %736 = vmatprep.subr.mxu0 0.0
    %737 = vmatpush1.msra.mxu0 0.0
    %738 = vmatprep.subr.mxu0 0.0
    %739 = vmatpush1.msra.mxu0 0.0
    %740 = vmatprep.subr.mxu0 0.0
    %741 = vmatpush1.msra.mxu0 0.0
    %742 = vmatprep.subr.mxu0 0.0
    %743 = vmatpush1.msra.mxu0 0.0
    %744 = vmatprep.subr.mxu0 0.0
    %745 = vmatpush1.msra.mxu0 0.0
    %746 = vmatprep.subr.mxu0 0.0
    %747 = vmatpush1.msra.mxu0 0.0
    %748 = vmatprep.subr.mxu0 0.0
    %749 = vmatpush1.msra.mxu0 0.0
    %750 = vmatprep.subr.mxu0 0.0
    %751 = vmatpush1.msra.mxu0 0.0
    %752 = vmatprep.subr.mxu0 %v301
    %753 = vmatpush1.msra.mxu0 %v300
    %754 = vmatprep.subr.mxu0 %v299
    %755 = vmatpush1.msra.mxu0 %v298
    %756 = vmatprep.subr.mxu0 %v297
    %757 = vmatpush1.msra.mxu0 %v296
    %758 = vmatprep.subr.mxu0 %v295
    %759 = vmatpush1.msra.mxu0 %v294
    %760 = vmatprep.subr.mxu0 %v293
    %761 = vmatpush1.msra.mxu0 %v292
    %762 = vmatprep.subr.mxu0 %v291
    %763 = vmatpush1.msra.mxu0 %v290
    %764 = vmatprep.subr.mxu0 %v289
    %765 = vmatpush1.msra.mxu0 %v288
    %766 = vmatprep.subr.mxu0 %v287
    %767 = vmatpush1.msra.mxu0 %v286
    %768 = vmatprep.subr.mxu0 0.0
    %769 = vmatpush2.msra.mxu0 0.0
    %770 = vmatprep.subr.mxu0 0.0
    %771 = vmatpush2.msra.mxu0 0.0
    %772 = vmatprep.subr.mxu0 0.0
    %773 = vmatpush2.msra.mxu0 0.0
    %774 = vmatprep.subr.mxu0 0.0
    %775 = vmatpush2.msra.mxu0 0.0
    %776 = vmatprep.subr.mxu0 0.0
    %777 = vmatpush2.msra.mxu0 0.0
    %778 = vmatprep.subr.mxu0 0.0
    %779 = vmatpush2.msra.mxu0 0.0
    %780 = vmatprep.subr.mxu0 0.0
    %781 = vmatpush2.msra.mxu0 0.0
    %782 = vmatprep.subr.mxu0 0.0
    %783 = vmatpush2.msra.mxu0 0.0
    %784 = vmatprep.subr.mxu0 0.0
    %785 = vmatpush2.msra.mxu0 0.0
    %786 = vmatprep.subr.mxu0 0.0
    %787 = vmatpush2.msra.mxu0 0.0
    %788 = vmatprep.subr.mxu0 0.0
    %789 = vmatpush2.msra.mxu0 0.0
    %790 = vmatprep.subr.mxu0 0.0
    %791 = vmatpush2.msra.mxu0 0.0
    %792 = vmatprep.subr.mxu0 0.0
    %793 = vmatpush2.msra.mxu0 0.0
    %794 = vmatprep.subr.mxu0 0.0
    %795 = vmatpush2.msra.mxu0 0.0
    %796 = vmatprep.subr.mxu0 0.0
    %797 = vmatpush2.msra.mxu0 0.0
    %798 = vmatprep.subr.mxu0 0.0
    %799 = vmatpush2.msra.mxu0 0.0
    %800 = vmatprep.mubr.f32.mxu0 0.0
    %801 = vmatmul.mubr.f32.gmra.mxu0 %v734
    %v802 = vpop.f32.mrf.mxu0
    %v803 = vadd.f32 0.0, %v802
    %v804 = vpop.f32.mrf.mxu0
    %v805 = vadd.f32 0.0, %v804
    %806 = vdwg.mxu0
    %v807 = vadd.f32 %v282, %v803
    %v808 = vadd.f32 %v284, %v805
    %v809 = vxor.u32 %v807, 2147483648
    %v810 = vmul.f32 %v809, 1.442695
    %v811 = vpow.pop %v810
    %v812 = vadd.f32 %v811, 1.0
    %v813 = vrcp.pop %v812
    %v814 = vmul.f32 1.0, %v813
    %v815 = vtanh.pop %v808
    %v816 = vxor.u32 %v808, 2147483648
    %v817 = vmul.f32 %v816, 1.442695
    %v818 = vpow.pop %v817
    %v819 = vadd.f32 %v818, 1.0
    %v820 = vrcp.pop %v819
    %v821 = vmul.f32 1.0, %v820
    %v823 = vrot.slane %v727, 6
    %v825 = vmul.f32 %v814, %v823
    %v826 = vmul.f32 %v814, %v815
    %828 = vrot.lane.b32.xlu0 %v826, 64
    %v829 = vpop.permute.xlu0 %828
    %v831 = vadd.f32 %v825, %v829
    %v832 = vtanh.pop %v831
    %v833 = vmul.f32 %v821, %v832
    %835 = vrot.lane.b32.xlu0 %v833, 64
    %v836 = vpop.permute.xlu0 %835
    %v837 = vsel %vm302, %v836, 0
    %839 = vmatprep.subr.mxu0 0.0
    %840 = vmatpush1.msra.mxu0 0.0
    %841 = vmatprep.subr.mxu0 0.0
    %842 = vmatpush1.msra.mxu0 0.0
    %843 = vmatprep.subr.mxu0 0.0
    %844 = vmatpush1.msra.mxu0 0.0
    %845 = vmatprep.subr.mxu0 0.0
    %846 = vmatpush1.msra.mxu0 0.0
    %847 = vmatprep.subr.mxu0 0.0
    %848 = vmatpush1.msra.mxu0 0.0
    %849 = vmatprep.subr.mxu0 0.0
    %850 = vmatpush1.msra.mxu0 0.0
    %851 = vmatprep.subr.mxu0 0.0
    %852 = vmatpush1.msra.mxu0 0.0
    %853 = vmatprep.subr.mxu0 0.0
    %854 = vmatpush1.msra.mxu0 0.0
    %855 = vmatprep.subr.mxu0 %v301
    %856 = vmatpush1.msra.mxu0 %v300
    %857 = vmatprep.subr.mxu0 %v299
    %858 = vmatpush1.msra.mxu0 %v298
    %859 = vmatprep.subr.mxu0 %v297
    %860 = vmatpush1.msra.mxu0 %v296
    %861 = vmatprep.subr.mxu0 %v295
    %862 = vmatpush1.msra.mxu0 %v294
    %863 = vmatprep.subr.mxu0 %v293
    %864 = vmatpush1.msra.mxu0 %v292
    %865 = vmatprep.subr.mxu0 %v291
    %866 = vmatpush1.msra.mxu0 %v290
    %867 = vmatprep.subr.mxu0 %v289
    %868 = vmatpush1.msra.mxu0 %v288
    %869 = vmatprep.subr.mxu0 %v287
    %870 = vmatpush1.msra.mxu0 %v286
    %871 = vmatprep.subr.mxu0 0.0
    %872 = vmatpush2.msra.mxu0 0.0
    %873 = vmatprep.subr.mxu0 0.0
    %874 = vmatpush2.msra.mxu0 0.0
    %875 = vmatprep.subr.mxu0 0.0
    %876 = vmatpush2.msra.mxu0 0.0
    %877 = vmatprep.subr.mxu0 0.0
    %878 = vmatpush2.msra.mxu0 0.0
    %879 = vmatprep.subr.mxu0 0.0
    %880 = vmatpush2.msra.mxu0 0.0
    %881 = vmatprep.subr.mxu0 0.0
    %882 = vmatpush2.msra.mxu0 0.0
    %883 = vmatprep.subr.mxu0 0.0
    %884 = vmatpush2.msra.mxu0 0.0
    %885 = vmatprep.subr.mxu0 0.0
    %886 = vmatpush2.msra.mxu0 0.0
    %887 = vmatprep.subr.mxu0 0.0
    %888 = vmatpush2.msra.mxu0 0.0
    %889 = vmatprep.subr.mxu0 0.0
    %890 = vmatpush2.msra.mxu0 0.0
    %891 = vmatprep.subr.mxu0 0.0
    %892 = vmatpush2.msra.mxu0 0.0
    %893 = vmatprep.subr.mxu0 0.0
    %894 = vmatpush2.msra.mxu0 0.0
    %895 = vmatprep.subr.mxu0 0.0
    %896 = vmatpush2.msra.mxu0 0.0
    %897 = vmatprep.subr.mxu0 0.0
    %898 = vmatpush2.msra.mxu0 0.0
    %899 = vmatprep.subr.mxu0 0.0
    %900 = vmatpush2.msra.mxu0 0.0
    %901 = vmatprep.subr.mxu0 0.0
    %902 = vmatpush2.msra.mxu0 0.0
    %903 = vmatprep.mubr.f32.mxu0 0.0
    %904 = vmatmul.mubr.f32.gmra.mxu0 %v837
    %v905 = vpop.f32.mrf.mxu0
    %v906 = vadd.f32 0.0, %v905
    %v907 = vpop.f32.mrf.mxu0
    %v908 = vadd.f32 0.0, %v907
    %909 = vdwg.mxu0
    %v912 = vrot.slane %v906, 6
    %v913 = vrot.slane %v908, 6
    %v916 = vadd.f32 %v282, %v912
    %v917 = vadd.f32 %v284, %v913
    %v918 = vxor.u32 %v916, 2147483648
    %v919 = vmul.f32 %v918, 1.442695
    %v920 = vpow.pop %v919
    %v921 = vadd.f32 %v920, 1.0
    %v922 = vrcp.pop %v921
    %v923 = vmul.f32 1.0, %v922
    %v924 = vtanh.pop %v917
    %v925 = vxor.u32 %v917, 2147483648
    %v926 = vmul.f32 %v925, 1.442695
    %v927 = vpow.pop %v926
    %v928 = vadd.f32 %v927, 1.0
    %v929 = vrcp.pop %v928
    %v930 = vmul.f32 1.0, %v929
    %v932 = vrot.slane %v831, 6
    %v934 = vmul.f32 %v923, %v932
    %v935 = vmul.f32 %v923, %v924
    %937 = vrot.lane.b32.xlu0 %v935, 64
    %v938 = vpop.permute.xlu0 %937
    %v940 = vadd.f32 %v934, %v938
    %v941 = vtanh.pop %v940
    %v942 = vmul.f32 %v930, %v941
    %v944 = vrot.slane %v942, 2
    %945 = vrot.lane.b32.xlu0 %v944, 64
    %v946 = vpop.permute.xlu0 %945
    %v947 = vsel %vm302, %v946, 0
    %949 = vmatprep.subr.mxu0 0.0
    %950 = vmatpush1.msra.mxu0 0.0
    %951 = vmatprep.subr.mxu0 0.0
    %952 = vmatpush1.msra.mxu0 0.0
    %953 = vmatprep.subr.mxu0 0.0
    %954 = vmatpush1.msra.mxu0 0.0
    %955 = vmatprep.subr.mxu0 0.0
    %956 = vmatpush1.msra.mxu0 0.0
    %957 = vmatprep.subr.mxu0 0.0
    %958 = vmatpush1.msra.mxu0 0.0
    %959 = vmatprep.subr.mxu0 0.0
    %960 = vmatpush1.msra.mxu0 0.0
    %961 = vmatprep.subr.mxu0 0.0
    %962 = vmatpush1.msra.mxu0 0.0
    %963 = vmatprep.subr.mxu0 0.0
    %964 = vmatpush1.msra.mxu0 0.0
    %965 = vmatprep.subr.mxu0 %v301
    %966 = vmatpush1.msra.mxu0 %v300
    %967 = vmatprep.subr.mxu0 %v299
    %968 = vmatpush1.msra.mxu0 %v298
    %969 = vmatprep.subr.mxu0 %v297
    %970 = vmatpush1.msra.mxu0 %v296
    %971 = vmatprep.subr.mxu0 %v295
    %972 = vmatpush1.msra.mxu0 %v294
    %973 = vmatprep.subr.mxu0 %v293
    %974 = vmatpush1.msra.mxu0 %v292
    %975 = vmatprep.subr.mxu0 %v291
    %976 = vmatpush1.msra.mxu0 %v290
    %977 = vmatprep.subr.mxu0 %v289
    %978 = vmatpush1.msra.mxu0 %v288
    %979 = vmatprep.subr.mxu0 %v287
    %980 = vmatpush1.msra.mxu0 %v286
    %981 = vmatprep.subr.mxu0 0.0
    %982 = vmatpush2.msra.mxu0 0.0
    %983 = vmatprep.subr.mxu0 0.0
    %984 = vmatpush2.msra.mxu0 0.0
    %985 = vmatprep.subr.mxu0 0.0
    %986 = vmatpush2.msra.mxu0 0.0
    %987 = vmatprep.subr.mxu0 0.0
    %988 = vmatpush2.msra.mxu0 0.0
    %989 = vmatprep.subr.mxu0 0.0
    %990 = vmatpush2.msra.mxu0 0.0
    %991 = vmatprep.subr.mxu0 0.0
    %992 = vmatpush2.msra.mxu0 0.0
    %993 = vmatprep.subr.mxu0 0.0
    %994 = vmatpush2.msra.mxu0 0.0
    %995 = vmatprep.subr.mxu0 0.0
    %996 = vmatpush2.msra.mxu0 0.0
    %997 = vmatprep.subr.mxu0 0.0
    %998 = vmatpush2.msra.mxu0 0.0
    %999 = vmatprep.subr.mxu0 0.0
    %1000 = vmatpush2.msra.mxu0 0.0
    %1001 = vmatprep.subr.mxu0 0.0
    %1002 = vmatpush2.msra.mxu0 0.0
    %1003 = vmatprep.subr.mxu0 0.0
    %1004 = vmatpush2.msra.mxu0 0.0
    %1005 = vmatprep.subr.mxu0 0.0
    %1006 = vmatpush2.msra.mxu0 0.0
    %1007 = vmatprep.subr.mxu0 0.0
    %1008 = vmatpush2.msra.mxu0 0.0
    %1009 = vmatprep.subr.mxu0 0.0
    %1010 = vmatpush2.msra.mxu0 0.0
    %1011 = vmatprep.subr.mxu0 0.0
    %1012 = vmatpush2.msra.mxu0 0.0
    %1013 = vmatprep.mubr.f32.mxu0 0.0
    %1014 = vmatmul.mubr.f32.gmra.mxu0 %v947
    %v1015 = vpop.f32.mrf.mxu0
    %v1016 = vadd.f32 0.0, %v1015
    %v1017 = vpop.f32.mrf.mxu0
    %v1018 = vadd.f32 0.0, %v1017
    %1019 = vdwg.mxu0
    %v1022 = vrot.slane %v1016, 4
    %v1023 = vrot.slane %v1018, 4
    %v1026 = vadd.f32 %v282, %v1022
    %v1027 = vadd.f32 %v284, %v1023
    %v1028 = vxor.u32 %v1026, 2147483648
    %v1029 = vmul.f32 %v1028, 1.442695
    %v1030 = vpow.pop %v1029
    %v1031 = vadd.f32 %v1030, 1.0
    %v1032 = vrcp.pop %v1031
    %v1033 = vmul.f32 1.0, %v1032
    %v1034 = vtanh.pop %v1027
    %v1035 = vxor.u32 %v1027, 2147483648
    %v1036 = vmul.f32 %v1035, 1.442695
    %v1037 = vpow.pop %v1036
    %v1038 = vadd.f32 %v1037, 1.0
    %v1039 = vrcp.pop %v1038
    %v1040 = vmul.f32 1.0, %v1039
    %v1042 = vrot.slane %v940, 6
    %v1044 = vmul.f32 %v1033, %v1042
    %v1045 = vmul.f32 %v1033, %v1034
    %1047 = vrot.lane.b32.xlu0 %v1045, 64
    %v1048 = vpop.permute.xlu0 %1047
    %v1050 = vadd.f32 %v1044, %v1048
    %v1051 = vtanh.pop %v1050
    %v1052 = vmul.f32 %v1040, %v1051
    %v1054 = vrot.slane %v1052, 4
    %1055 = vrot.lane.b32.xlu0 %v1054, 64
    %v1056 = vpop.permute.xlu0 %1055
    %v1057 = vsel %vm302, %v1056, 0
    %1059 = vmatprep.subr.mxu0 0.0
    %1060 = vmatpush1.msra.mxu0 0.0
    %1061 = vmatprep.subr.mxu0 0.0
    %1062 = vmatpush1.msra.mxu0 0.0
    %1063 = vmatprep.subr.mxu0 0.0
    %1064 = vmatpush1.msra.mxu0 0.0
    %1065 = vmatprep.subr.mxu0 0.0
    %1066 = vmatpush1.msra.mxu0 0.0
    %1067 = vmatprep.subr.mxu0 0.0
    %1068 = vmatpush1.msra.mxu0 0.0
    %1069 = vmatprep.subr.mxu0 0.0
    %1070 = vmatpush1.msra.mxu0 0.0
    %1071 = vmatprep.subr.mxu0 0.0
    %1072 = vmatpush1.msra.mxu0 0.0
    %1073 = vmatprep.subr.mxu0 0.0
    %1074 = vmatpush1.msra.mxu0 0.0
    %1075 = vmatprep.subr.mxu0 %v301
    %1076 = vmatpush1.msra.mxu0 %v300
    %1077 = vmatprep.subr.mxu0 %v299
    %1078 = vmatpush1.msra.mxu0 %v298
    %1079 = vmatprep.subr.mxu0 %v297
    %1080 = vmatpush1.msra.mxu0 %v296
    %1081 = vmatprep.subr.mxu0 %v295
    %1082 = vmatpush1.msra.mxu0 %v294
    %1083 = vmatprep.subr.mxu0 %v293
    %1084 = vmatpush1.msra.mxu0 %v292
    %1085 = vmatprep.subr.mxu0 %v291
    %1086 = vmatpush1.msra.mxu0 %v290
    %1087 = vmatprep.subr.mxu0 %v289
    %1088 = vmatpush1.msra.mxu0 %v288
    %1089 = vmatprep.subr.mxu0 %v287
    %1090 = vmatpush1.msra.mxu0 %v286
    %1091 = vmatprep.subr.mxu0 0.0
    %1092 = vmatpush2.msra.mxu0 0.0
    %1093 = vmatprep.subr.mxu0 0.0
    %1094 = vmatpush2.msra.mxu0 0.0
    %1095 = vmatprep.subr.mxu0 0.0
    %1096 = vmatpush2.msra.mxu0 0.0
    %1097 = vmatprep.subr.mxu0 0.0
    %1098 = vmatpush2.msra.mxu0 0.0
    %1099 = vmatprep.subr.mxu0 0.0
    %1100 = vmatpush2.msra.mxu0 0.0
    %1101 = vmatprep.subr.mxu0 0.0
    %1102 = vmatpush2.msra.mxu0 0.0
    %1103 = vmatprep.subr.mxu0 0.0
    %1104 = vmatpush2.msra.mxu0 0.0
    %1105 = vmatprep.subr.mxu0 0.0
    %1106 = vmatpush2.msra.mxu0 0.0
    %1107 = vmatprep.subr.mxu0 0.0
    %1108 = vmatpush2.msra.mxu0 0.0
    %1109 = vmatprep.subr.mxu0 0.0
    %1110 = vmatpush2.msra.mxu0 0.0
    %1111 = vmatprep.subr.mxu0 0.0
    %1112 = vmatpush2.msra.mxu0 0.0
    %1113 = vmatprep.subr.mxu0 0.0
    %1114 = vmatpush2.msra.mxu0 0.0
    %1115 = vmatprep.subr.mxu0 0.0
    %1116 = vmatpush2.msra.mxu0 0.0
    %1117 = vmatprep.subr.mxu0 0.0
    %1118 = vmatpush2.msra.mxu0 0.0
    %1119 = vmatprep.subr.mxu0 0.0
    %1120 = vmatpush2.msra.mxu0 0.0
    %1121 = vmatprep.subr.mxu0 0.0
    %1122 = vmatpush2.msra.mxu0 0.0
    %1123 = vmatprep.mubr.f32.mxu0 0.0
    %1124 = vmatmul.mubr.f32.gmra.mxu0 %v1057
    %v1125 = vpop.f32.mrf.mxu0
    %v1126 = vadd.f32 0.0, %v1125
    %v1127 = vpop.f32.mrf.mxu0
    %v1128 = vadd.f32 0.0, %v1127
    %1129 = vdwg.mxu0
    %v1132 = vrot.slane %v1126, 2
    %v1133 = vrot.slane %v1128, 2
    %v1136 = vadd.f32 %v282, %v1132
    %v1137 = vadd.f32 %v284, %v1133
    %v1138 = vxor.u32 %v1136, 2147483648
    %v1139 = vmul.f32 %v1138, 1.442695
    %v1140 = vpow.pop %v1139
    %v1141 = vadd.f32 %v1140, 1.0
    %v1142 = vrcp.pop %v1141
    %v1143 = vmul.f32 1.0, %v1142
    %v1144 = vtanh.pop %v1137
    %v1145 = vxor.u32 %v1137, 2147483648
    %v1146 = vmul.f32 %v1145, 1.442695
    %v1147 = vpow.pop %v1146
    %v1148 = vadd.f32 %v1147, 1.0
    %v1149 = vrcp.pop %v1148
    %v1150 = vmul.f32 1.0, %v1149
    %v1152 = vrot.slane %v1050, 6
    %v1154 = vmul.f32 %v1143, %v1152
    %v1155 = vmul.f32 %v1143, %v1144
    %1157 = vrot.lane.b32.xlu0 %v1155, 64
    %v1158 = vpop.permute.xlu0 %1157
    %v1160 = vadd.f32 %v1154, %v1158
    %v1161 = vtanh.pop %v1160
    %v1162 = vmul.f32 %v1150, %v1161
    %v1163 = vld [vmem:[#allocation6] sm:$0xff]
    %v1164 = vld [vmem:[#allocation6 + $0x8] sm:$0xff]
    %v1165 = vld [vmem:[#allocation6 + $0x10] sm:$0xff]
    %v1166 = vld [vmem:[#allocation6 + $0x18] sm:$0xff]
    %v1167 = vld [vmem:[#allocation6 + $0x20] sm:$0xff]
    %v1168 = vld [vmem:[#allocation6 + $0x28] sm:$0xff]
    %v1169 = vld [vmem:[#allocation6 + $0x30] sm:$0xff]
    %v1170 = vld [vmem:[#allocation6 + $0x38] sm:$0xff]
    %v1171 = vld [vmem:[#allocation7] sm:$0x1]
    %v1173 = vlaneseq
    %v1174 = vshrl.u32 %v1173, 7
    %v1175 = vsub.s32 0, %v1174
    %v1176 = vrot.slane %v1171, %v1175
    %v1179 = vrot.slane %v1162, 6
    %1180 = vrot.lane.b32.xlu0 %v1179, 64
    %v1181 = vpop.permute.xlu0 %1180
    %v1182 = vsel %vm302, %v1181, 0
    %1184 = vmatprep.subr.mxu0 0.0
    %1185 = vmatpush1.msra.mxu0 0.0
    %1186 = vmatprep.subr.mxu0 0.0
    %1187 = vmatpush1.msra.mxu0 0.0
    %1188 = vmatprep.subr.mxu0 0.0
    %1189 = vmatpush1.msra.mxu0 0.0
    %1190 = vmatprep.subr.mxu0 0.0
    %1191 = vmatpush1.msra.mxu0 0.0
    %1192 = vmatprep.subr.mxu0 0.0
    %1193 = vmatpush1.msra.mxu0 0.0
    %1194 = vmatprep.subr.mxu0 0.0
    %1195 = vmatpush1.msra.mxu0 0.0
    %1196 = vmatprep.subr.mxu0 0.0
    %1197 = vmatpush1.msra.mxu0 0.0
    %1198 = vmatprep.subr.mxu0 0.0
    %1199 = vmatpush1.msra.mxu0 0.0
    %1200 = vmatprep.subr.mxu0 0.0
    %1201 = vmatpush1.msra.mxu0 %v1170
    %1202 = vmatprep.subr.mxu0 0.0
    %1203 = vmatpush1.msra.mxu0 %v1169
    %1204 = vmatprep.subr.mxu0 0.0
    %1205 = vmatpush1.msra.mxu0 %v1168
    %1206 = vmatprep.subr.mxu0 0.0
    %1207 = vmatpush1.msra.mxu0 %v1167
    %1208 = vmatprep.subr.mxu0 0.0
    %1209 = vmatpush1.msra.mxu0 %v1166
    %1210 = vmatprep.subr.mxu0 0.0
    %1211 = vmatpush1.msra.mxu0 %v1165
    %1212 = vmatprep.subr.mxu0 0.0
    %1213 = vmatpush1.msra.mxu0 %v1164
    %1214 = vmatprep.subr.mxu0 0.0
    %1215 = vmatpush1.msra.mxu0 %v1163
    %1216 = vmatprep.subr.mxu0 0.0
    %1217 = vmatpush2.msra.mxu0 0.0
    %1218 = vmatprep.subr.mxu0 0.0
    %1219 = vmatpush2.msra.mxu0 0.0
    %1220 = vmatprep.subr.mxu0 0.0
    %1221 = vmatpush2.msra.mxu0 0.0
    %1222 = vmatprep.subr.mxu0 0.0
    %1223 = vmatpush2.msra.mxu0 0.0
    %1224 = vmatprep.subr.mxu0 0.0
    %1225 = vmatpush2.msra.mxu0 0.0
    %1226 = vmatprep.subr.mxu0 0.0
    %1227 = vmatpush2.msra.mxu0 0.0
    %1228 = vmatprep.subr.mxu0 0.0
    %1229 = vmatpush2.msra.mxu0 0.0
    %1230 = vmatprep.subr.mxu0 0.0
    %1231 = vmatpush2.msra.mxu0 0.0
    %1232 = vmatprep.subr.mxu0 0.0
    %1233 = vmatpush2.msra.mxu0 0.0
    %1234 = vmatprep.subr.mxu0 0.0
    %1235 = vmatpush2.msra.mxu0 0.0
    %1236 = vmatprep.subr.mxu0 0.0
    %1237 = vmatpush2.msra.mxu0 0.0
    %1238 = vmatprep.subr.mxu0 0.0
    %1239 = vmatpush2.msra.mxu0 0.0
    %1240 = vmatprep.subr.mxu0 0.0
    %1241 = vmatpush2.msra.mxu0 0.0
    %1242 = vmatprep.subr.mxu0 0.0
    %1243 = vmatpush2.msra.mxu0 0.0
    %1244 = vmatprep.subr.mxu0 0.0
    %1245 = vmatpush2.msra.mxu0 0.0
    %1246 = vmatprep.subr.mxu0 0.0
    %1247 = vmatpush2.msra.mxu0 0.0
    %1248 = vmatprep.mubr.f32.mxu0 0.0
    %1249 = vmatmul.mubr.f32.gmra.mxu0 %v1182
    %v1250 = vpop.f32.mrf.mxu0
    %v1251 = vadd.f32 %v1176, %v1250
    %v1252 = vpop.f32.mrf.mxu0
    %1253 = vdwg.mxu0
    %v1254 = vld [vmem:[%s2] sm:$0xff]
    %v1255 = vld [vmem:[%s2 + $0x8] sm:$0xff]
    %v1256 = vld [vmem:[%s2 + $0x10] sm:$0xff]
    %v1257 = vld [vmem:[%s2 + $0x18] sm:$0xff]
    %vm1258 = vcmp.gt.f32.partialorder %v1254, 0.5
    %vm1259 = vcmp.gt.f32.partialorder %v1255, 0.5
    %vm1260 = vcmp.gt.f32.partialorder %v1256, 0.5
    %vm1261 = vcmp.gt.f32.partialorder %v1257, 0.5
    %v1262 = vld [vmem:[%s1] sm:$0xff]
    %v1263 = vld [vmem:[%s1 + $0x8] sm:$0xff]
    %v1264 = vld [vmem:[%s1 + $0x10] sm:$0xff]
    %v1265 = vld [vmem:[%s1 + $0x18] sm:$0xff]
    %v1266 = vld [vmem:[%s8] sm:$0x1f]
    %v1267 = vld [vmem:[#allocation9] sm:$0x1]
    %v1269 = vlaneseq
    %v1270 = vshrl.u32 %v1269, 7
    %v1271 = vsub.s32 0, %v1270
    %v1272 = vrot.slane %v1267, %v1271
    %vm1274 = vcmask 39936
    %v1276 = vsel %vm1274, %v1262, 0
    %v1279 = vsel %vm1274, %v1263, 0
    %v1282 = vsel %vm1274, %v1264, 0
    %v1285 = vsel %vm1274, %v1265, 0
    %vm1287 = vcmask 1044480
    %v1289 = vsel %vm1287, %v1266, 0
    %1291 = vmatprep.subr.mxu0 0.0
    %1292 = vmatpush1.msra.mxu0 0.0
    %1293 = vmatprep.subr.mxu0 0.0
    %1294 = vmatpush1.msra.mxu0 0.0
    %1295 = vmatprep.subr.mxu0 0.0
    %1296 = vmatpush1.msra.mxu0 0.0
    %1297 = vmatprep.subr.mxu0 0.0
    %1298 = vmatpush1.msra.mxu0 0.0
    %1299 = vmatprep.subr.mxu0 0.0
    %1300 = vmatpush1.msra.mxu0 0.0
    %1301 = vmatprep.subr.mxu0 0.0
    %1302 = vmatpush1.msra.mxu0 0.0
    %1303 = vmatprep.subr.mxu0 0.0
    %1304 = vmatpush1.msra.mxu0 0.0
    %1305 = vmatprep.subr.mxu0 0.0
    %1306 = vmatpush1.msra.mxu0 0.0
    %1307 = vmatprep.subr.mxu0 0.0
    %1308 = vmatpush1.msra.mxu0 0.0
    %1309 = vmatprep.subr.mxu0 0.0
    %1310 = vmatpush1.msra.mxu0 0.0
    %1311 = vmatprep.subr.mxu0 0.0
    %1312 = vmatpush1.msra.mxu0 0.0
    %1313 = vmatprep.subr.mxu0 0.0
    %1314 = vmatpush1.msra.mxu0 0.0
    %1315 = vmatprep.subr.mxu0 0.0
    %1316 = vmatpush1.msra.mxu0 0.0
    %1317 = vmatprep.subr.mxu0 0.0
    %1318 = vmatpush1.msra.mxu0 0.0
    %1319 = vmatprep.subr.mxu0 0.0
    %1320 = vmatpush1.msra.mxu0 0.0
    %1321 = vmatprep.subr.mxu0 0.0
    %1322 = vmatpush1.msra.mxu0 %v1289
    %1323 = vmatprep.subr.mxu0 0.0
    %1324 = vmatpush2.msra.mxu0 0.0
    %1325 = vmatprep.subr.mxu0 0.0
    %1326 = vmatpush2.msra.mxu0 0.0
    %1327 = vmatprep.subr.mxu0 0.0
    %1328 = vmatpush2.msra.mxu0 0.0
    %1329 = vmatprep.subr.mxu0 0.0
    %1330 = vmatpush2.msra.mxu0 0.0
    %1331 = vmatprep.subr.mxu0 0.0
    %1332 = vmatpush2.msra.mxu0 0.0
    %1333 = vmatprep.subr.mxu0 0.0
    %1334 = vmatpush2.msra.mxu0 0.0
    %1335 = vmatprep.subr.mxu0 0.0
    %1336 = vmatpush2.msra.mxu0 0.0
    %1337 = vmatprep.subr.mxu0 0.0
    %1338 = vmatpush2.msra.mxu0 0.0
    %1339 = vmatprep.subr.mxu0 0.0
    %1340 = vmatpush2.msra.mxu0 0.0
    %1341 = vmatprep.subr.mxu0 0.0
    %1342 = vmatpush2.msra.mxu0 0.0
    %1343 = vmatprep.subr.mxu0 0.0
    %1344 = vmatpush2.msra.mxu0 0.0
    %1345 = vmatprep.subr.mxu0 0.0
    %1346 = vmatpush2.msra.mxu0 0.0
    %1347 = vmatprep.subr.mxu0 0.0
    %1348 = vmatpush2.msra.mxu0 0.0
    %1349 = vmatprep.subr.mxu0 0.0
    %1350 = vmatpush2.msra.mxu0 0.0
    %1351 = vmatprep.subr.mxu0 0.0
    %1352 = vmatpush2.msra.mxu0 0.0
    %1353 = vmatprep.subr.mxu0 0.0
    %1354 = vmatpush2.msra.mxu0 0.0
    %1355 = vmatprep.mubr.f32.mxu0 0.0
    %1356 = vmatmul.mubr.f32.gmra.mxu0 %v1276
    %v1357 = vpop.f32.mrf.mxu0
    %v1358 = vadd.f32 %v1272, %v1357
    %v1359 = vpop.f32.mrf.mxu0
    %1360 = vmatprep.mubr.f32.mxu0 0.0
    %1361 = vmatmul.mubr.f32.gmra.mxu0 %v1279
    %v1362 = vpop.f32.mrf.mxu0
    %v1363 = vadd.f32 %v1272, %v1362
    %v1364 = vpop.f32.mrf.mxu0
    %1365 = vmatprep.mubr.f32.mxu0 0.0
    %1366 = vmatmul.mubr.f32.gmra.mxu0 %v1282
    %v1367 = vpop.f32.mrf.mxu0
    %v1368 = vadd.f32 %v1272, %v1367
    %v1369 = vpop.f32.mrf.mxu0
    %1370 = vmatprep.mubr.f32.mxu0 0.0
    %1371 = vmatmul.mubr.f32.gmra.mxu0 %v1285
    %v1372 = vpop.f32.mrf.mxu0
    %v1373 = vadd.f32 %v1272, %v1372
    %v1374 = vpop.f32.mrf.mxu0
    %1375 = vdwg.mxu0
    %v1376 = vmax.f32 %v1358, 0.0
    %v1377 = vmax.f32 %v1363, 0.0
    %v1378 = vmax.f32 %v1368, 0.0
    %v1379 = vmax.f32 %v1373, 0.0
    %v1380 = vsel %vm1258, 1, 0
    %v1381 = vsel %vm1259, 1, 0
    %v1382 = vsel %vm1260, 1, 0
    %v1383 = vsel %vm1261, 1, 0
    %1384 = vset.pattern.permute.xlu0 0
    %1385 = vperm.xlu0 %1384, %v1380
    %v1386 = vpop.permute.xlu0 %1385
    %1387 = vset.pattern.permute.xlu0 0
    %1388 = vperm.xlu0 %1387, %v1381
    %v1389 = vpop.permute.xlu0 %1388
    %1390 = vset.pattern.permute.xlu0 0
    %1391 = vperm.xlu0 %1390, %v1382
    %v1392 = vpop.permute.xlu0 %1391
    %1393 = vset.pattern.permute.xlu0 0
    %1394 = vperm.xlu0 %1393, %v1383
    %v1395 = vpop.permute.xlu0 %1394
    %vm1396 = vcmp.eq.s32.totalorder %v1386, 1
    %vm1397 = vcmp.eq.s32.totalorder %v1389, 1
    %vm1398 = vcmp.eq.s32.totalorder %v1392, 1
    %vm1399 = vcmp.eq.s32.totalorder %v1395, 1
    %v1400 = vsel %vm1396, %v1376, -1e+30
    %v1401 = vsel %vm1397, %v1377, -1e+30
    %v1402 = vsel %vm1398, %v1378, -1e+30
    %v1403 = vsel %vm1399, %v1379, -1e+30
    %v1404 = vsel %vm302, %v1400, -inf
    %v1405 = vsel %vm302, %v1401, -inf
    %v1406 = vsel %vm302, %v1402, -inf
    %v1407 = vsel %vm302, %v1403, -inf
    %v1408 = vmax.f32 %v1404, %v1405
    %v1409 = vmax.f32 %v1406, %v1407
    %v1410 = vmax.f32 %v1408, %v1409
    %v1411 = vrot.slane %v1410, 4
    %v1412 = vmax.f32 %v1410, %v1411
    %v1413 = vrot.slane %v1412, 2
    %v1414 = vmax.f32 %v1412, %v1413
    %v1415 = vrot.slane %v1414, 1
    %v1416 = vmax.f32 %v1414, %v1415
    %1417 = vset.pattern.permute.xlu0 1
    %1418 = vperm.xlu0 %1417, %v1380
    %v1419 = vpop.permute.xlu0 %1418
    %1420 = vset.pattern.permute.xlu0 1
    %1421 = vperm.xlu0 %1420, %v1381
    %v1422 = vpop.permute.xlu0 %1421
    %1423 = vset.pattern.permute.xlu0 1
    %1424 = vperm.xlu0 %1423, %v1382
    %v1425 = vpop.permute.xlu0 %1424
    %1426 = vset.pattern.permute.xlu0 1
    %1427 = vperm.xlu0 %1426, %v1383
    %v1428 = vpop.permute.xlu0 %1427
    %vm1429 = vcmp.eq.s32.totalorder %v1419, 1
    %vm1430 = vcmp.eq.s32.totalorder %v1422, 1
    %vm1431 = vcmp.eq.s32.totalorder %v1425, 1
    %vm1432 = vcmp.eq.s32.totalorder %v1428, 1
    %v1433 = vsel %vm1429, %v1376, -1e+30
    %v1434 = vsel %vm1430, %v1377, -1e+30
    %v1435 = vsel %vm1431, %v1378, -1e+30
    %v1436 = vsel %vm1432, %v1379, -1e+30
    %v1437 = vsel %vm302, %v1433, -inf
    %v1438 = vsel %vm302, %v1434, -inf
    %v1439 = vsel %vm302, %v1435, -inf
    %v1440 = vsel %vm302, %v1436, -inf
    %v1441 = vmax.f32 %v1437, %v1438
    %v1442 = vmax.f32 %v1439, %v1440
    %v1443 = vmax.f32 %v1441, %v1442
    %v1444 = vrot.slane %v1443, 4
    %v1445 = vmax.f32 %v1443, %v1444
    %v1446 = vrot.slane %v1445, 2
    %v1447 = vmax.f32 %v1445, %v1446
    %v1448 = vrot.slane %v1447, 1
    %v1449 = vmax.f32 %v1447, %v1448
    %1450 = vset.pattern.permute.xlu0 2
    %1451 = vperm.xlu0 %1450, %v1380
    %v1452 = vpop.permute.xlu0 %1451
    %1453 = vset.pattern.permute.xlu0 2
    %1454 = vperm.xlu0 %1453, %v1381
    %v1455 = vpop.permute.xlu0 %1454
    %1456 = vset.pattern.permute.xlu0 2
    %1457 = vperm.xlu0 %1456, %v1382
    %v1458 = vpop.permute.xlu0 %1457
    %1459 = vset.pattern.permute.xlu0 2
    %1460 = vperm.xlu0 %1459, %v1383
    %v1461 = vpop.permute.xlu0 %1460
    %vm1462 = vcmp.eq.s32.totalorder %v1452, 1
    %vm1463 = vcmp.eq.s32.totalorder %v1455, 1
    %vm1464 = vcmp.eq.s32.totalorder %v1458, 1
    %vm1465 = vcmp.eq.s32.totalorder %v1461, 1
    %v1466 = vsel %vm1462, %v1376, -1e+30
    %v1467 = vsel %vm1463, %v1377, -1e+30
    %v1468 = vsel %vm1464, %v1378, -1e+30
    %v1469 = vsel %vm1465, %v1379, -1e+30
    %v1470 = vsel %vm302, %v1466, -inf
    %v1471 = vsel %vm302, %v1467, -inf
    %v1472 = vsel %vm302, %v1468, -inf
    %v1473 = vsel %vm302, %v1469, -inf
    %v1474 = vmax.f32 %v1470, %v1471
    %v1475 = vmax.f32 %v1472, %v1473
    %v1476 = vmax.f32 %v1474, %v1475
    %v1477 = vrot.slane %v1476, 4
    %v1478 = vmax.f32 %v1476, %v1477
    %v1479 = vrot.slane %v1478, 2
    %v1480 = vmax.f32 %v1478, %v1479
    %v1481 = vrot.slane %v1480, 1
    %v1482 = vmax.f32 %v1480, %v1481
    %1483 = vset.pattern.permute.xlu0 3
    %1484 = vperm.xlu0 %1483, %v1380
    %v1485 = vpop.permute.xlu0 %1484
    %1486 = vset.pattern.permute.xlu0 3
    %1487 = vperm.xlu0 %1486, %v1381
    %v1488 = vpop.permute.xlu0 %1487
    %1489 = vset.pattern.permute.xlu0 3
    %1490 = vperm.xlu0 %1489, %v1382
    %v1491 = vpop.permute.xlu0 %1490
    %1492 = vset.pattern.permute.xlu0 3
    %1493 = vperm.xlu0 %1492, %v1383
    %v1494 = vpop.permute.xlu0 %1493
    %vm1495 = vcmp.eq.s32.totalorder %v1485, 1
    %vm1496 = vcmp.eq.s32.totalorder %v1488, 1
    %vm1497 = vcmp.eq.s32.totalorder %v1491, 1
    %vm1498 = vcmp.eq.s32.totalorder %v1494, 1
    %v1499 = vsel %vm1495, %v1376, -1e+30
    %v1500 = vsel %vm1496, %v1377, -1e+30
    %v1501 = vsel %vm1497, %v1378, -1e+30
    %v1502 = vsel %vm1498, %v1379, -1e+30
    %v1503 = vsel %vm302, %v1499, -inf
    %v1504 = vsel %vm302, %v1500, -inf
    %v1505 = vsel %vm302, %v1501, -inf
    %v1506 = vsel %vm302, %v1502, -inf
    %v1507 = vmax.f32 %v1503, %v1504
    %v1508 = vmax.f32 %v1505, %v1506
    %v1509 = vmax.f32 %v1507, %v1508
    %v1510 = vrot.slane %v1509, 4
    %v1511 = vmax.f32 %v1509, %v1510
    %v1512 = vrot.slane %v1511, 2
    %v1513 = vmax.f32 %v1511, %v1512
    %v1514 = vrot.slane %v1513, 1
    %v1515 = vmax.f32 %v1513, %v1514
    %1516 = vset.pattern.permute.xlu0 4
    %1517 = vperm.xlu0 %1516, %v1380
    %v1518 = vpop.permute.xlu0 %1517
    %1519 = vset.pattern.permute.xlu0 4
    %1520 = vperm.xlu0 %1519, %v1381
    %v1521 = vpop.permute.xlu0 %1520
    %1522 = vset.pattern.permute.xlu0 4
    %1523 = vperm.xlu0 %1522, %v1382
    %v1524 = vpop.permute.xlu0 %1523
    %1525 = vset.pattern.permute.xlu0 4
    %1526 = vperm.xlu0 %1525, %v1383
    %v1527 = vpop.permute.xlu0 %1526
    %vm1528 = vcmp.eq.s32.totalorder %v1518, 1
    %vm1529 = vcmp.eq.s32.totalorder %v1521, 1
    %vm1530 = vcmp.eq.s32.totalorder %v1524, 1
    %vm1531 = vcmp.eq.s32.totalorder %v1527, 1
    %v1532 = vsel %vm1528, %v1376, -1e+30
    %v1533 = vsel %vm1529, %v1377, -1e+30
    %v1534 = vsel %vm1530, %v1378, -1e+30
    %v1535 = vsel %vm1531, %v1379, -1e+30
    %v1536 = vsel %vm302, %v1532, -inf
    %v1537 = vsel %vm302, %v1533, -inf
    %v1538 = vsel %vm302, %v1534, -inf
    %v1539 = vsel %vm302, %v1535, -inf
    %v1540 = vmax.f32 %v1536, %v1537
    %v1541 = vmax.f32 %v1538, %v1539
    %v1542 = vmax.f32 %v1540, %v1541
    %v1543 = vrot.slane %v1542, 4
    %v1544 = vmax.f32 %v1542, %v1543
    %v1545 = vrot.slane %v1544, 2
    %v1546 = vmax.f32 %v1544, %v1545
    %v1547 = vrot.slane %v1546, 1
    %v1548 = vmax.f32 %v1546, %v1547
    %1549 = vset.pattern.permute.xlu0 5
    %1550 = vperm.xlu0 %1549, %v1380
    %v1551 = vpop.permute.xlu0 %1550
    %1552 = vset.pattern.permute.xlu0 5
    %1553 = vperm.xlu0 %1552, %v1381
    %v1554 = vpop.permute.xlu0 %1553
    %1555 = vset.pattern.permute.xlu0 5
    %1556 = vperm.xlu0 %1555, %v1382
    %v1557 = vpop.permute.xlu0 %1556
    %1558 = vset.pattern.permute.xlu0 5
    %1559 = vperm.xlu0 %1558, %v1383
    %v1560 = vpop.permute.xlu0 %1559
    %vm1561 = vcmp.eq.s32.totalorder %v1551, 1
    %vm1562 = vcmp.eq.s32.totalorder %v1554, 1
    %vm1563 = vcmp.eq.s32.totalorder %v1557, 1
    %vm1564 = vcmp.eq.s32.totalorder %v1560, 1
    %v1565 = vsel %vm1561, %v1376, -1e+30
    %v1566 = vsel %vm1562, %v1377, -1e+30
    %v1567 = vsel %vm1563, %v1378, -1e+30
    %v1568 = vsel %vm1564, %v1379, -1e+30
    %v1569 = vsel %vm302, %v1565, -inf
    %v1570 = vsel %vm302, %v1566, -inf
    %v1571 = vsel %vm302, %v1567, -inf
    %v1572 = vsel %vm302, %v1568, -inf
    %v1573 = vmax.f32 %v1569, %v1570
    %v1574 = vmax.f32 %v1571, %v1572
    %v1575 = vmax.f32 %v1573, %v1574
    %v1576 = vrot.slane %v1575, 4
    %v1577 = vmax.f32 %v1575, %v1576
    %v1578 = vrot.slane %v1577, 2
    %v1579 = vmax.f32 %v1577, %v1578
    %v1580 = vrot.slane %v1579, 1
    %v1581 = vmax.f32 %v1579, %v1580
    %1582 = vset.pattern.permute.xlu0 6
    %1583 = vperm.xlu0 %1582, %v1380
    %v1584 = vpop.permute.xlu0 %1583
    %1585 = vset.pattern.permute.xlu0 6
    %1586 = vperm.xlu0 %1585, %v1381
    %v1587 = vpop.permute.xlu0 %1586
    %1588 = vset.pattern.permute.xlu0 6
    %1589 = vperm.xlu0 %1588, %v1382
    %v1590 = vpop.permute.xlu0 %1589
    %1591 = vset.pattern.permute.xlu0 6
    %1592 = vperm.xlu0 %1591, %v1383
    %v1593 = vpop.permute.xlu0 %1592
    %vm1594 = vcmp.eq.s32.totalorder %v1584, 1
    %vm1595 = vcmp.eq.s32.totalorder %v1587, 1
    %vm1596 = vcmp.eq.s32.totalorder %v1590, 1
    %vm1597 = vcmp.eq.s32.totalorder %v1593, 1
    %v1598 = vsel %vm1594, %v1376, -1e+30
    %v1599 = vsel %vm1595, %v1377, -1e+30
    %v1600 = vsel %vm1596, %v1378, -1e+30
    %v1601 = vsel %vm1597, %v1379, -1e+30
    %v1602 = vsel %vm302, %v1598, -inf
    %v1603 = vsel %vm302, %v1599, -inf
    %v1604 = vsel %vm302, %v1600, -inf
    %v1605 = vsel %vm302, %v1601, -inf
    %v1606 = vmax.f32 %v1602, %v1603
    %v1607 = vmax.f32 %v1604, %v1605
    %v1608 = vmax.f32 %v1606, %v1607
    %v1609 = vrot.slane %v1608, 4
    %v1610 = vmax.f32 %v1608, %v1609
    %v1611 = vrot.slane %v1610, 2
    %v1612 = vmax.f32 %v1610, %v1611
    %v1613 = vrot.slane %v1612, 1
    %v1614 = vmax.f32 %v1612, %v1613
    %1615 = vset.pattern.permute.xlu0 7
    %1616 = vperm.xlu0 %1615, %v1380
    %v1617 = vpop.permute.xlu0 %1616
    %1618 = vset.pattern.permute.xlu0 7
    %1619 = vperm.xlu0 %1618, %v1381
    %v1620 = vpop.permute.xlu0 %1619
    %1621 = vset.pattern.permute.xlu0 7
    %1622 = vperm.xlu0 %1621, %v1382
    %v1623 = vpop.permute.xlu0 %1622
    %1624 = vset.pattern.permute.xlu0 7
    %1625 = vperm.xlu0 %1624, %v1383
    %v1626 = vpop.permute.xlu0 %1625
    %vm1627 = vcmp.eq.s32.totalorder %v1617, 1
    %vm1628 = vcmp.eq.s32.totalorder %v1620, 1
    %vm1629 = vcmp.eq.s32.totalorder %v1623, 1
    %vm1630 = vcmp.eq.s32.totalorder %v1626, 1
    %v1631 = vsel %vm1627, %v1376, -1e+30
    %v1632 = vsel %vm1628, %v1377, -1e+30
    %v1633 = vsel %vm1629, %v1378, -1e+30
    %v1634 = vsel %vm1630, %v1379, -1e+30
    %v1635 = vsel %vm302, %v1631, -inf
    %v1636 = vsel %vm302, %v1632, -inf
    %v1637 = vsel %vm302, %v1633, -inf
    %v1638 = vsel %vm302, %v1634, -inf
    %v1639 = vmax.f32 %v1635, %v1636
    %v1640 = vmax.f32 %v1637, %v1638
    %v1641 = vmax.f32 %v1639, %v1640
    %v1642 = vrot.slane %v1641, 4
    %v1643 = vmax.f32 %v1641, %v1642
    %v1644 = vrot.slane %v1643, 2
    %v1645 = vmax.f32 %v1643, %v1644
    %v1646 = vrot.slane %v1645, 1
    %v1647 = vmax.f32 %v1645, %v1646
    %vm1648 = vcmask 1040384
    %v1649 = vsel %vm1648, %v1416, %v1449
    %vm1650 = vcmask 1041408
    %v1651 = vsel %vm1650, %v1649, %v1482
    %vm1652 = vcmask 1042432
    %v1653 = vsel %vm1652, %v1651, %v1515
    %v1654 = vsel %vm204, %v1653, %v1548
    %v1655 = vsel %vm1287, %v1654, %v1581
    %vm1656 = vcmask 1045504
    %v1657 = vsel %vm1656, %v1655, %v1614
    %vm1658 = vcmask 1046528
    %v1659 = vsel %vm1658, %v1657, %v1647
    %vm1660 = vcmask 64512
    %v1662 = vsel %vm1660, %v1254, 0
    %v1665 = vsel %vm1660, %v1255, 0
    %v1668 = vsel %vm1660, %v1256, 0
    %v1671 = vsel %vm1660, %v1257, 0
    %1673 = vmatprep.subr.mxu0 0.0
    %1674 = vmatpush1.msra.mxu0 0.0
    %1675 = vmatprep.subr.mxu0 0.0
    %1676 = vmatpush1.msra.mxu0 0.0
    %1677 = vmatprep.subr.mxu0 0.0
    %1678 = vmatpush1.msra.mxu0 0.0
    %1679 = vmatprep.subr.mxu0 0.0
    %1680 = vmatpush1.msra.mxu0 0.0
    %1681 = vmatprep.subr.mxu0 0.0
    %1682 = vmatpush1.msra.mxu0 0.0
    %1683 = vmatprep.subr.mxu0 0.0
    %1684 = vmatpush1.msra.mxu0 0.0
    %1685 = vmatprep.subr.mxu0 0.0
    %1686 = vmatpush1.msra.mxu0 0.0
    %1687 = vmatprep.subr.mxu0 0.0
    %1688 = vmatpush1.msra.mxu0 0.0
    %1689 = vmatprep.subr.mxu0 0.0
    %1690 = vmatpush1.msra.mxu0 0.0
    %1691 = vmatprep.subr.mxu0 0.0
    %1692 = vmatpush1.msra.mxu0 0.0
    %1693 = vmatprep.subr.mxu0 0.0
    %1694 = vmatpush1.msra.mxu0 0.0
    %1695 = vmatprep.subr.mxu0 0.0
    %1696 = vmatpush1.msra.mxu0 0.0
    %1697 = vmatprep.subr.mxu0 0.0
    %1698 = vmatpush1.msra.mxu0 0.0
    %1699 = vmatprep.subr.mxu0 0.0
    %1700 = vmatpush1.msra.mxu0 0.0
    %1701 = vmatprep.subr.mxu0 0.0
    %1702 = vmatpush1.msra.mxu0 0.0
    %1703 = vmatprep.subr.mxu0 0.0
    %1704 = vmatpush1.msra.mxu0 %v1659
    %1705 = vmatprep.subr.mxu0 0.0
    %1706 = vmatpush2.msra.mxu0 0.0
    %1707 = vmatprep.subr.mxu0 0.0
    %1708 = vmatpush2.msra.mxu0 0.0
    %1709 = vmatprep.subr.mxu0 0.0
    %1710 = vmatpush2.msra.mxu0 0.0
    %1711 = vmatprep.subr.mxu0 0.0
    %1712 = vmatpush2.msra.mxu0 0.0
    %1713 = vmatprep.subr.mxu0 0.0
    %1714 = vmatpush2.msra.mxu0 0.0
    %1715 = vmatprep.subr.mxu0 0.0
    %1716 = vmatpush2.msra.mxu0 0.0
    %1717 = vmatprep.subr.mxu0 0.0
    %1718 = vmatpush2.msra.mxu0 0.0
    %1719 = vmatprep.subr.mxu0 0.0
    %1720 = vmatpush2.msra.mxu0 0.0
    %1721 = vmatprep.subr.mxu0 0.0
    %1722 = vmatpush2.msra.mxu0 0.0
    %1723 = vmatprep.subr.mxu0 0.0
    %1724 = vmatpush2.msra.mxu0 0.0
    %1725 = vmatprep.subr.mxu0 0.0
    %1726 = vmatpush2.msra.mxu0 0.0
    %1727 = vmatprep.subr.mxu0 0.0
    %1728 = vmatpush2.msra.mxu0 0.0
    %1729 = vmatprep.subr.mxu0 0.0
    %1730 = vmatpush2.msra.mxu0 0.0
    %1731 = vmatprep.subr.mxu0 0.0
    %1732 = vmatpush2.msra.mxu0 0.0
    %1733 = vmatprep.subr.mxu0 0.0
    %1734 = vmatpush2.msra.mxu0 0.0
    %1735 = vmatprep.subr.mxu0 0.0
    %1736 = vmatpush2.msra.mxu0 0.0
    %1737 = vmatprep.mubr.f32.mxu0 0.0
    %1738 = vmatmul.mubr.f32.gmra.mxu0 %v1662
    %v1739 = vpop.f32.mrf.mxu0
    %v1740 = vadd.f32 0.0, %v1739
    %v1741 = vpop.f32.mrf.mxu0
    %1742 = vmatprep.mubr.f32.mxu0 0.0
    %1743 = vmatmul.mubr.f32.gmra.mxu0 %v1665
    %v1744 = vpop.f32.mrf.mxu0
    %v1745 = vadd.f32 0.0, %v1744
    %v1746 = vpop.f32.mrf.mxu0
    %1747 = vmatprep.mubr.f32.mxu0 0.0
    %1748 = vmatmul.mubr.f32.gmra.mxu0 %v1668
    %v1749 = vpop.f32.mrf.mxu0
    %v1750 = vadd.f32 0.0, %v1749
    %v1751 = vpop.f32.mrf.mxu0
    %1752 = vmatprep.mubr.f32.mxu0 0.0
    %1753 = vmatmul.mubr.f32.gmra.mxu0 %v1671
    %v1754 = vpop.f32.mrf.mxu0
    %v1755 = vadd.f32 0.0, %v1754
    %v1756 = vpop.f32.mrf.mxu0
    %1757 = vdwg.mxu0
    %v1758 = vld [vmem:[#allocation10] sm:$0xff]
    %v1759 = vld [vmem:[#allocation10 + $0x8] sm:$0xff]
    %v1760 = vld [vmem:[#allocation10 + $0x10] sm:$0xff]
    %v1761 = vld [vmem:[#allocation10 + $0x18] sm:$0xff]
    %v1762 = vld [vmem:[#allocation10 + $0x20] sm:$0xff]
    %v1763 = vld [vmem:[#allocation10 + $0x28] sm:$0xff]
    %v1764 = vld [vmem:[#allocation10 + $0x30] sm:$0xff]
    %v1765 = vld [vmem:[#allocation10 + $0x38] sm:$0xff]
    %v1766 = vld [vmem:[#allocation10 + $0x40] sm:$0xff]
    %v1767 = vld [vmem:[#allocation10 + $0x48] sm:$0xff]
    %v1768 = vld [vmem:[#allocation10 + $0x50] sm:$0xff]
    %v1769 = vld [vmem:[#allocation10 + $0x58] sm:$0xff]
    %v1770 = vld [vmem:[#allocation10 + $0x60] sm:$0xff]
    %v1771 = vld [vmem:[#allocation10 + $0x68] sm:$0xff]
    %v1772 = vld [vmem:[#allocation10 + $0x70] sm:$0xff]
    %v1773 = vld [vmem:[#allocation10 + $0x78] sm:$0xff]
    %v1775 = vsel %vm302, %v1740, 0
    %v1778 = vsel %vm302, %v1745, 0
    %v1781 = vsel %vm302, %v1750, 0
    %v1784 = vsel %vm302, %v1755, 0
    %1786 = vmatprep.subr.mxu0 0.0
    %1787 = vmatpush1.msra.mxu0 0.0
    %1788 = vmatprep.subr.mxu0 0.0
    %1789 = vmatpush1.msra.mxu0 0.0
    %1790 = vmatprep.subr.mxu0 0.0
    %1791 = vmatpush1.msra.mxu0 0.0
    %1792 = vmatprep.subr.mxu0 0.0
    %1793 = vmatpush1.msra.mxu0 0.0
    %1794 = vmatprep.subr.mxu0 0.0
    %1795 = vmatpush1.msra.mxu0 0.0
    %1796 = vmatprep.subr.mxu0 0.0
    %1797 = vmatpush1.msra.mxu0 0.0
    %1798 = vmatprep.subr.mxu0 0.0
    %1799 = vmatpush1.msra.mxu0 0.0
    %1800 = vmatprep.subr.mxu0 0.0
    %1801 = vmatpush1.msra.mxu0 0.0
    %1802 = vmatprep.subr.mxu0 0.0
    %1803 = vmatpush1.msra.mxu0 %v1773
    %1804 = vmatprep.subr.mxu0 0.0
    %1805 = vmatpush1.msra.mxu0 %v1772
    %1806 = vmatprep.subr.mxu0 0.0
    %1807 = vmatpush1.msra.mxu0 %v1771
    %1808 = vmatprep.subr.mxu0 0.0
    %1809 = vmatpush1.msra.mxu0 %v1770
    %1810 = vmatprep.subr.mxu0 0.0
    %1811 = vmatpush1.msra.mxu0 %v1769
    %1812 = vmatprep.subr.mxu0 0.0
    %1813 = vmatpush1.msra.mxu0 %v1768
    %1814 = vmatprep.subr.mxu0 0.0
    %1815 = vmatpush1.msra.mxu0 %v1767
    %1816 = vmatprep.subr.mxu0 0.0
    %1817 = vmatpush1.msra.mxu0 %v1766
    %1818 = vmatprep.subr.mxu0 0.0
    %1819 = vmatpush2.msra.mxu0 0.0
    %1820 = vmatprep.subr.mxu0 0.0
    %1821 = vmatpush2.msra.mxu0 0.0
    %1822 = vmatprep.subr.mxu0 0.0
    %1823 = vmatpush2.msra.mxu0 0.0
    %1824 = vmatprep.subr.mxu0 0.0
    %1825 = vmatpush2.msra.mxu0 0.0
    %1826 = vmatprep.subr.mxu0 0.0
    %1827 = vmatpush2.msra.mxu0 0.0
    %1828 = vmatprep.subr.mxu0 0.0
    %1829 = vmatpush2.msra.mxu0 0.0
    %1830 = vmatprep.subr.mxu0 0.0
    %1831 = vmatpush2.msra.mxu0 0.0
    %1832 = vmatprep.subr.mxu0 0.0
    %1833 = vmatpush2.msra.mxu0 0.0
    %1834 = vmatprep.subr.mxu0 0.0
    %1835 = vmatpush2.msra.mxu0 0.0
    %1836 = vmatprep.subr.mxu0 0.0
    %1837 = vmatpush2.msra.mxu0 0.0
    %1838 = vmatprep.subr.mxu0 0.0
    %1839 = vmatpush2.msra.mxu0 0.0
    %1840 = vmatprep.subr.mxu0 0.0
    %1841 = vmatpush2.msra.mxu0 0.0
    %1842 = vmatprep.subr.mxu0 0.0
    %1843 = vmatpush2.msra.mxu0 0.0
    %1844 = vmatprep.subr.mxu0 0.0
    %1845 = vmatpush2.msra.mxu0 0.0
    %1846 = vmatprep.subr.mxu0 0.0
    %1847 = vmatpush2.msra.mxu0 0.0
    %1848 = vmatprep.subr.mxu0 0.0
    %1849 = vmatpush2.msra.mxu0 0.0
    %1850 = vmatprep.mubr.f32.mxu0 0.0
    %1851 = vmatmul.mubr.f32.gmra.mxu0 %v1775
    %v1852 = vpop.f32.mrf.mxu0
    %v1853 = vadd.f32 0.0, %v1852
    %v1854 = vpop.f32.mrf.mxu0
    %1855 = vmatprep.mubr.f32.mxu0 0.0
    %1856 = vmatmul.mubr.f32.gmra.mxu0 %v1778
    %v1857 = vpop.f32.mrf.mxu0
    %v1858 = vadd.f32 0.0, %v1857
    %v1859 = vpop.f32.mrf.mxu0
    %1860 = vmatprep.mubr.f32.mxu0 0.0
    %1861 = vmatmul.mubr.f32.gmra.mxu0 %v1781
    %v1862 = vpop.f32.mrf.mxu0
    %v1863 = vadd.f32 0.0, %v1862
    %v1864 = vpop.f32.mrf.mxu0
    %1865 = vmatprep.mubr.f32.mxu0 0.0
    %1866 = vmatmul.mubr.f32.gmra.mxu0 %v1784
    %v1867 = vpop.f32.mrf.mxu0
    %v1868 = vadd.f32 0.0, %v1867
    %v1869 = vpop.f32.mrf.mxu0
    %1870 = vdwg.mxu0
    %v1872 = vsel %vm302, %v1376, 0
    %v1875 = vsel %vm302, %v1377, 0
    %v1878 = vsel %vm302, %v1378, 0
    %v1881 = vsel %vm302, %v1379, 0
    %1883 = vmatprep.subr.mxu0 0.0
    %1884 = vmatpush1.msra.mxu0 0.0
    %1885 = vmatprep.subr.mxu0 0.0
    %1886 = vmatpush1.msra.mxu0 0.0
    %1887 = vmatprep.subr.mxu0 0.0
    %1888 = vmatpush1.msra.mxu0 0.0
    %1889 = vmatprep.subr.mxu0 0.0
    %1890 = vmatpush1.msra.mxu0 0.0
    %1891 = vmatprep.subr.mxu0 0.0
    %1892 = vmatpush1.msra.mxu0 0.0
    %1893 = vmatprep.subr.mxu0 0.0
    %1894 = vmatpush1.msra.mxu0 0.0
    %1895 = vmatprep.subr.mxu0 0.0
    %1896 = vmatpush1.msra.mxu0 0.0
    %1897 = vmatprep.subr.mxu0 0.0
    %1898 = vmatpush1.msra.mxu0 0.0
    %1899 = vmatprep.subr.mxu0 0.0
    %1900 = vmatpush1.msra.mxu0 %v1765
    %1901 = vmatprep.subr.mxu0 0.0
    %1902 = vmatpush1.msra.mxu0 %v1764
    %1903 = vmatprep.subr.mxu0 0.0
    %1904 = vmatpush1.msra.mxu0 %v1763
    %1905 = vmatprep.subr.mxu0 0.0
    %1906 = vmatpush1.msra.mxu0 %v1762
    %1907 = vmatprep.subr.mxu0 0.0
    %1908 = vmatpush1.msra.mxu0 %v1761
    %1909 = vmatprep.subr.mxu0 0.0
    %1910 = vmatpush1.msra.mxu0 %v1760
    %1911 = vmatprep.subr.mxu0 0.0
    %1912 = vmatpush1.msra.mxu0 %v1759
    %1913 = vmatprep.subr.mxu0 0.0
    %1914 = vmatpush1.msra.mxu0 %v1758
    %1915 = vmatprep.subr.mxu0 0.0
    %1916 = vmatpush2.msra.mxu0 0.0
    %1917 = vmatprep.subr.mxu0 0.0
    %1918 = vmatpush2.msra.mxu0 0.0
    %1919 = vmatprep.subr.mxu0 0.0
    %1920 = vmatpush2.msra.mxu0 0.0
    %1921 = vmatprep.subr.mxu0 0.0
    %1922 = vmatpush2.msra.mxu0 0.0
    %1923 = vmatprep.subr.mxu0 0.0
    %1924 = vmatpush2.msra.mxu0 0.0
    %1925 = vmatprep.subr.mxu0 0.0
    %1926 = vmatpush2.msra.mxu0 0.0
    %1927 = vmatprep.subr.mxu0 0.0
    %1928 = vmatpush2.msra.mxu0 0.0
    %1929 = vmatprep.subr.mxu0 0.0
    %1930 = vmatpush2.msra.mxu0 0.0
    %1931 = vmatprep.subr.mxu0 0.0
    %1932 = vmatpush2.msra.mxu0 0.0
    %1933 = vmatprep.subr.mxu0 0.0
    %1934 = vmatpush2.msra.mxu0 0.0
    %1935 = vmatprep.subr.mxu0 0.0
    %1936 = vmatpush2.msra.mxu0 0.0
    %1937 = vmatprep.subr.mxu0 0.0
    %1938 = vmatpush2.msra.mxu0 0.0
    %1939 = vmatprep.subr.mxu0 0.0
    %1940 = vmatpush2.msra.mxu0 0.0
    %1941 = vmatprep.subr.mxu0 0.0
    %1942 = vmatpush2.msra.mxu0 0.0
    %1943 = vmatprep.subr.mxu0 0.0
    %1944 = vmatpush2.msra.mxu0 0.0
    %1945 = vmatprep.subr.mxu0 0.0
    %1946 = vmatpush2.msra.mxu0 0.0
    %1947 = vmatprep.mubr.f32.mxu0 0.0
    %1948 = vmatmul.mubr.f32.gmra.mxu0 %v1872
    %v1949 = vpop.f32.mrf.mxu0
    %v1950 = vadd.f32 %v1853, %v1949
    %v1951 = vpop.f32.mrf.mxu0
    %1952 = vmatprep.mubr.f32.mxu0 0.0
    %1953 = vmatmul.mubr.f32.gmra.mxu0 %v1875
    %v1954 = vpop.f32.mrf.mxu0
    %v1955 = vadd.f32 %v1858, %v1954
    %v1956 = vpop.f32.mrf.mxu0
    %1957 = vmatprep.mubr.f32.mxu0 0.0
    %1958 = vmatmul.mubr.f32.gmra.mxu0 %v1878
    %v1959 = vpop.f32.mrf.mxu0
    %v1960 = vadd.f32 %v1863, %v1959
    %v1961 = vpop.f32.mrf.mxu0
    %1962 = vmatprep.mubr.f32.mxu0 0.0
    %1963 = vmatmul.mubr.f32.gmra.mxu0 %v1881
    %v1964 = vpop.f32.mrf.mxu0
    %v1965 = vadd.f32 %v1868, %v1964
    %v1966 = vpop.f32.mrf.mxu0
    %1967 = vdwg.mxu0
    %v1968 = vld [vmem:[%s11] sm:$0x1]
    %v1970 = vlaneseq
    %v1971 = vshrl.u32 %v1970, 7
    %v1972 = vsub.s32 0, %v1971
    %v1973 = vrot.slane %v1968, %v1972
    %v1975 = vadd.f32 %v1950, %v1973
    %v1976 = vadd.f32 %v1955, %v1973
    %v1977 = vadd.f32 %v1960, %v1973
    %v1978 = vadd.f32 %v1965, %v1973
    %v1979 = vmax.f32 %v1975, 0.0
    %v1980 = vmax.f32 %v1976, 0.0
    %v1981 = vmax.f32 %v1977, 0.0
    %v1982 = vmax.f32 %v1978, 0.0
    %v1983 = vsel %vm1396, %v1979, -1e+30
    %v1984 = vsel %vm1397, %v1980, -1e+30
    %v1985 = vsel %vm1398, %v1981, -1e+30
    %v1986 = vsel %vm1399, %v1982, -1e+30
    %v1987 = vsel %vm302, %v1983, -inf
    %v1988 = vsel %vm302, %v1984, -inf
    %v1989 = vsel %vm302, %v1985, -inf
    %v1990 = vsel %vm302, %v1986, -inf
    %v1991 = vmax.f32 %v1987, %v1988
    %v1992 = vmax.f32 %v1989, %v1990
    %v1993 = vmax.f32 %v1991, %v1992
    %v1994 = vrot.slane %v1993, 4
    %v1995 = vmax.f32 %v1993, %v1994
    %v1996 = vrot.slane %v1995, 2
    %v1997 = vmax.f32 %v1995, %v1996
    %v1998 = vrot.slane %v1997, 1
    %v1999 = vmax.f32 %v1997, %v1998
    %v2000 = vsel %vm1429, %v1979, -1e+30
    %v2001 = vsel %vm1430, %v1980, -1e+30
    %v2002 = vsel %vm1431, %v1981, -1e+30
    %v2003 = vsel %vm1432, %v1982, -1e+30
    %v2004 = vsel %vm302, %v2000, -inf
    %v2005 = vsel %vm302, %v2001, -inf
    %v2006 = vsel %vm302, %v2002, -inf
    %v2007 = vsel %vm302, %v2003, -inf
    %v2008 = vmax.f32 %v2004, %v2005
    %v2009 = vmax.f32 %v2006, %v2007
    %v2010 = vmax.f32 %v2008, %v2009
    %v2011 = vrot.slane %v2010, 4
    %v2012 = vmax.f32 %v2010, %v2011
    %v2013 = vrot.slane %v2012, 2
    %v2014 = vmax.f32 %v2012, %v2013
    %v2015 = vrot.slane %v2014, 1
    %v2016 = vmax.f32 %v2014, %v2015
    %v2017 = vsel %vm1462, %v1979, -1e+30
    %v2018 = vsel %vm1463, %v1980, -1e+30
    %v2019 = vsel %vm1464, %v1981, -1e+30
    %v2020 = vsel %vm1465, %v1982, -1e+30
    %v2021 = vsel %vm302, %v2017, -inf
    %v2022 = vsel %vm302, %v2018, -inf
    %v2023 = vsel %vm302, %v2019, -inf
    %v2024 = vsel %vm302, %v2020, -inf
    %v2025 = vmax.f32 %v2021, %v2022
    %v2026 = vmax.f32 %v2023, %v2024
    %v2027 = vmax.f32 %v2025, %v2026
    %v2028 = vrot.slane %v2027, 4
    %v2029 = vmax.f32 %v2027, %v2028
    %v2030 = vrot.slane %v2029, 2
    %v2031 = vmax.f32 %v2029, %v2030
    %v2032 = vrot.slane %v2031, 1
    %v2033 = vmax.f32 %v2031, %v2032
    %v2034 = vsel %vm1495, %v1979, -1e+30
    %v2035 = vsel %vm1496, %v1980, -1e+30
    %v2036 = vsel %vm1497, %v1981, -1e+30
    %v2037 = vsel %vm1498, %v1982, -1e+30
    %v2038 = vsel %vm302, %v2034, -inf
    %v2039 = vsel %vm302, %v2035, -inf
    %v2040 = vsel %vm302, %v2036, -inf
    %v2041 = vsel %vm302, %v2037, -inf
    %v2042 = vmax.f32 %v2038, %v2039
    %v2043 = vmax.f32 %v2040, %v2041
    %v2044 = vmax.f32 %v2042, %v2043
    %v2045 = vrot.slane %v2044, 4
    %v2046 = vmax.f32 %v2044, %v2045
    %v2047 = vrot.slane %v2046, 2
    %v2048 = vmax.f32 %v2046, %v2047
    %v2049 = vrot.slane %v2048, 1
    %v2050 = vmax.f32 %v2048, %v2049
    %v2051 = vsel %vm1528, %v1979, -1e+30
    %v2052 = vsel %vm1529, %v1980, -1e+30
    %v2053 = vsel %vm1530, %v1981, -1e+30
    %v2054 = vsel %vm1531, %v1982, -1e+30
    %v2055 = vsel %vm302, %v2051, -inf
    %v2056 = vsel %vm302, %v2052, -inf
    %v2057 = vsel %vm302, %v2053, -inf
    %v2058 = vsel %vm302, %v2054, -inf
    %v2059 = vmax.f32 %v2055, %v2056
    %v2060 = vmax.f32 %v2057, %v2058
    %v2061 = vmax.f32 %v2059, %v2060
    %v2062 = vrot.slane %v2061, 4
    %v2063 = vmax.f32 %v2061, %v2062
    %v2064 = vrot.slane %v2063, 2
    %v2065 = vmax.f32 %v2063, %v2064
    %v2066 = vrot.slane %v2065, 1
    %v2067 = vmax.f32 %v2065, %v2066
    %v2068 = vsel %vm1561, %v1979, -1e+30
    %v2069 = vsel %vm1562, %v1980, -1e+30
    %v2070 = vsel %vm1563, %v1981, -1e+30
    %v2071 = vsel %vm1564, %v1982, -1e+30
    %v2072 = vsel %vm302, %v2068, -inf
    %v2073 = vsel %vm302, %v2069, -inf
    %v2074 = vsel %vm302, %v2070, -inf
    %v2075 = vsel %vm302, %v2071, -inf
    %v2076 = vmax.f32 %v2072, %v2073
    %v2077 = vmax.f32 %v2074, %v2075
    %v2078 = vmax.f32 %v2076, %v2077
    %v2079 = vrot.slane %v2078, 4
    %v2080 = vmax.f32 %v2078, %v2079
    %v2081 = vrot.slane %v2080, 2
    %v2082 = vmax.f32 %v2080, %v2081
    %v2083 = vrot.slane %v2082, 1
    %v2084 = vmax.f32 %v2082, %v2083
    %v2085 = vsel %vm1594, %v1979, -1e+30
    %v2086 = vsel %vm1595, %v1980, -1e+30
    %v2087 = vsel %vm1596, %v1981, -1e+30
    %v2088 = vsel %vm1597, %v1982, -1e+30
    %v2089 = vsel %vm302, %v2085, -inf
    %v2090 = vsel %vm302, %v2086, -inf
    %v2091 = vsel %vm302, %v2087, -inf
    %v2092 = vsel %vm302, %v2088, -inf
    %v2093 = vmax.f32 %v2089, %v2090
    %v2094 = vmax.f32 %v2091, %v2092
    %v2095 = vmax.f32 %v2093, %v2094
    %v2096 = vrot.slane %v2095, 4
    %v2097 = vmax.f32 %v2095, %v2096
    %v2098 = vrot.slane %v2097, 2
    %v2099 = vmax.f32 %v2097, %v2098
    %v2100 = vrot.slane %v2099, 1
    %v2101 = vmax.f32 %v2099, %v2100
    %v2102 = vsel %vm1627, %v1979, -1e+30
    %v2103 = vsel %vm1628, %v1980, -1e+30
    %v2104 = vsel %vm1629, %v1981, -1e+30
    %v2105 = vsel %vm1630, %v1982, -1e+30
    %v2106 = vsel %vm302, %v2102, -inf
    %v2107 = vsel %vm302, %v2103, -inf
    %v2108 = vsel %vm302, %v2104, -inf
    %v2109 = vsel %vm302, %v2105, -inf
    %v2110 = vmax.f32 %v2106, %v2107
    %v2111 = vmax.f32 %v2108, %v2109
    %v2112 = vmax.f32 %v2110, %v2111
    %v2113 = vrot.slane %v2112, 4
    %v2114 = vmax.f32 %v2112, %v2113
    %v2115 = vrot.slane %v2114, 2
    %v2116 = vmax.f32 %v2114, %v2115
    %v2117 = vrot.slane %v2116, 1
    %v2118 = vmax.f32 %v2116, %v2117
    %v2119 = vsel %vm1648, %v1999, %v2016
    %v2120 = vsel %vm1650, %v2119, %v2033
    %v2121 = vsel %vm1652, %v2120, %v2050
    %v2122 = vsel %vm204, %v2121, %v2067
    %v2123 = vsel %vm1287, %v2122, %v2084
    %v2124 = vsel %vm1656, %v2123, %v2101
    %v2125 = vsel %vm1658, %v2124, %v2118
    %2126 = vmatprep.subr.mxu0 0.0
    %2127 = vmatpush1.msra.mxu0 0.0
    %2128 = vmatprep.subr.mxu0 0.0
    %2129 = vmatpush1.msra.mxu0 0.0
    %2130 = vmatprep.subr.mxu0 0.0
    %2131 = vmatpush1.msra.mxu0 0.0
    %2132 = vmatprep.subr.mxu0 0.0
    %2133 = vmatpush1.msra.mxu0 0.0
    %2134 = vmatprep.subr.mxu0 0.0
    %2135 = vmatpush1.msra.mxu0 0.0
    %2136 = vmatprep.subr.mxu0 0.0
    %2137 = vmatpush1.msra.mxu0 0.0
    %2138 = vmatprep.subr.mxu0 0.0
    %2139 = vmatpush1.msra.mxu0 0.0
    %2140 = vmatprep.subr.mxu0 0.0
    %2141 = vmatpush1.msra.mxu0 0.0
    %2142 = vmatprep.subr.mxu0 0.0
    %2143 = vmatpush1.msra.mxu0 0.0
    %2144 = vmatprep.subr.mxu0 0.0
    %2145 = vmatpush1.msra.mxu0 0.0
    %2146 = vmatprep.subr.mxu0 0.0
    %2147 = vmatpush1.msra.mxu0 0.0
    %2148 = vmatprep.subr.mxu0 0.0
    %2149 = vmatpush1.msra.mxu0 0.0
    %2150 = vmatprep.subr.mxu0 0.0
    %2151 = vmatpush1.msra.mxu0 0.0
    %2152 = vmatprep.subr.mxu0 0.0
    %2153 = vmatpush1.msra.mxu0 0.0
    %2154 = vmatprep.subr.mxu0 0.0
    %2155 = vmatpush1.msra.mxu0 0.0
    %2156 = vmatprep.subr.mxu0 0.0
    %2157 = vmatpush1.msra.mxu0 %v2125
    %2158 = vmatprep.subr.mxu0 0.0
    %2159 = vmatpush2.msra.mxu0 0.0
    %2160 = vmatprep.subr.mxu0 0.0
    %2161 = vmatpush2.msra.mxu0 0.0
    %2162 = vmatprep.subr.mxu0 0.0
    %2163 = vmatpush2.msra.mxu0 0.0
    %2164 = vmatprep.subr.mxu0 0.0
    %2165 = vmatpush2.msra.mxu0 0.0
    %2166 = vmatprep.subr.mxu0 0.0
    %2167 = vmatpush2.msra.mxu0 0.0
    %2168 = vmatprep.subr.mxu0 0.0
    %2169 = vmatpush2.msra.mxu0 0.0
    %2170 = vmatprep.subr.mxu0 0.0
    %2171 = vmatpush2.msra.mxu0 0.0
    %2172 = vmatprep.subr.mxu0 0.0
    %2173 = vmatpush2.msra.mxu0 0.0
    %2174 = vmatprep.subr.mxu0 0.0
    %2175 = vmatpush2.msra.mxu0 0.0
    %2176 = vmatprep.subr.mxu0 0.0
    %2177 = vmatpush2.msra.mxu0 0.0
    %2178 = vmatprep.subr.mxu0 0.0
    %2179 = vmatpush2.msra.mxu0 0.0
    %2180 = vmatprep.subr.mxu0 0.0
    %2181 = vmatpush2.msra.mxu0 0.0
    %2182 = vmatprep.subr.mxu0 0.0
    %2183 = vmatpush2.msra.mxu0 0.0
    %2184 = vmatprep.subr.mxu0 0.0
    %2185 = vmatpush2.msra.mxu0 0.0
    %2186 = vmatprep.subr.mxu0 0.0
    %2187 = vmatpush2.msra.mxu0 0.0
    %2188 = vmatprep.subr.mxu0 0.0
    %2189 = vmatpush2.msra.mxu0 0.0
    %2190 = vmatprep.mubr.f32.mxu0 0.0
    %2191 = vmatmul.mubr.f32.gmra.mxu0 %v1662
    %v2192 = vpop.f32.mrf.mxu0
    %v2193 = vadd.f32 0.0, %v2192
    %v2194 = vpop.f32.mrf.mxu0
    %2195 = vmatprep.mubr.f32.mxu0 0.0
    %2196 = vmatmul.mubr.f32.gmra.mxu0 %v1665
    %v2197 = vpop.f32.mrf.mxu0
    %v2198 = vadd.f32 0.0, %v2197
    %v2199 = vpop.f32.mrf.mxu0
    %2200 = vmatprep.mubr.f32.mxu0 0.0
    %2201 = vmatmul.mubr.f32.gmra.mxu0 %v1668
    %v2202 = vpop.f32.mrf.mxu0
    %v2203 = vadd.f32 0.0, %v2202
    %v2204 = vpop.f32.mrf.mxu0
    %2205 = vmatprep.mubr.f32.mxu0 0.0
    %2206 = vmatmul.mubr.f32.gmra.mxu0 %v1671
    %v2207 = vpop.f32.mrf.mxu0
    %v2208 = vadd.f32 0.0, %v2207
    %v2209 = vpop.f32.mrf.mxu0
    %2210 = vdwg.mxu0
    %v2211 = vld [vmem:[#allocation12] sm:$0xff]
    %v2212 = vld [vmem:[#allocation12 + $0x8] sm:$0xff]
    %v2213 = vld [vmem:[#allocation12 + $0x10] sm:$0xff]
    %v2214 = vld [vmem:[#allocation12 + $0x18] sm:$0xff]
    %v2215 = vld [vmem:[#allocation12 + $0x20] sm:$0xff]
    %v2216 = vld [vmem:[#allocation12 + $0x28] sm:$0xff]
    %v2217 = vld [vmem:[#allocation12 + $0x30] sm:$0xff]
    %v2218 = vld [vmem:[#allocation12 + $0x38] sm:$0xff]
    %v2219 = vld [vmem:[#allocation12 + $0x40] sm:$0xff]
    %v2220 = vld [vmem:[#allocation12 + $0x48] sm:$0xff]
    %v2221 = vld [vmem:[#allocation12 + $0x50] sm:$0xff]
    %v2222 = vld [vmem:[#allocation12 + $0x58] sm:$0xff]
    %v2223 = vld [vmem:[#allocation12 + $0x60] sm:$0xff]
    %v2224 = vld [vmem:[#allocation12 + $0x68] sm:$0xff]
    %v2225 = vld [vmem:[#allocation12 + $0x70] sm:$0xff]
    %v2226 = vld [vmem:[#allocation12 + $0x78] sm:$0xff]
    %v2228 = vsel %vm302, %v2193, 0
    %v2231 = vsel %vm302, %v2198, 0
    %v2234 = vsel %vm302, %v2203, 0
    %v2237 = vsel %vm302, %v2208, 0
    %2239 = vmatprep.subr.mxu0 0.0
    %2240 = vmatpush1.msra.mxu0 0.0
    %2241 = vmatprep.subr.mxu0 0.0
    %2242 = vmatpush1.msra.mxu0 0.0
    %2243 = vmatprep.subr.mxu0 0.0
    %2244 = vmatpush1.msra.mxu0 0.0
    %2245 = vmatprep.subr.mxu0 0.0
    %2246 = vmatpush1.msra.mxu0 0.0
    %2247 = vmatprep.subr.mxu0 0.0
    %2248 = vmatpush1.msra.mxu0 0.0
    %2249 = vmatprep.subr.mxu0 0.0
    %2250 = vmatpush1.msra.mxu0 0.0
    %2251 = vmatprep.subr.mxu0 0.0
    %2252 = vmatpush1.msra.mxu0 0.0
    %2253 = vmatprep.subr.mxu0 0.0
    %2254 = vmatpush1.msra.mxu0 0.0
    %2255 = vmatprep.subr.mxu0 0.0
    %2256 = vmatpush1.msra.mxu0 %v2226
    %2257 = vmatprep.subr.mxu0 0.0
    %2258 = vmatpush1.msra.mxu0 %v2225
    %2259 = vmatprep.subr.mxu0 0.0
    %2260 = vmatpush1.msra.mxu0 %v2224
    %2261 = vmatprep.subr.mxu0 0.0
    %2262 = vmatpush1.msra.mxu0 %v2223
    %2263 = vmatprep.subr.mxu0 0.0
    %2264 = vmatpush1.msra.mxu0 %v2222
    %2265 = vmatprep.subr.mxu0 0.0
    %2266 = vmatpush1.msra.mxu0 %v2221
    %2267 = vmatprep.subr.mxu0 0.0
    %2268 = vmatpush1.msra.mxu0 %v2220
    %2269 = vmatprep.subr.mxu0 0.0
    %2270 = vmatpush1.msra.mxu0 %v2219
    %2271 = vmatprep.subr.mxu0 0.0
    %2272 = vmatpush2.msra.mxu0 0.0
    %2273 = vmatprep.subr.mxu0 0.0
    %2274 = vmatpush2.msra.mxu0 0.0
    %2275 = vmatprep.subr.mxu0 0.0
    %2276 = vmatpush2.msra.mxu0 0.0
    %2277 = vmatprep.subr.mxu0 0.0
    %2278 = vmatpush2.msra.mxu0 0.0
    %2279 = vmatprep.subr.mxu0 0.0
    %2280 = vmatpush2.msra.mxu0 0.0
    %2281 = vmatprep.subr.mxu0 0.0
    %2282 = vmatpush2.msra.mxu0 0.0
    %2283 = vmatprep.subr.mxu0 0.0
    %2284 = vmatpush2.msra.mxu0 0.0
    %2285 = vmatprep.subr.mxu0 0.0
    %2286 = vmatpush2.msra.mxu0 0.0
    %2287 = vmatprep.subr.mxu0 0.0
    %2288 = vmatpush2.msra.mxu0 0.0
    %2289 = vmatprep.subr.mxu0 0.0
    %2290 = vmatpush2.msra.mxu0 0.0
    %2291 = vmatprep.subr.mxu0 0.0
    %2292 = vmatpush2.msra.mxu0 0.0
    %2293 = vmatprep.subr.mxu0 0.0
    %2294 = vmatpush2.msra.mxu0 0.0
    %2295 = vmatprep.subr.mxu0 0.0
    %2296 = vmatpush2.msra.mxu0 0.0
    %2297 = vmatprep.subr.mxu0 0.0
    %2298 = vmatpush2.msra.mxu0 0.0
    %2299 = vmatprep.subr.mxu0 0.0
    %2300 = vmatpush2.msra.mxu0 0.0
    %2301 = vmatprep.subr.mxu0 0.0
    %2302 = vmatpush2.msra.mxu0 0.0
    %2303 = vmatprep.mubr.f32.mxu0 0.0
    %2304 = vmatmul.mubr.f32.gmra.mxu0 %v2228
    %v2305 = vpop.f32.mrf.mxu0
    %v2306 = vadd.f32 0.0, %v2305
    %v2307 = vpop.f32.mrf.mxu0
    %2308 = vmatprep.mubr.f32.mxu0 0.0
    %2309 = vmatmul.mubr.f32.gmra.mxu0 %v2231
    %v2310 = vpop.f32.mrf.mxu0
    %v2311 = vadd.f32 0.0, %v2310
    %v2312 = vpop.f32.mrf.mxu0
    %2313 = vmatprep.mubr.f32.mxu0 0.0
    %2314 = vmatmul.mubr.f32.gmra.mxu0 %v2234
    %v2315 = vpop.f32.mrf.mxu0
    %v2316 = vadd.f32 0.0, %v2315
    %v2317 = vpop.f32.mrf.mxu0
    %2318 = vmatprep.mubr.f32.mxu0 0.0
    %2319 = vmatmul.mubr.f32.gmra.mxu0 %v2237
    %v2320 = vpop.f32.mrf.mxu0
    %v2321 = vadd.f32 0.0, %v2320
    %v2322 = vpop.f32.mrf.mxu0
    %2323 = vdwg.mxu0
    %v2325 = vsel %vm302, %v1979, 0
    %v2328 = vsel %vm302, %v1980, 0
    %v2331 = vsel %vm302, %v1981, 0
    %v2334 = vsel %vm302, %v1982, 0
    %2336 = vmatprep.subr.mxu0 0.0
    %2337 = vmatpush1.msra.mxu0 0.0
    %2338 = vmatprep.subr.mxu0 0.0
    %2339 = vmatpush1.msra.mxu0 0.0
    %2340 = vmatprep.subr.mxu0 0.0
    %2341 = vmatpush1.msra.mxu0 0.0
    %2342 = vmatprep.subr.mxu0 0.0
    %2343 = vmatpush1.msra.mxu0 0.0
    %2344 = vmatprep.subr.mxu0 0.0
    %2345 = vmatpush1.msra.mxu0 0.0
    %2346 = vmatprep.subr.mxu0 0.0
    %2347 = vmatpush1.msra.mxu0 0.0
    %2348 = vmatprep.subr.mxu0 0.0
    %2349 = vmatpush1.msra.mxu0 0.0
    %2350 = vmatprep.subr.mxu0 0.0
    %2351 = vmatpush1.msra.mxu0 0.0
    %2352 = vmatprep.subr.mxu0 0.0
    %2353 = vmatpush1.msra.mxu0 %v2218
    %2354 = vmatprep.subr.mxu0 0.0
    %2355 = vmatpush1.msra.mxu0 %v2217
    %2356 = vmatprep.subr.mxu0 0.0
    %2357 = vmatpush1.msra.mxu0 %v2216
    %2358 = vmatprep.subr.mxu0 0.0
    %2359 = vmatpush1.msra.mxu0 %v2215
    %2360 = vmatprep.subr.mxu0 0.0
    %2361 = vmatpush1.msra.mxu0 %v2214
    %2362 = vmatprep.subr.mxu0 0.0
    %2363 = vmatpush1.msra.mxu0 %v2213
    %2364 = vmatprep.subr.mxu0 0.0
    %2365 = vmatpush1.msra.mxu0 %v2212
    %2366 = vmatprep.subr.mxu0 0.0
    %2367 = vmatpush1.msra.mxu0 %v2211
    %2368 = vmatprep.subr.mxu0 0.0
    %2369 = vmatpush2.msra.mxu0 0.0
    %2370 = vmatprep.subr.mxu0 0.0
    %2371 = vmatpush2.msra.mxu0 0.0
    %2372 = vmatprep.subr.mxu0 0.0
    %2373 = vmatpush2.msra.mxu0 0.0
    %2374 = vmatprep.subr.mxu0 0.0
    %2375 = vmatpush2.msra.mxu0 0.0
    %2376 = vmatprep.subr.mxu0 0.0
    %2377 = vmatpush2.msra.mxu0 0.0
    %2378 = vmatprep.subr.mxu0 0.0
    %2379 = vmatpush2.msra.mxu0 0.0
    %2380 = vmatprep.subr.mxu0 0.0
    %2381 = vmatpush2.msra.mxu0 0.0
    %2382 = vmatprep.subr.mxu0 0.0
    %2383 = vmatpush2.msra.mxu0 0.0
    %2384 = vmatprep.subr.mxu0 0.0
    %2385 = vmatpush2.msra.mxu0 0.0
    %2386 = vmatprep.subr.mxu0 0.0
    %2387 = vmatpush2.msra.mxu0 0.0
    %2388 = vmatprep.subr.mxu0 0.0
    %2389 = vmatpush2.msra.mxu0 0.0
    %2390 = vmatprep.subr.mxu0 0.0
    %2391 = vmatpush2.msra.mxu0 0.0
    %2392 = vmatprep.subr.mxu0 0.0
    %2393 = vmatpush2.msra.mxu0 0.0
    %2394 = vmatprep.subr.mxu0 0.0
    %2395 = vmatpush2.msra.mxu0 0.0
    %2396 = vmatprep.subr.mxu0 0.0
    %2397 = vmatpush2.msra.mxu0 0.0
    %2398 = vmatprep.subr.mxu0 0.0
    %2399 = vmatpush2.msra.mxu0 0.0
    %2400 = vmatprep.mubr.f32.mxu0 0.0
    %2401 = vmatmul.mubr.f32.gmra.mxu0 %v2325
    %v2402 = vpop.f32.mrf.mxu0
    %v2403 = vadd.f32 %v2306, %v2402
    %v2404 = vpop.f32.mrf.mxu0
    %2405 = vmatprep.mubr.f32.mxu0 0.0
    %2406 = vmatmul.mubr.f32.gmra.mxu0 %v2328
    %v2407 = vpop.f32.mrf.mxu0
    %v2408 = vadd.f32 %v2311, %v2407
    %v2409 = vpop.f32.mrf.mxu0
    %2410 = vmatprep.mubr.f32.mxu0 0.0
    %2411 = vmatmul.mubr.f32.gmra.mxu0 %v2331
    %v2412 = vpop.f32.mrf.mxu0
    %v2413 = vadd.f32 %v2316, %v2412
    %v2414 = vpop.f32.mrf.mxu0
    %2415 = vmatprep.mubr.f32.mxu0 0.0
    %2416 = vmatmul.mubr.f32.gmra.mxu0 %v2334
    %v2417 = vpop.f32.mrf.mxu0
    %v2418 = vadd.f32 %v2321, %v2417
    %v2419 = vpop.f32.mrf.mxu0
    %2420 = vdwg.mxu0
    %v2421 = vld [vmem:[%s13] sm:$0x1]
    %v2423 = vlaneseq
    %v2424 = vshrl.u32 %v2423, 7
    %v2425 = vsub.s32 0, %v2424
    %v2426 = vrot.slane %v2421, %v2425
    %v2428 = vadd.f32 %v2403, %v2426
    %v2429 = vadd.f32 %v2408, %v2426
    %v2430 = vadd.f32 %v2413, %v2426
    %v2431 = vadd.f32 %v2418, %v2426
    %v2432 = vmax.f32 %v2428, 0.0
    %v2433 = vmax.f32 %v2429, 0.0
    %v2434 = vmax.f32 %v2430, 0.0
    %v2435 = vmax.f32 %v2431, 0.0
    %v2436 = vsel %vm1396, %v2432, -1e+30
    %v2437 = vsel %vm1397, %v2433, -1e+30
    %v2438 = vsel %vm1398, %v2434, -1e+30
    %v2439 = vsel %vm1399, %v2435, -1e+30
    %v2440 = vsel %vm302, %v2436, -inf
    %v2441 = vsel %vm302, %v2437, -inf
    %v2442 = vsel %vm302, %v2438, -inf
    %v2443 = vsel %vm302, %v2439, -inf
    %v2444 = vmax.f32 %v2440, %v2441
    %v2445 = vmax.f32 %v2442, %v2443
    %v2446 = vmax.f32 %v2444, %v2445
    %v2447 = vrot.slane %v2446, 4
    %v2448 = vmax.f32 %v2446, %v2447
    %v2449 = vrot.slane %v2448, 2
    %v2450 = vmax.f32 %v2448, %v2449
    %v2451 = vrot.slane %v2450, 1
    %v2452 = vmax.f32 %v2450, %v2451
    %v2453 = vsel %vm1429, %v2432, -1e+30
    %v2454 = vsel %vm1430, %v2433, -1e+30
    %v2455 = vsel %vm1431, %v2434, -1e+30
    %v2456 = vsel %vm1432, %v2435, -1e+30
    %v2457 = vsel %vm302, %v2453, -inf
    %v2458 = vsel %vm302, %v2454, -inf
    %v2459 = vsel %vm302, %v2455, -inf
    %v2460 = vsel %vm302, %v2456, -inf
    %v2461 = vmax.f32 %v2457, %v2458
    %v2462 = vmax.f32 %v2459, %v2460
    %v2463 = vmax.f32 %v2461, %v2462
    %v2464 = vrot.slane %v2463, 4
    %v2465 = vmax.f32 %v2463, %v2464
    %v2466 = vrot.slane %v2465, 2
    %v2467 = vmax.f32 %v2465, %v2466
    %v2468 = vrot.slane %v2467, 1
    %v2469 = vmax.f32 %v2467, %v2468
    %v2470 = vsel %vm1462, %v2432, -1e+30
    %v2471 = vsel %vm1463, %v2433, -1e+30
    %v2472 = vsel %vm1464, %v2434, -1e+30
    %v2473 = vsel %vm1465, %v2435, -1e+30
    %v2474 = vsel %vm302, %v2470, -inf
    %v2475 = vsel %vm302, %v2471, -inf
    %v2476 = vsel %vm302, %v2472, -inf
    %v2477 = vsel %vm302, %v2473, -inf
    %v2478 = vmax.f32 %v2474, %v2475
    %v2479 = vmax.f32 %v2476, %v2477
    %v2480 = vmax.f32 %v2478, %v2479
    %v2481 = vrot.slane %v2480, 4
    %v2482 = vmax.f32 %v2480, %v2481
    %v2483 = vrot.slane %v2482, 2
    %v2484 = vmax.f32 %v2482, %v2483
    %v2485 = vrot.slane %v2484, 1
    %v2486 = vmax.f32 %v2484, %v2485
    %v2487 = vsel %vm1495, %v2432, -1e+30
    %v2488 = vsel %vm1496, %v2433, -1e+30
    %v2489 = vsel %vm1497, %v2434, -1e+30
    %v2490 = vsel %vm1498, %v2435, -1e+30
    %v2491 = vsel %vm302, %v2487, -inf
    %v2492 = vsel %vm302, %v2488, -inf
    %v2493 = vsel %vm302, %v2489, -inf
    %v2494 = vsel %vm302, %v2490, -inf
    %v2495 = vmax.f32 %v2491, %v2492
    %v2496 = vmax.f32 %v2493, %v2494
    %v2497 = vmax.f32 %v2495, %v2496
    %v2498 = vrot.slane %v2497, 4
    %v2499 = vmax.f32 %v2497, %v2498
    %v2500 = vrot.slane %v2499, 2
    %v2501 = vmax.f32 %v2499, %v2500
    %v2502 = vrot.slane %v2501, 1
    %v2503 = vmax.f32 %v2501, %v2502
    %v2504 = vsel %vm1528, %v2432, -1e+30
    %v2505 = vsel %vm1529, %v2433, -1e+30
    %v2506 = vsel %vm1530, %v2434, -1e+30
    %v2507 = vsel %vm1531, %v2435, -1e+30
    %v2508 = vsel %vm302, %v2504, -inf
    %v2509 = vsel %vm302, %v2505, -inf
    %v2510 = vsel %vm302, %v2506, -inf
    %v2511 = vsel %vm302, %v2507, -inf
    %v2512 = vmax.f32 %v2508, %v2509
    %v2513 = vmax.f32 %v2510, %v2511
    %v2514 = vmax.f32 %v2512, %v2513
    %v2515 = vrot.slane %v2514, 4
    %v2516 = vmax.f32 %v2514, %v2515
    %v2517 = vrot.slane %v2516, 2
    %v2518 = vmax.f32 %v2516, %v2517
    %v2519 = vrot.slane %v2518, 1
    %v2520 = vmax.f32 %v2518, %v2519
    %v2521 = vsel %vm1561, %v2432, -1e+30
    %v2522 = vsel %vm1562, %v2433, -1e+30
    %v2523 = vsel %vm1563, %v2434, -1e+30
    %v2524 = vsel %vm1564, %v2435, -1e+30
    %v2525 = vsel %vm302, %v2521, -inf
    %v2526 = vsel %vm302, %v2522, -inf
    %v2527 = vsel %vm302, %v2523, -inf
    %v2528 = vsel %vm302, %v2524, -inf
    %v2529 = vmax.f32 %v2525, %v2526
    %v2530 = vmax.f32 %v2527, %v2528
    %v2531 = vmax.f32 %v2529, %v2530
    %v2532 = vrot.slane %v2531, 4
    %v2533 = vmax.f32 %v2531, %v2532
    %v2534 = vrot.slane %v2533, 2
    %v2535 = vmax.f32 %v2533, %v2534
    %v2536 = vrot.slane %v2535, 1
    %v2537 = vmax.f32 %v2535, %v2536
    %v2538 = vsel %vm1594, %v2432, -1e+30
    %v2539 = vsel %vm1595, %v2433, -1e+30
    %v2540 = vsel %vm1596, %v2434, -1e+30
    %v2541 = vsel %vm1597, %v2435, -1e+30
    %v2542 = vsel %vm302, %v2538, -inf
    %v2543 = vsel %vm302, %v2539, -inf
    %v2544 = vsel %vm302, %v2540, -inf
    %v2545 = vsel %vm302, %v2541, -inf
    %v2546 = vmax.f32 %v2542, %v2543
    %v2547 = vmax.f32 %v2544, %v2545
    %v2548 = vmax.f32 %v2546, %v2547
    %v2549 = vrot.slane %v2548, 4
    %v2550 = vmax.f32 %v2548, %v2549
    %v2551 = vrot.slane %v2550, 2
    %v2552 = vmax.f32 %v2550, %v2551
    %v2553 = vrot.slane %v2552, 1
    %v2554 = vmax.f32 %v2552, %v2553
    %v2555 = vsel %vm1627, %v2432, -1e+30
    %v2556 = vsel %vm1628, %v2433, -1e+30
    %v2557 = vsel %vm1629, %v2434, -1e+30
    %v2558 = vsel %vm1630, %v2435, -1e+30
    %v2559 = vsel %vm302, %v2555, -inf
    %v2560 = vsel %vm302, %v2556, -inf
    %v2561 = vsel %vm302, %v2557, -inf
    %v2562 = vsel %vm302, %v2558, -inf
    %v2563 = vmax.f32 %v2559, %v2560
    %v2564 = vmax.f32 %v2561, %v2562
    %v2565 = vmax.f32 %v2563, %v2564
    %v2566 = vrot.slane %v2565, 4
    %v2567 = vmax.f32 %v2565, %v2566
    %v2568 = vrot.slane %v2567, 2
    %v2569 = vmax.f32 %v2567, %v2568
    %v2570 = vrot.slane %v2569, 1
    %v2571 = vmax.f32 %v2569, %v2570
    %v2572 = vsel %vm1648, %v2452, %v2469
    %v2573 = vsel %vm1650, %v2572, %v2486
    %v2574 = vsel %vm1652, %v2573, %v2503
    %v2575 = vsel %vm204, %v2574, %v2520
    %v2576 = vsel %vm1287, %v2575, %v2537
    %v2577 = vsel %vm1656, %v2576, %v2554
    %v2578 = vsel %vm1658, %v2577, %v2571
    %v2579 = vld [vmem:[%s14] sm:$0xff]
    %v2580 = vld [vmem:[%s14 + $0x8] sm:$0xff]
    %v2581 = vld [vmem:[%s14 + $0x10] sm:$0xff]
    %v2582 = vld [vmem:[%s14 + $0x18] sm:$0xff]
    %v2583 = vld [vmem:[%s14 + $0x20] sm:$0xff]
    %v2584 = vld [vmem:[%s14 + $0x28] sm:$0xff]
    %v2585 = vld [vmem:[%s14 + $0x30] sm:$0xff]
    %v2586 = vld [vmem:[%s14 + $0x38] sm:$0xff]
    %v2587 = vld [vmem:[%s14 + $0x40] sm:$0xff]
    %v2588 = vld [vmem:[%s14 + $0x48] sm:$0xff]
    %v2589 = vld [vmem:[%s14 + $0x50] sm:$0xff]
    %v2590 = vld [vmem:[%s14 + $0x58] sm:$0xff]
    %v2591 = vld [vmem:[%s14 + $0x60] sm:$0xff]
    %v2592 = vld [vmem:[%s14 + $0x68] sm:$0xff]
    %v2593 = vld [vmem:[%s14 + $0x70] sm:$0xff]
    %v2594 = vld [vmem:[%s14 + $0x78] sm:$0xff]
    %v2595 = vld [vmem:[%s16] sm:$0xff]
    %v2596 = vld [vmem:[%s16 + $0x8] sm:$0xff]
    %v2597 = vld [vmem:[%s16 + $0x10] sm:$0xff]
    %v2598 = vld [vmem:[%s16 + $0x18] sm:$0xff]
    %v2599 = vld [vmem:[%s16 + $0x20] sm:$0xff]
    %v2600 = vld [vmem:[%s16 + $0x28] sm:$0xff]
    %v2601 = vld [vmem:[%s16 + $0x30] sm:$0xff]
    %v2602 = vld [vmem:[%s16 + $0x38] sm:$0xff]
    %v2603 = vld [vmem:[%s16 + $0x40] sm:$0xff]
    %v2604 = vld [vmem:[%s16 + $0x48] sm:$0xff]
    %v2605 = vld [vmem:[%s16 + $0x50] sm:$0xff]
    %v2606 = vld [vmem:[%s16 + $0x58] sm:$0xff]
    %v2607 = vld [vmem:[%s16 + $0x60] sm:$0xff]
    %v2608 = vld [vmem:[%s16 + $0x68] sm:$0xff]
    %v2609 = vld [vmem:[%s16 + $0x70] sm:$0xff]
    %v2610 = vld [vmem:[%s16 + $0x78] sm:$0xff]
    %v2611 = vld [vmem:[%s18] sm:$0xff]
    %v2612 = vld [vmem:[%s18 + $0x8] sm:$0xff]
    %v2613 = vld [vmem:[%s18 + $0x10] sm:$0xff]
    %v2614 = vld [vmem:[%s18 + $0x18] sm:$0xff]
    %v2615 = vld [vmem:[%s18 + $0x20] sm:$0xff]
    %v2616 = vld [vmem:[%s18 + $0x28] sm:$0xff]
    %v2617 = vld [vmem:[%s18 + $0x30] sm:$0xff]
    %v2618 = vld [vmem:[%s18 + $0x38] sm:$0xff]
    %v2619 = vld [vmem:[%s18 + $0x40] sm:$0xff]
    %v2620 = vld [vmem:[%s18 + $0x48] sm:$0xff]
    %v2621 = vld [vmem:[%s18 + $0x50] sm:$0xff]
    %v2622 = vld [vmem:[%s18 + $0x58] sm:$0xff]
    %v2623 = vld [vmem:[%s18 + $0x60] sm:$0xff]
    %v2624 = vld [vmem:[%s18 + $0x68] sm:$0xff]
    %v2625 = vld [vmem:[%s18 + $0x70] sm:$0xff]
    %v2626 = vld [vmem:[%s18 + $0x78] sm:$0xff]
    %v2627 = vld [vmem:[%s15] sm:$0x1]
    %v2628 = vld [vmem:[%s17] sm:$0x1]
    %v2629 = vld [vmem:[%s19] sm:$0x1]
    %v2631 = vlaneseq
    %v2632 = vshrl.u32 %v2631, 7
    %v2633 = vsub.s32 0, %v2632
    %v2634 = vrot.slane %v2627, %v2633
    %2636 = vmatprep.subr.mxu0 0.0
    %2637 = vmatpush1.msra.mxu0 %v2594
    %2638 = vmatprep.subr.mxu0 0.0
    %2639 = vmatpush1.msra.mxu0 %v2593
    %2640 = vmatprep.subr.mxu0 0.0
    %2641 = vmatpush1.msra.mxu0 %v2592
    %2642 = vmatprep.subr.mxu0 0.0
    %2643 = vmatpush1.msra.mxu0 %v2591
    %2644 = vmatprep.subr.mxu0 0.0
    %2645 = vmatpush1.msra.mxu0 %v2590
    %2646 = vmatprep.subr.mxu0 0.0
    %2647 = vmatpush1.msra.mxu0 %v2589
    %2648 = vmatprep.subr.mxu0 0.0
    %2649 = vmatpush1.msra.mxu0 %v2588
    %2650 = vmatprep.subr.mxu0 0.0
    %2651 = vmatpush1.msra.mxu0 %v2587
    %2652 = vmatprep.subr.mxu0 0.0
    %2653 = vmatpush1.msra.mxu0 %v2586
    %2654 = vmatprep.subr.mxu0 0.0
    %2655 = vmatpush1.msra.mxu0 %v2585
    %2656 = vmatprep.subr.mxu0 0.0
    %2657 = vmatpush1.msra.mxu0 %v2584
    %2658 = vmatprep.subr.mxu0 0.0
    %2659 = vmatpush1.msra.mxu0 %v2583
    %2660 = vmatprep.subr.mxu0 0.0
    %2661 = vmatpush1.msra.mxu0 %v2582
    %2662 = vmatprep.subr.mxu0 0.0
    %2663 = vmatpush1.msra.mxu0 %v2581
    %2664 = vmatprep.subr.mxu0 0.0
    %2665 = vmatpush1.msra.mxu0 %v2580
    %2666 = vmatprep.subr.mxu0 0.0
    %2667 = vmatpush1.msra.mxu0 %v2579
    %2668 = vmatprep.subr.mxu0 0.0
    %2669 = vmatpush2.msra.mxu0 0.0
    %2670 = vmatprep.subr.mxu0 0.0
    %2671 = vmatpush2.msra.mxu0 0.0
    %2672 = vmatprep.subr.mxu0 0.0
    %2673 = vmatpush2.msra.mxu0 0.0
    %2674 = vmatprep.subr.mxu0 0.0
    %2675 = vmatpush2.msra.mxu0 0.0
    %2676 = vmatprep.subr.mxu0 0.0
    %2677 = vmatpush2.msra.mxu0 0.0
    %2678 = vmatprep.subr.mxu0 0.0
    %2679 = vmatpush2.msra.mxu0 0.0
    %2680 = vmatprep.subr.mxu0 0.0
    %2681 = vmatpush2.msra.mxu0 0.0
    %2682 = vmatprep.subr.mxu0 0.0
    %2683 = vmatpush2.msra.mxu0 0.0
    %2684 = vmatprep.subr.mxu0 0.0
    %2685 = vmatpush2.msra.mxu0 0.0
    %2686 = vmatprep.subr.mxu0 0.0
    %2687 = vmatpush2.msra.mxu0 0.0
    %2688 = vmatprep.subr.mxu0 0.0
    %2689 = vmatpush2.msra.mxu0 0.0
    %2690 = vmatprep.subr.mxu0 0.0
    %2691 = vmatpush2.msra.mxu0 0.0
    %2692 = vmatprep.subr.mxu0 0.0
    %2693 = vmatpush2.msra.mxu0 0.0
    %2694 = vmatprep.subr.mxu0 0.0
    %2695 = vmatpush2.msra.mxu0 0.0
    %2696 = vmatprep.subr.mxu0 0.0
    %2697 = vmatpush2.msra.mxu0 0.0
    %2698 = vmatprep.subr.mxu0 0.0
    %2699 = vmatpush2.msra.mxu0 0.0
    %2700 = vmatprep.mubr.f32.mxu0 0.0
    %2701 = vmatmul.mubr.f32.gmra.mxu0 %v1251
    %v2702 = vpop.f32.mrf.mxu0
    %v2703 = vadd.f32 %v2634, %v2702
    %v2704 = vpop.f32.mrf.mxu0
    %2705 = vdwg.mxu0
    %v2707 = vlaneseq
    %v2708 = vshrl.u32 %v2707, 7
    %v2709 = vsub.s32 0, %v2708
    %v2710 = vrot.slane %v2628, %v2709
    %2712 = vmatprep.subr.mxu0 0.0
    %2713 = vmatpush1.msra.mxu0 %v2610
    %2714 = vmatprep.subr.mxu0 0.0
    %2715 = vmatpush1.msra.mxu0 %v2609
    %2716 = vmatprep.subr.mxu0 0.0
    %2717 = vmatpush1.msra.mxu0 %v2608
    %2718 = vmatprep.subr.mxu0 0.0
    %2719 = vmatpush1.msra.mxu0 %v2607
    %2720 = vmatprep.subr.mxu0 0.0
    %2721 = vmatpush1.msra.mxu0 %v2606
    %2722 = vmatprep.subr.mxu0 0.0
    %2723 = vmatpush1.msra.mxu0 %v2605
    %2724 = vmatprep.subr.mxu0 0.0
    %2725 = vmatpush1.msra.mxu0 %v2604
    %2726 = vmatprep.subr.mxu0 0.0
    %2727 = vmatpush1.msra.mxu0 %v2603
    %2728 = vmatprep.subr.mxu0 0.0
    %2729 = vmatpush1.msra.mxu0 %v2602
    %2730 = vmatprep.subr.mxu0 0.0
    %2731 = vmatpush1.msra.mxu0 %v2601
    %2732 = vmatprep.subr.mxu0 0.0
    %2733 = vmatpush1.msra.mxu0 %v2600
    %2734 = vmatprep.subr.mxu0 0.0
    %2735 = vmatpush1.msra.mxu0 %v2599
    %2736 = vmatprep.subr.mxu0 0.0
    %2737 = vmatpush1.msra.mxu0 %v2598
    %2738 = vmatprep.subr.mxu0 0.0
    %2739 = vmatpush1.msra.mxu0 %v2597
    %2740 = vmatprep.subr.mxu0 0.0
    %2741 = vmatpush1.msra.mxu0 %v2596
    %2742 = vmatprep.subr.mxu0 0.0
    %2743 = vmatpush1.msra.mxu0 %v2595
    %2744 = vmatprep.subr.mxu0 0.0
    %2745 = vmatpush2.msra.mxu0 0.0
    %2746 = vmatprep.subr.mxu0 0.0
    %2747 = vmatpush2.msra.mxu0 0.0
    %2748 = vmatprep.subr.mxu0 0.0
    %2749 = vmatpush2.msra.mxu0 0.0
    %2750 = vmatprep.subr.mxu0 0.0
    %2751 = vmatpush2.msra.mxu0 0.0
    %2752 = vmatprep.subr.mxu0 0.0
    %2753 = vmatpush2.msra.mxu0 0.0
    %2754 = vmatprep.subr.mxu0 0.0
    %2755 = vmatpush2.msra.mxu0 0.0
    %2756 = vmatprep.subr.mxu0 0.0
    %2757 = vmatpush2.msra.mxu0 0.0
    %2758 = vmatprep.subr.mxu0 0.0
    %2759 = vmatpush2.msra.mxu0 0.0
    %2760 = vmatprep.subr.mxu0 0.0
    %2761 = vmatpush2.msra.mxu0 0.0
    %2762 = vmatprep.subr.mxu0 0.0
    %2763 = vmatpush2.msra.mxu0 0.0
    %2764 = vmatprep.subr.mxu0 0.0
    %2765 = vmatpush2.msra.mxu0 0.0
    %2766 = vmatprep.subr.mxu0 0.0
    %2767 = vmatpush2.msra.mxu0 0.0
    %2768 = vmatprep.subr.mxu0 0.0
    %2769 = vmatpush2.msra.mxu0 0.0
    %2770 = vmatprep.subr.mxu0 0.0
    %2771 = vmatpush2.msra.mxu0 0.0
    %2772 = vmatprep.subr.mxu0 0.0
    %2773 = vmatpush2.msra.mxu0 0.0
    %2774 = vmatprep.subr.mxu0 0.0
    %2775 = vmatpush2.msra.mxu0 0.0
    %2776 = vmatprep.mubr.f32.mxu0 0.0
    %2777 = vmatmul.mubr.f32.gmra.mxu0 %v1251
    %v2778 = vpop.f32.mrf.mxu0
    %v2779 = vadd.f32 %v2710, %v2778
    %v2780 = vpop.f32.mrf.mxu0
    %2781 = vdwg.mxu0
    %v2783 = vlaneseq
    %v2784 = vshrl.u32 %v2783, 7
    %v2785 = vsub.s32 0, %v2784
    %v2786 = vrot.slane %v2629, %v2785
    %2788 = vmatprep.subr.mxu0 0.0
    %2789 = vmatpush1.msra.mxu0 %v2626
    %2790 = vmatprep.subr.mxu0 0.0
    %2791 = vmatpush1.msra.mxu0 %v2625
    %2792 = vmatprep.subr.mxu0 0.0
    %2793 = vmatpush1.msra.mxu0 %v2624
    %2794 = vmatprep.subr.mxu0 0.0
    %2795 = vmatpush1.msra.mxu0 %v2623
    %2796 = vmatprep.subr.mxu0 0.0
    %2797 = vmatpush1.msra.mxu0 %v2622
    %2798 = vmatprep.subr.mxu0 0.0
    %2799 = vmatpush1.msra.mxu0 %v2621
    %2800 = vmatprep.subr.mxu0 0.0
    %2801 = vmatpush1.msra.mxu0 %v2620
    %2802 = vmatprep.subr.mxu0 0.0
    %2803 = vmatpush1.msra.mxu0 %v2619
    %2804 = vmatprep.subr.mxu0 0.0
    %2805 = vmatpush1.msra.mxu0 %v2618
    %2806 = vmatprep.subr.mxu0 0.0
    %2807 = vmatpush1.msra.mxu0 %v2617
    %2808 = vmatprep.subr.mxu0 0.0
    %2809 = vmatpush1.msra.mxu0 %v2616
    %2810 = vmatprep.subr.mxu0 0.0
    %2811 = vmatpush1.msra.mxu0 %v2615
    %2812 = vmatprep.subr.mxu0 0.0
    %2813 = vmatpush1.msra.mxu0 %v2614
    %2814 = vmatprep.subr.mxu0 0.0
    %2815 = vmatpush1.msra.mxu0 %v2613
    %2816 = vmatprep.subr.mxu0 0.0
    %2817 = vmatpush1.msra.mxu0 %v2612
    %2818 = vmatprep.subr.mxu0 0.0
    %2819 = vmatpush1.msra.mxu0 %v2611
    %2820 = vmatprep.subr.mxu0 0.0
    %2821 = vmatpush2.msra.mxu0 0.0
    %2822 = vmatprep.subr.mxu0 0.0
    %2823 = vmatpush2.msra.mxu0 0.0
    %2824 = vmatprep.subr.mxu0 0.0
    %2825 = vmatpush2.msra.mxu0 0.0
    %2826 = vmatprep.subr.mxu0 0.0
    %2827 = vmatpush2.msra.mxu0 0.0
    %2828 = vmatprep.subr.mxu0 0.0
    %2829 = vmatpush2.msra.mxu0 0.0
    %2830 = vmatprep.subr.mxu0 0.0
    %2831 = vmatpush2.msra.mxu0 0.0
    %2832 = vmatprep.subr.mxu0 0.0
    %2833 = vmatpush2.msra.mxu0 0.0
    %2834 = vmatprep.subr.mxu0 0.0
    %2835 = vmatpush2.msra.mxu0 0.0
    %2836 = vmatprep.subr.mxu0 0.0
    %2837 = vmatpush2.msra.mxu0 0.0
    %2838 = vmatprep.subr.mxu0 0.0
    %2839 = vmatpush2.msra.mxu0 0.0
    %2840 = vmatprep.subr.mxu0 0.0
    %2841 = vmatpush2.msra.mxu0 0.0
    %2842 = vmatprep.subr.mxu0 0.0
    %2843 = vmatpush2.msra.mxu0 0.0
    %2844 = vmatprep.subr.mxu0 0.0
    %2845 = vmatpush2.msra.mxu0 0.0
    %2846 = vmatprep.subr.mxu0 0.0
    %2847 = vmatpush2.msra.mxu0 0.0
    %2848 = vmatprep.subr.mxu0 0.0
    %2849 = vmatpush2.msra.mxu0 0.0
    %2850 = vmatprep.subr.mxu0 0.0
    %2851 = vmatpush2.msra.mxu0 0.0
    %2852 = vmatprep.mubr.f32.mxu0 0.0
    %2853 = vmatmul.mubr.f32.gmra.mxu0 %v1251
    %v2854 = vpop.f32.mrf.mxu0
    %v2855 = vadd.f32 %v2786, %v2854
    %v2856 = vpop.f32.mrf.mxu0
    %2857 = vdwg.mxu0
    %v2858 = vadd.f32 %v2595, %v2603
    %v2859 = vadd.f32 %v2596, %v2604
    %v2860 = vadd.f32 %v2597, %v2605
    %v2861 = vadd.f32 %v2598, %v2606
    %v2862 = vadd.f32 %v2599, %v2607
    %v2863 = vadd.f32 %v2600, %v2608
    %v2864 = vadd.f32 %v2601, %v2609
    %v2865 = vadd.f32 %v2602, %v2610
    %v2867 = vsel %vm302, %v2578, 0
    %2869 = vmatprep.subr.mxu0 0.0
    %2870 = vmatpush1.msra.mxu0 0.0
    %2871 = vmatprep.subr.mxu0 0.0
    %2872 = vmatpush1.msra.mxu0 0.0
    %2873 = vmatprep.subr.mxu0 0.0
    %2874 = vmatpush1.msra.mxu0 0.0
    %2875 = vmatprep.subr.mxu0 0.0
    %2876 = vmatpush1.msra.mxu0 0.0
    %2877 = vmatprep.subr.mxu0 0.0
    %2878 = vmatpush1.msra.mxu0 0.0
    %2879 = vmatprep.subr.mxu0 0.0
    %2880 = vmatpush1.msra.mxu0 0.0
    %2881 = vmatprep.subr.mxu0 0.0
    %2882 = vmatpush1.msra.mxu0 0.0
    %2883 = vmatprep.subr.mxu0 0.0
    %2884 = vmatpush1.msra.mxu0 0.0
    %2885 = vmatprep.subr.mxu0 0.0
    %2886 = vmatpush1.msra.mxu0 %v2865
    %2887 = vmatprep.subr.mxu0 0.0
    %2888 = vmatpush1.msra.mxu0 %v2864
    %2889 = vmatprep.subr.mxu0 0.0
    %2890 = vmatpush1.msra.mxu0 %v2863
    %2891 = vmatprep.subr.mxu0 0.0
    %2892 = vmatpush1.msra.mxu0 %v2862
    %2893 = vmatprep.subr.mxu0 0.0
    %2894 = vmatpush1.msra.mxu0 %v2861
    %2895 = vmatprep.subr.mxu0 0.0
    %2896 = vmatpush1.msra.mxu0 %v2860
    %2897 = vmatprep.subr.mxu0 0.0
    %2898 = vmatpush1.msra.mxu0 %v2859
    %2899 = vmatprep.subr.mxu0 0.0
    %2900 = vmatpush1.msra.mxu0 %v2858
    %2901 = vmatprep.subr.mxu0 0.0
    %2902 = vmatpush2.msra.mxu0 0.0
    %2903 = vmatprep.subr.mxu0 0.0
    %2904 = vmatpush2.msra.mxu0 0.0
    %2905 = vmatprep.subr.mxu0 0.0
    %2906 = vmatpush2.msra.mxu0 0.0
    %2907 = vmatprep.subr.mxu0 0.0
    %2908 = vmatpush2.msra.mxu0 0.0
    %2909 = vmatprep.subr.mxu0 0.0
    %2910 = vmatpush2.msra.mxu0 0.0
    %2911 = vmatprep.subr.mxu0 0.0
    %2912 = vmatpush2.msra.mxu0 0.0
    %2913 = vmatprep.subr.mxu0 0.0
    %2914 = vmatpush2.msra.mxu0 0.0
    %2915 = vmatprep.subr.mxu0 0.0
    %2916 = vmatpush2.msra.mxu0 0.0
    %2917 = vmatprep.subr.mxu0 0.0
    %2918 = vmatpush2.msra.mxu0 0.0
    %2919 = vmatprep.subr.mxu0 0.0
    %2920 = vmatpush2.msra.mxu0 0.0
    %2921 = vmatprep.subr.mxu0 0.0
    %2922 = vmatpush2.msra.mxu0 0.0
    %2923 = vmatprep.subr.mxu0 0.0
    %2924 = vmatpush2.msra.mxu0 0.0
    %2925 = vmatprep.subr.mxu0 0.0
    %2926 = vmatpush2.msra.mxu0 0.0
    %2927 = vmatprep.subr.mxu0 0.0
    %2928 = vmatpush2.msra.mxu0 0.0
    %2929 = vmatprep.subr.mxu0 0.0
    %2930 = vmatpush2.msra.mxu0 0.0
    %2931 = vmatprep.subr.mxu0 0.0
    %2932 = vmatpush2.msra.mxu0 0.0
    %2933 = vmatprep.mubr.f32.mxu0 0.0
    %2934 = vmatmul.mubr.f32.gmra.mxu0 %v2867
    %v2935 = vpop.f32.mrf.mxu0
    %v2936 = vadd.f32 %v2710, %v2935
    %v2937 = vpop.f32.mrf.mxu0
    %2938 = vdwg.mxu0
    %v2939 = vadd.f32 %v2611, %v2619
    %v2940 = vadd.f32 %v2612, %v2620
    %v2941 = vadd.f32 %v2613, %v2621
    %v2942 = vadd.f32 %v2614, %v2622
    %v2943 = vadd.f32 %v2615, %v2623
    %v2944 = vadd.f32 %v2616, %v2624
    %v2945 = vadd.f32 %v2617, %v2625
    %v2946 = vadd.f32 %v2618, %v2626
    %2947 = vmatprep.subr.mxu0 0.0
    %2948 = vmatpush1.msra.mxu0 0.0
    %2949 = vmatprep.subr.mxu0 0.0
    %2950 = vmatpush1.msra.mxu0 0.0
    %2951 = vmatprep.subr.mxu0 0.0
    %2952 = vmatpush1.msra.mxu0 0.0
    %2953 = vmatprep.subr.mxu0 0.0
    %2954 = vmatpush1.msra.mxu0 0.0
    %2955 = vmatprep.subr.mxu0 0.0
    %2956 = vmatpush1.msra.mxu0 0.0
    %2957 = vmatprep.subr.mxu0 0.0
    %2958 = vmatpush1.msra.mxu0 0.0
    %2959 = vmatprep.subr.mxu0 0.0
    %2960 = vmatpush1.msra.mxu0 0.0
    %2961 = vmatprep.subr.mxu0 0.0
    %2962 = vmatpush1.msra.mxu0 0.0
    %2963 = vmatprep.subr.mxu0 0.0
    %2964 = vmatpush1.msra.mxu0 %v2946
    %2965 = vmatprep.subr.mxu0 0.0
    %2966 = vmatpush1.msra.mxu0 %v2945
    %2967 = vmatprep.subr.mxu0 0.0
    %2968 = vmatpush1.msra.mxu0 %v2944
    %2969 = vmatprep.subr.mxu0 0.0
    %2970 = vmatpush1.msra.mxu0 %v2943
    %2971 = vmatprep.subr.mxu0 0.0
    %2972 = vmatpush1.msra.mxu0 %v2942
    %2973 = vmatprep.subr.mxu0 0.0
    %2974 = vmatpush1.msra.mxu0 %v2941
    %2975 = vmatprep.subr.mxu0 0.0
    %2976 = vmatpush1.msra.mxu0 %v2940
    %2977 = vmatprep.subr.mxu0 0.0
    %2978 = vmatpush1.msra.mxu0 %v2939
    %2979 = vmatprep.subr.mxu0 0.0
    %2980 = vmatpush2.msra.mxu0 0.0
    %2981 = vmatprep.subr.mxu0 0.0
    %2982 = vmatpush2.msra.mxu0 0.0
    %2983 = vmatprep.subr.mxu0 0.0
    %2984 = vmatpush2.msra.mxu0 0.0
    %2985 = vmatprep.subr.mxu0 0.0
    %2986 = vmatpush2.msra.mxu0 0.0
    %2987 = vmatprep.subr.mxu0 0.0
    %2988 = vmatpush2.msra.mxu0 0.0
    %2989 = vmatprep.subr.mxu0 0.0
    %2990 = vmatpush2.msra.mxu0 0.0
    %2991 = vmatprep.subr.mxu0 0.0
    %2992 = vmatpush2.msra.mxu0 0.0
    %2993 = vmatprep.subr.mxu0 0.0
    %2994 = vmatpush2.msra.mxu0 0.0
    %2995 = vmatprep.subr.mxu0 0.0
    %2996 = vmatpush2.msra.mxu0 0.0
    %2997 = vmatprep.subr.mxu0 0.0
    %2998 = vmatpush2.msra.mxu0 0.0
    %2999 = vmatprep.subr.mxu0 0.0
    %3000 = vmatpush2.msra.mxu0 0.0
    %3001 = vmatprep.subr.mxu0 0.0
    %3002 = vmatpush2.msra.mxu0 0.0
    %3003 = vmatprep.subr.mxu0 0.0
    %3004 = vmatpush2.msra.mxu0 0.0
    %3005 = vmatprep.subr.mxu0 0.0
    %3006 = vmatpush2.msra.mxu0 0.0
    %3007 = vmatprep.subr.mxu0 0.0
    %3008 = vmatpush2.msra.mxu0 0.0
    %3009 = vmatprep.subr.mxu0 0.0
    %3010 = vmatpush2.msra.mxu0 0.0
    %3011 = vmatprep.mubr.f32.mxu0 0.0
    %3012 = vmatmul.mubr.f32.gmra.mxu0 %v2867
    %v3013 = vpop.f32.mrf.mxu0
    %v3014 = vadd.f32 %v2786, %v3013
    %v3015 = vpop.f32.mrf.mxu0
    %3016 = vdwg.mxu0
    %v3018 = vrot.slane %v2936, 7
    %v3020 = vsel %vm1648, %v2779, %v3018
    %v3022 = vrot.slane %v3014, 7
    %v3024 = vsel %vm1648, %v2855, %v3022
    %v3026 = vsel %vm302, %v2703, 0
    %v3029 = vsel %vm302, %v3020, 0
    %3031 = vmatprep.subr.mxu0 0.0
    %3032 = vmatpush1.xpose.msra.mxu0 0.0
    %3033 = vmatprep.subr.mxu0 0.0
    %3034 = vmatpush1.xpose.msra.mxu0 0.0
    %3035 = vmatprep.subr.mxu0 0.0
    %3036 = vmatpush1.xpose.msra.mxu0 0.0
    %3037 = vmatprep.subr.mxu0 0.0
    %3038 = vmatpush1.xpose.msra.mxu0 0.0
    %3039 = vmatprep.subr.mxu0 0.0
    %3040 = vmatpush1.xpose.msra.mxu0 0.0
    %3041 = vmatprep.subr.mxu0 0.0
    %3042 = vmatpush1.xpose.msra.mxu0 0.0
    %3043 = vmatprep.subr.mxu0 0.0
    %3044 = vmatpush1.xpose.msra.mxu0 0.0
    %3045 = vmatprep.subr.mxu0 0.0
    %3046 = vmatpush1.xpose.msra.mxu0 0.0
    %3047 = vmatprep.subr.mxu0 0.0
    %3048 = vmatpush1.xpose.msra.mxu0 0.0
    %3049 = vmatprep.subr.mxu0 0.0
    %3050 = vmatpush1.xpose.msra.mxu0 0.0
    %3051 = vmatprep.subr.mxu0 0.0
    %3052 = vmatpush1.xpose.msra.mxu0 0.0
    %3053 = vmatprep.subr.mxu0 0.0
    %3054 = vmatpush1.xpose.msra.mxu0 0.0
    %3055 = vmatprep.subr.mxu0 0.0
    %3056 = vmatpush1.xpose.msra.mxu0 0.0
    %3057 = vmatprep.subr.mxu0 0.0
    %3058 = vmatpush1.xpose.msra.mxu0 0.0
    %3059 = vmatprep.subr.mxu0 0.0
    %3060 = vmatpush1.xpose.msra.mxu0 0.0
    %3061 = vmatprep.subr.mxu0 0.0
    %3062 = vmatpush1.xpose.msra.mxu0 %v3029
    %3063 = vmatprep.subr.mxu0 0.0
    %3064 = vmatpush2.xpose.msra.mxu0 0.0
    %3065 = vmatprep.subr.mxu0 0.0
    %3066 = vmatpush2.xpose.msra.mxu0 0.0
    %3067 = vmatprep.subr.mxu0 0.0
    %3068 = vmatpush2.xpose.msra.mxu0 0.0
    %3069 = vmatprep.subr.mxu0 0.0
    %3070 = vmatpush2.xpose.msra.mxu0 0.0
    %3071 = vmatprep.subr.mxu0 0.0
    %3072 = vmatpush2.xpose.msra.mxu0 0.0
    %3073 = vmatprep.subr.mxu0 0.0
    %3074 = vmatpush2.xpose.msra.mxu0 0.0
    %3075 = vmatprep.subr.mxu0 0.0
    %3076 = vmatpush2.xpose.msra.mxu0 0.0
    %3077 = vmatprep.subr.mxu0 0.0
    %3078 = vmatpush2.xpose.msra.mxu0 0.0
    %3079 = vmatprep.subr.mxu0 0.0
    %3080 = vmatpush2.xpose.msra.mxu0 0.0
    %3081 = vmatprep.subr.mxu0 0.0
    %3082 = vmatpush2.xpose.msra.mxu0 0.0
    %3083 = vmatprep.subr.mxu0 0.0
    %3084 = vmatpush2.xpose.msra.mxu0 0.0
    %3085 = vmatprep.subr.mxu0 0.0
    %3086 = vmatpush2.xpose.msra.mxu0 0.0
    %3087 = vmatprep.subr.mxu0 0.0
    %3088 = vmatpush2.xpose.msra.mxu0 0.0
    %3089 = vmatprep.subr.mxu0 0.0
    %3090 = vmatpush2.xpose.msra.mxu0 0.0
    %3091 = vmatprep.subr.mxu0 0.0
    %3092 = vmatpush2.xpose.msra.mxu0 0.0
    %3093 = vmatprep.subr.mxu0 0.0
    %3094 = vmatpush2.xpose.msra.mxu0 0.0
    %3095 = vmatprep.mubr.f32.mxu0 0.0
    %3096 = vmatmul.mubr.f32.gmra.mxu0 %v3026
    %v3097 = vpop.f32.mrf.mxu0
    %v3098 = vadd.f32 0.0, %v3097
    %v3099 = vpop.f32.mrf.mxu0
    %3100 = vdwg.mxu0
    %vm3101 = vcmask 32768
    %v3102 = vsel %vm3101, %v3098, -inf
    %3103 = vmax.xlane.f32.xlu0 %v3102
    %v3104 = vpop.xlane.xlu0 %3103
    %v3105 = vsub.f32 %v3098, %v3104
    %v3106 = vmul.f32 %v3105, 1.442695
    %v3107 = vpow.pop %v3106
    %v3108 = vsel %vm3101, %v3107, 0.0
    %3109 = vadd.xlane.f32.xlu0 %v3108
    %v3110 = vpop.xlane.xlu0 %3109
    %v3111 = vrcp.pop %v3110
    %v3112 = vmul.f32 %v3107, %v3111
    %v3114 = vsel %vm1274, %v3112, 0
    %v3117 = vsel %vm1287, %v3024, 0
    %3119 = vmatprep.subr.mxu0 0.0
    %3120 = vmatpush1.msra.mxu0 0.0
    %3121 = vmatprep.subr.mxu0 0.0
    %3122 = vmatpush1.msra.mxu0 0.0
    %3123 = vmatprep.subr.mxu0 0.0
    %3124 = vmatpush1.msra.mxu0 0.0
    %3125 = vmatprep.subr.mxu0 0.0
    %3126 = vmatpush1.msra.mxu0 0.0
    %3127 = vmatprep.subr.mxu0 0.0
    %3128 = vmatpush1.msra.mxu0 0.0
    %3129 = vmatprep.subr.mxu0 0.0
    %3130 = vmatpush1.msra.mxu0 0.0
    %3131 = vmatprep.subr.mxu0 0.0
    %3132 = vmatpush1.msra.mxu0 0.0
    %3133 = vmatprep.subr.mxu0 0.0
    %3134 = vmatpush1.msra.mxu0 0.0
    %3135 = vmatprep.subr.mxu0 0.0
    %3136 = vmatpush1.msra.mxu0 0.0
    %3137 = vmatprep.subr.mxu0 0.0
    %3138 = vmatpush1.msra.mxu0 0.0
    %3139 = vmatprep.subr.mxu0 0.0
    %3140 = vmatpush1.msra.mxu0 0.0
    %3141 = vmatprep.subr.mxu0 0.0
    %3142 = vmatpush1.msra.mxu0 0.0
    %3143 = vmatprep.subr.mxu0 0.0
    %3144 = vmatpush1.msra.mxu0 0.0
    %3145 = vmatprep.subr.mxu0 0.0
    %3146 = vmatpush1.msra.mxu0 0.0
    %3147 = vmatprep.subr.mxu0 0.0
    %3148 = vmatpush1.msra.mxu0 0.0
    %3149 = vmatprep.subr.mxu0 0.0
    %3150 = vmatpush1.msra.mxu0 %v3117
    %3151 = vmatprep.subr.mxu0 0.0
    %3152 = vmatpush2.msra.mxu0 0.0
    %3153 = vmatprep.subr.mxu0 0.0
    %3154 = vmatpush2.msra.mxu0 0.0
    %3155 = vmatprep.subr.mxu0 0.0
    %3156 = vmatpush2.msra.mxu0 0.0
    %3157 = vmatprep.subr.mxu0 0.0
    %3158 = vmatpush2.msra.mxu0 0.0
    %3159 = vmatprep.subr.mxu0 0.0
    %3160 = vmatpush2.msra.mxu0 0.0
    %3161 = vmatprep.subr.mxu0 0.0
    %3162 = vmatpush2.msra.mxu0 0.0
    %3163 = vmatprep.subr.mxu0 0.0
    %3164 = vmatpush2.msra.mxu0 0.0
    %3165 = vmatprep.subr.mxu0 0.0
    %3166 = vmatpush2.msra.mxu0 0.0
    %3167 = vmatprep.subr.mxu0 0.0
    %3168 = vmatpush2.msra.mxu0 0.0
    %3169 = vmatprep.subr.mxu0 0.0
    %3170 = vmatpush2.msra.mxu0 0.0
    %3171 = vmatprep.subr.mxu0 0.0
    %3172 = vmatpush2.msra.mxu0 0.0
    %3173 = vmatprep.subr.mxu0 0.0
    %3174 = vmatpush2.msra.mxu0 0.0
    %3175 = vmatprep.subr.mxu0 0.0
    %3176 = vmatpush2.msra.mxu0 0.0
    %3177 = vmatprep.subr.mxu0 0.0
    %3178 = vmatpush2.msra.mxu0 0.0
    %3179 = vmatprep.subr.mxu0 0.0
    %3180 = vmatpush2.msra.mxu0 0.0
    %3181 = vmatprep.subr.mxu0 0.0
    %3182 = vmatpush2.msra.mxu0 0.0
    %3183 = vmatprep.mubr.f32.mxu0 0.0
    %3184 = vmatmul.mubr.f32.gmra.mxu0 %v3114
    %v3185 = vpop.f32.mrf.mxu0
    %v3186 = vadd.f32 0.0, %v3185
    %v3187 = vpop.f32.mrf.mxu0
    %3188 = vdwg.mxu0
    %v3190 = vrot.slane %v2779, 1
    %v3192 = vrot.slane %v2936, 3
    %v3194 = vsel %vm1648, %v3190, %v3192
    %v3196 = vrot.slane %v2855, 1
    %v3198 = vrot.slane %v3014, 3
    %v3200 = vsel %vm1648, %v3196, %v3198
    %v3201 = vrot.slane %v2703, 1
    %v3202 = vsel %vm302, %v3201, 0
    %v3205 = vsel %vm302, %v3194, 0
    %3207 = vmatprep.subr.mxu0 0.0
    %3208 = vmatpush1.xpose.msra.mxu0 0.0
    %3209 = vmatprep.subr.mxu0 0.0
    %3210 = vmatpush1.xpose.msra.mxu0 0.0
    %3211 = vmatprep.subr.mxu0 0.0
    %3212 = vmatpush1.xpose.msra.mxu0 0.0
    %3213 = vmatprep.subr.mxu0 0.0
    %3214 = vmatpush1.xpose.msra.mxu0 0.0
    %3215 = vmatprep.subr.mxu0 0.0
    %3216 = vmatpush1.xpose.msra.mxu0 0.0
    %3217 = vmatprep.subr.mxu0 0.0
    %3218 = vmatpush1.xpose.msra.mxu0 0.0
    %3219 = vmatprep.subr.mxu0 0.0
    %3220 = vmatpush1.xpose.msra.mxu0 0.0
    %3221 = vmatprep.subr.mxu0 0.0
    %3222 = vmatpush1.xpose.msra.mxu0 0.0
    %3223 = vmatprep.subr.mxu0 0.0
    %3224 = vmatpush1.xpose.msra.mxu0 0.0
    %3225 = vmatprep.subr.mxu0 0.0
    %3226 = vmatpush1.xpose.msra.mxu0 0.0
    %3227 = vmatprep.subr.mxu0 0.0
    %3228 = vmatpush1.xpose.msra.mxu0 0.0
    %3229 = vmatprep.subr.mxu0 0.0
    %3230 = vmatpush1.xpose.msra.mxu0 0.0
    %3231 = vmatprep.subr.mxu0 0.0
    %3232 = vmatpush1.xpose.msra.mxu0 0.0
    %3233 = vmatprep.subr.mxu0 0.0
    %3234 = vmatpush1.xpose.msra.mxu0 0.0
    %3235 = vmatprep.subr.mxu0 0.0
    %3236 = vmatpush1.xpose.msra.mxu0 0.0
    %3237 = vmatprep.subr.mxu0 0.0
    %3238 = vmatpush1.xpose.msra.mxu0 %v3205
    %3239 = vmatprep.subr.mxu0 0.0
    %3240 = vmatpush2.xpose.msra.mxu0 0.0
    %3241 = vmatprep.subr.mxu0 0.0
    %3242 = vmatpush2.xpose.msra.mxu0 0.0
    %3243 = vmatprep.subr.mxu0 0.0
    %3244 = vmatpush2.xpose.msra.mxu0 0.0
    %3245 = vmatprep.subr.mxu0 0.0
    %3246 = vmatpush2.xpose.msra.mxu0 0.0
    %3247 = vmatprep.subr.mxu0 0.0
    %3248 = vmatpush2.xpose.msra.mxu0 0.0
    %3249 = vmatprep.subr.mxu0 0.0
    %3250 = vmatpush2.xpose.msra.mxu0 0.0
    %3251 = vmatprep.subr.mxu0 0.0
    %3252 = vmatpush2.xpose.msra.mxu0 0.0
    %3253 = vmatprep.subr.mxu0 0.0
    %3254 = vmatpush2.xpose.msra.mxu0 0.0
    %3255 = vmatprep.subr.mxu0 0.0
    %3256 = vmatpush2.xpose.msra.mxu0 0.0
    %3257 = vmatprep.subr.mxu0 0.0
    %3258 = vmatpush2.xpose.msra.mxu0 0.0
    %3259 = vmatprep.subr.mxu0 0.0
    %3260 = vmatpush2.xpose.msra.mxu0 0.0
    %3261 = vmatprep.subr.mxu0 0.0
    %3262 = vmatpush2.xpose.msra.mxu0 0.0
    %3263 = vmatprep.subr.mxu0 0.0
    %3264 = vmatpush2.xpose.msra.mxu0 0.0
    %3265 = vmatprep.subr.mxu0 0.0
    %3266 = vmatpush2.xpose.msra.mxu0 0.0
    %3267 = vmatprep.subr.mxu0 0.0
    %3268 = vmatpush2.xpose.msra.mxu0 0.0
    %3269 = vmatprep.subr.mxu0 0.0
    %3270 = vmatpush2.xpose.msra.mxu0 0.0
    %3271 = vmatprep.mubr.f32.mxu0 0.0
    %3272 = vmatmul.mubr.f32.gmra.mxu0 %v3202
    %v3273 = vpop.f32.mrf.mxu0
    %v3274 = vadd.f32 0.0, %v3273
    %v3275 = vpop.f32.mrf.mxu0
    %3276 = vdwg.mxu0
    %v3277 = vsel %vm3101, %v3274, -inf
    %3278 = vmax.xlane.f32.xlu0 %v3277
    %v3279 = vpop.xlane.xlu0 %3278
    %v3280 = vsub.f32 %v3274, %v3279
    %v3281 = vmul.f32 %v3280, 1.442695
    %v3282 = vpow.pop %v3281
    %v3283 = vsel %vm3101, %v3282, 0.0
    %3284 = vadd.xlane.f32.xlu0 %v3283
    %v3285 = vpop.xlane.xlu0 %3284
    %v3286 = vrcp.pop %v3285
    %v3287 = vmul.f32 %v3282, %v3286
    %v3289 = vsel %vm1274, %v3287, 0
    %v3292 = vsel %vm1287, %v3200, 0
    %3294 = vmatprep.subr.mxu0 0.0
    %3295 = vmatpush1.msra.mxu0 0.0
    %3296 = vmatprep.subr.mxu0 0.0
    %3297 = vmatpush1.msra.mxu0 0.0
    %3298 = vmatprep.subr.mxu0 0.0
    %3299 = vmatpush1.msra.mxu0 0.0
    %3300 = vmatprep.subr.mxu0 0.0
    %3301 = vmatpush1.msra.mxu0 0.0
    %3302 = vmatprep.subr.mxu0 0.0
    %3303 = vmatpush1.msra.mxu0 0.0
    %3304 = vmatprep.subr.mxu0 0.0
    %3305 = vmatpush1.msra.mxu0 0.0
    %3306 = vmatprep.subr.mxu0 0.0
    %3307 = vmatpush1.msra.mxu0 0.0
    %3308 = vmatprep.subr.mxu0 0.0
    %3309 = vmatpush1.msra.mxu0 0.0
    %3310 = vmatprep.subr.mxu0 0.0
    %3311 = vmatpush1.msra.mxu0 0.0
    %3312 = vmatprep.subr.mxu0 0.0
    %3313 = vmatpush1.msra.mxu0 0.0
    %3314 = vmatprep.subr.mxu0 0.0
    %3315 = vmatpush1.msra.mxu0 0.0
    %3316 = vmatprep.subr.mxu0 0.0
    %3317 = vmatpush1.msra.mxu0 0.0
    %3318 = vmatprep.subr.mxu0 0.0
    %3319 = vmatpush1.msra.mxu0 0.0
    %3320 = vmatprep.subr.mxu0 0.0
    %3321 = vmatpush1.msra.mxu0 0.0
    %3322 = vmatprep.subr.mxu0 0.0
    %3323 = vmatpush1.msra.mxu0 0.0
    %3324 = vmatprep.subr.mxu0 0.0
    %3325 = vmatpush1.msra.mxu0 %v3292
    %3326 = vmatprep.subr.mxu0 0.0
    %3327 = vmatpush2.msra.mxu0 0.0
    %3328 = vmatprep.subr.mxu0 0.0
    %3329 = vmatpush2.msra.mxu0 0.0
    %3330 = vmatprep.subr.mxu0 0.0
    %3331 = vmatpush2.msra.mxu0 0.0
    %3332 = vmatprep.subr.mxu0 0.0
    %3333 = vmatpush2.msra.mxu0 0.0
    %3334 = vmatprep.subr.mxu0 0.0
    %3335 = vmatpush2.msra.mxu0 0.0
    %3336 = vmatprep.subr.mxu0 0.0
    %3337 = vmatpush2.msra.mxu0 0.0
    %3338 = vmatprep.subr.mxu0 0.0
    %3339 = vmatpush2.msra.mxu0 0.0
    %3340 = vmatprep.subr.mxu0 0.0
    %3341 = vmatpush2.msra.mxu0 0.0
    %3342 = vmatprep.subr.mxu0 0.0
    %3343 = vmatpush2.msra.mxu0 0.0
    %3344 = vmatprep.subr.mxu0 0.0
    %3345 = vmatpush2.msra.mxu0 0.0
    %3346 = vmatprep.subr.mxu0 0.0
    %3347 = vmatpush2.msra.mxu0 0.0
    %3348 = vmatprep.subr.mxu0 0.0
    %3349 = vmatpush2.msra.mxu0 0.0
    %3350 = vmatprep.subr.mxu0 0.0
    %3351 = vmatpush2.msra.mxu0 0.0
    %3352 = vmatprep.subr.mxu0 0.0
    %3353 = vmatpush2.msra.mxu0 0.0
    %3354 = vmatprep.subr.mxu0 0.0
    %3355 = vmatpush2.msra.mxu0 0.0
    %3356 = vmatprep.subr.mxu0 0.0
    %3357 = vmatpush2.msra.mxu0 0.0
    %3358 = vmatprep.mubr.f32.mxu0 0.0
    %3359 = vmatmul.mubr.f32.gmra.mxu0 %v3289
    %v3360 = vpop.f32.mrf.mxu0
    %v3361 = vadd.f32 0.0, %v3360
    %v3362 = vpop.f32.mrf.mxu0
    %3363 = vdwg.mxu0
    %v3365 = vrot.slane %v3361, 7
    %v3367 = vsel %vm1648, %v3186, %v3365
    %v3368 = vld [vmem:[#allocation13] sm:$0xff]
    %v3369 = vld [vmem:[#allocation13 + $0x8] sm:$0xff]
    %v3370 = vld [vmem:[#allocation13 + $0x10] sm:$0xff]
    %v3371 = vld [vmem:[#allocation13 + $0x18] sm:$0xff]
    %v3372 = vld [vmem:[#allocation13 + $0x20] sm:$0xff]
    %v3373 = vld [vmem:[#allocation13 + $0x28] sm:$0xff]
    %v3374 = vld [vmem:[#allocation13 + $0x30] sm:$0xff]
    %v3375 = vld [vmem:[#allocation13 + $0x38] sm:$0xff]
    %v3376 = vld [vmem:[%s21] sm:$0x1]
    %v3378 = vlaneseq
    %v3379 = vshrl.u32 %v3378, 7
    %v3380 = vsub.s32 0, %v3379
    %v3381 = vrot.slane %v3376, %v3380
    %v3384 = vsel %vm302, %v3367, 0
    %3386 = vmatprep.subr.mxu0 0.0
    %3387 = vmatpush1.msra.mxu0 0.0
    %3388 = vmatprep.subr.mxu0 0.0
    %3389 = vmatpush1.msra.mxu0 0.0
    %3390 = vmatprep.subr.mxu0 0.0
    %3391 = vmatpush1.msra.mxu0 0.0
    %3392 = vmatprep.subr.mxu0 0.0
    %3393 = vmatpush1.msra.mxu0 0.0
    %3394 = vmatprep.subr.mxu0 0.0
    %3395 = vmatpush1.msra.mxu0 0.0
    %3396 = vmatprep.subr.mxu0 0.0
    %3397 = vmatpush1.msra.mxu0 0.0
    %3398 = vmatprep.subr.mxu0 0.0
    %3399 = vmatpush1.msra.mxu0 0.0
    %3400 = vmatprep.subr.mxu0 0.0
    %3401 = vmatpush1.msra.mxu0 0.0
    %3402 = vmatprep.subr.mxu0 0.0
    %3403 = vmatpush1.msra.mxu0 %v3375
    %3404 = vmatprep.subr.mxu0 0.0
    %3405 = vmatpush1.msra.mxu0 %v3374
    %3406 = vmatprep.subr.mxu0 0.0
    %3407 = vmatpush1.msra.mxu0 %v3373
    %3408 = vmatprep.subr.mxu0 0.0
    %3409 = vmatpush1.msra.mxu0 %v3372
    %3410 = vmatprep.subr.mxu0 0.0
    %3411 = vmatpush1.msra.mxu0 %v3371
    %3412 = vmatprep.subr.mxu0 0.0
    %3413 = vmatpush1.msra.mxu0 %v3370
    %3414 = vmatprep.subr.mxu0 0.0
    %3415 = vmatpush1.msra.mxu0 %v3369
    %3416 = vmatprep.subr.mxu0 0.0
    %3417 = vmatpush1.msra.mxu0 %v3368
    %3418 = vmatprep.subr.mxu0 0.0
    %3419 = vmatpush2.msra.mxu0 0.0
    %3420 = vmatprep.subr.mxu0 0.0
    %3421 = vmatpush2.msra.mxu0 0.0
    %3422 = vmatprep.subr.mxu0 0.0
    %3423 = vmatpush2.msra.mxu0 0.0
    %3424 = vmatprep.subr.mxu0 0.0
    %3425 = vmatpush2.msra.mxu0 0.0
    %3426 = vmatprep.subr.mxu0 0.0
    %3427 = vmatpush2.msra.mxu0 0.0
    %3428 = vmatprep.subr.mxu0 0.0
    %3429 = vmatpush2.msra.mxu0 0.0
    %3430 = vmatprep.subr.mxu0 0.0
    %3431 = vmatpush2.msra.mxu0 0.0
    %3432 = vmatprep.subr.mxu0 0.0
    %3433 = vmatpush2.msra.mxu0 0.0
    %3434 = vmatprep.subr.mxu0 0.0
    %3435 = vmatpush2.msra.mxu0 0.0
    %3436 = vmatprep.subr.mxu0 0.0
    %3437 = vmatpush2.msra.mxu0 0.0
    %3438 = vmatprep.subr.mxu0 0.0
    %3439 = vmatpush2.msra.mxu0 0.0
    %3440 = vmatprep.subr.mxu0 0.0
    %3441 = vmatpush2.msra.mxu0 0.0
    %3442 = vmatprep.subr.mxu0 0.0
    %3443 = vmatpush2.msra.mxu0 0.0
    %3444 = vmatprep.subr.mxu0 0.0
    %3445 = vmatpush2.msra.mxu0 0.0
    %3446 = vmatprep.subr.mxu0 0.0
    %3447 = vmatpush2.msra.mxu0 0.0
    %3448 = vmatprep.subr.mxu0 0.0
    %3449 = vmatpush2.msra.mxu0 0.0
    %3450 = vmatprep.mubr.f32.mxu0 0.0
    %3451 = vmatmul.mubr.f32.gmra.mxu0 %v3384
    %v3452 = vpop.f32.mrf.mxu0
    %v3453 = vadd.f32 %v3381, %v3452
    %v3454 = vpop.f32.mrf.mxu0
    %3455 = vdwg.mxu0
    %v3456 = vmax.f32 %v3453, 0.0
    %v3457 = vld [vmem:[%s22] sm:$0xff]
    %v3458 = vld [vmem:[%s22 + $0x8] sm:$0xff]
    %v3459 = vld [vmem:[%s22 + $0x10] sm:$0xff]
    %v3460 = vld [vmem:[%s22 + $0x18] sm:$0xff]
    %v3461 = vld [vmem:[%s22 + $0x20] sm:$0xff]
    %v3462 = vld [vmem:[%s22 + $0x28] sm:$0xff]
    %v3463 = vld [vmem:[%s22 + $0x30] sm:$0xff]
    %v3464 = vld [vmem:[%s22 + $0x38] sm:$0xff]
    %v3465 = vld [vmem:[%s23] sm:$0x1]
    %v3467 = vlaneseq
    %v3468 = vshrl.u32 %v3467, 7
    %v3469 = vsub.s32 0, %v3468
    %v3470 = vrot.slane %v3465, %v3469
    %v3473 = vsel %vm302, %v3456, 0
    %3475 = vmatprep.subr.mxu0 0.0
    %3476 = vmatpush1.msra.mxu0 0.0
    %3477 = vmatprep.subr.mxu0 0.0
    %3478 = vmatpush1.msra.mxu0 0.0
    %3479 = vmatprep.subr.mxu0 0.0
    %3480 = vmatpush1.msra.mxu0 0.0
    %3481 = vmatprep.subr.mxu0 0.0
    %3482 = vmatpush1.msra.mxu0 0.0
    %3483 = vmatprep.subr.mxu0 0.0
    %3484 = vmatpush1.msra.mxu0 0.0
    %3485 = vmatprep.subr.mxu0 0.0
    %3486 = vmatpush1.msra.mxu0 0.0
    %3487 = vmatprep.subr.mxu0 0.0
    %3488 = vmatpush1.msra.mxu0 0.0
    %3489 = vmatprep.subr.mxu0 0.0
    %3490 = vmatpush1.msra.mxu0 0.0
    %3491 = vmatprep.subr.mxu0 0.0
    %3492 = vmatpush1.msra.mxu0 %v3464
    %3493 = vmatprep.subr.mxu0 0.0
    %3494 = vmatpush1.msra.mxu0 %v3463
    %3495 = vmatprep.subr.mxu0 0.0
    %3496 = vmatpush1.msra.mxu0 %v3462
    %3497 = vmatprep.subr.mxu0 0.0
    %3498 = vmatpush1.msra.mxu0 %v3461
    %3499 = vmatprep.subr.mxu0 0.0
    %3500 = vmatpush1.msra.mxu0 %v3460
    %3501 = vmatprep.subr.mxu0 0.0
    %3502 = vmatpush1.msra.mxu0 %v3459
    %3503 = vmatprep.subr.mxu0 0.0
    %3504 = vmatpush1.msra.mxu0 %v3458
    %3505 = vmatprep.subr.mxu0 0.0
    %3506 = vmatpush1.msra.mxu0 %v3457
    %3507 = vmatprep.subr.mxu0 0.0
    %3508 = vmatpush2.msra.mxu0 0.0
    %3509 = vmatprep.subr.mxu0 0.0
    %3510 = vmatpush2.msra.mxu0 0.0
    %3511 = vmatprep.subr.mxu0 0.0
    %3512 = vmatpush2.msra.mxu0 0.0
    %3513 = vmatprep.subr.mxu0 0.0
    %3514 = vmatpush2.msra.mxu0 0.0
    %3515 = vmatprep.subr.mxu0 0.0
    %3516 = vmatpush2.msra.mxu0 0.0
    %3517 = vmatprep.subr.mxu0 0.0
    %3518 = vmatpush2.msra.mxu0 0.0
    %3519 = vmatprep.subr.mxu0 0.0
    %3520 = vmatpush2.msra.mxu0 0.0
    %3521 = vmatprep.subr.mxu0 0.0
    %3522 = vmatpush2.msra.mxu0 0.0
    %3523 = vmatprep.subr.mxu0 0.0
    %3524 = vmatpush2.msra.mxu0 0.0
    %3525 = vmatprep.subr.mxu0 0.0
    %3526 = vmatpush2.msra.mxu0 0.0
    %3527 = vmatprep.subr.mxu0 0.0
    %3528 = vmatpush2.msra.mxu0 0.0
    %3529 = vmatprep.subr.mxu0 0.0
    %3530 = vmatpush2.msra.mxu0 0.0
    %3531 = vmatprep.subr.mxu0 0.0
    %3532 = vmatpush2.msra.mxu0 0.0
    %3533 = vmatprep.subr.mxu0 0.0
    %3534 = vmatpush2.msra.mxu0 0.0
    %3535 = vmatprep.subr.mxu0 0.0
    %3536 = vmatpush2.msra.mxu0 0.0
    %3537 = vmatprep.subr.mxu0 0.0
    %3538 = vmatpush2.msra.mxu0 0.0
    %3539 = vmatprep.mubr.f32.mxu0 0.0
    %3540 = vmatmul.mubr.f32.gmra.mxu0 %v3473
    %v3541 = vpop.f32.mrf.mxu0
    %v3542 = vadd.f32 %v3470, %v3541
    %v3543 = vpop.f32.mrf.mxu0
    %3544 = vdwg.mxu0
    %3545 = vst [vmem:[%s24] sm:$0x3] %v3542
    // Predicated region
    $region130: #{vector_lstm_forward.1} parent=1 // pred_check
      _
    $region131: #{vector_lstm_forward.1} parent=1 // pred_check_branch
      %3547 = sbr.rel (0) target = $region133
    $region132: #{vector_lstm_forward.1} parent=1 // pred_region
      _
    $region133: #{vector_lstm_forward.1} parent=1 // pred_fallthru
      _
    // Predicated region
    $region134: #{vector_lstm_forward.1} parent=1 // pred_check
      _
    $region135: #{vector_lstm_forward.1} parent=1 // pred_check_branch
      %3549 = sbr.rel (0) target = $region137
    $region136: #{vector_lstm_forward.1} parent=1 // pred_region
      _
    $region137: #{vector_lstm_forward.1} parent=1 // pred_fallthru
      _
    %3550 = vsyncpa [#allocation3], 1
    %3551 = vsyncpa [#allocation5], 1
    %3552 = vsyncpa [#allocation8], 1
    %3553 = vsyncpa [#allocation11], 1
    %3554 = vsyncpa [#allocation14], 1

</llo_original>
